<compile_context>
chip_gen: v7x
topology: tpu7x:2x2x1
jax: 0.10.0
libtpu: 0.0.40
codegen_flags: <defaults>
</compile_context>

<pallas_src>
import jax
import jax.numpy as jnp
import numpy as np
from jax.experimental import pallas as pl
from jax.experimental.pallas import tpu as pltpu

BN_EPS = 1e-5
LEAKY_SLOPE = 0.2
MXU_DTYPE = jnp.bfloat16          # MXU operand dtype; accumulate + epilogue in fp32


# ----------------------------- Pallas kernel --------------------------------
def _unet_kernel(x_ref,
                 s1, b1, t1, s2, b2, t2, s3, b3, t3,
                 s4, b4, t4, s5, b5, t5, s6, b6, t6,
                 o_ref):
    """Whole generator forward, fully VMEM resident.

    Activations are 2-D (N*H, W*C) fp32 values.  Each layer:
      sel_k   = S_k @ X                (one-hot row selection per vertical tap)
      patches = concat_k(sel_k)        (lane axis, K = 4*W*Cin per input part)
      Y       = patches @ B + shift    (banded weights, BN/bias scale folded in)
      Y       = act(Y)
    """

    def layer(parts, s_ref, b_ref, shift_ref, act):
        parts = [p.astype(MXU_DTYPE) for p in parts]
        sel = [
            jnp.dot(s_ref[k], p, preferred_element_type=jnp.float32).astype(MXU_DTYPE)
            for p in parts
            for k in range(4)
        ]
        patches = jnp.concatenate(sel, axis=1)
        y = jnp.dot(patches, b_ref[...], preferred_element_type=jnp.float32)
        y = y + shift_ref[...]
        if act == "relu":
            y = jnp.maximum(y, 0.0)
        elif act == "leaky":
            y = jnp.where(y >= 0.0, y, LEAKY_SLOPE * y)
        return y

    x = x_ref[...]                                   # (N*16, 16*4)  fp32
    e0 = layer([x],      s1, b1, t1, "leaky")        # Conv  4->8   + bias      (16, 64)
    e1 = layer([e0],     s2, b2, t2, "leaky")        # Conv  8->16  + BN        (8, 64)
    e2 = layer([e1],     s3, b3, t3, "relu")         # Conv 16->16  + bias      (4, 32)
    # TODO(synk): inner Dropout(p=0.5) runs in eval() mode -> identity (train-mode
    # randomness has no deterministic PyTorch-matching form).
    d2 = layer([e2],     s4, b4, t4, "relu")         # ConvT 16->16 + bias      (8, 64)
    d1 = layer([e1, d2], s5, b5, t5, "relu")         # ConvT 32->8  + BN  (skip cat e1)
    d0 = layer([e0, d1], s6, b6, t6, None)           # ConvT 16->4  + bias (skip cat e0)
    o_ref[...] = d0                                  # (N*16, 16*4) fp32


# ---------------------- constant (weight-folded) builders --------------------
def _row_select_conv(n, h):
    """S[kh, (n,ho), (n,ih)] = 1 iff ih == 2*ho - 1 + kh in [0, h)."""
    ho = h // 2
    s = np.zeros((4, n * ho, n * h), np.float32)
    for kh in range(4):
        for b in range(n):
            for r in range(ho):
                ih = 2 * r - 1 + kh
                if 0 <= ih < h:
                    s[kh, b * ho + r, b * h + ih] = 1.0
    return jnp.asarray(s).astype(MXU_DTYPE)


def _row_select_convt(n, h):
    """T[kh, (n,oh), (n,ih)] = 1 iff oh == 2*ih - 1 + kh in [0, 2h)."""
    hout = 2 * h
    s = np.zeros((4, n * hout, n * h), np.float32)
    for kh in range(4):
        for b in range(n):
            for ih in range(h):
                oh = 2 * ih - 1 + kh
                if 0 <= oh < hout:
                    s[kh, b * hout + oh, b * h + ih] = 1.0
    return jnp.asarray(s).astype(MXU_DTYPE)


def _col_weights_conv(w_oihw, scale, w_in):
    """Banded matrix (4*w_in*Cin, (w_in//2)*Cout) for Conv2d(k=4,s=2,p=1)."""
    cout, cin = int(w_oihw.shape[0]), int(w_oihw.shape[1])
    w_out = w_in // 2
    p = np.zeros((4, w_in, w_out), np.float32)
    for kw in range(4):
        for wo in range(w_out):
            iw = 2 * wo - 1 + kw
            if 0 <= iw < w_in:
                p[kw, iw, wo] = 1.0
    w_s = w_oihw.astype(jnp.float32) * scale[:, None, None, None]       # (o,i,kh,kw)
    b = jnp.einsum("kab,oihk->haibo", jnp.asarray(p), w_s)              # (kh,iw,ci,wo,co)
    return b.reshape(4 * w_in * cin, w_out * cout).astype(MXU_DTYPE)


def _col_weights_convt(w_iohw, scale, w_in):
    """Banded matrix (4*w_in*Cin, 2*w_in*Cout) for ConvTranspose2d(k=4,s=2,p=1)."""
    cin, cout = int(w_iohw.shape[0]), int(w_iohw.shape[1])
    w_out = 2 * w_in
    p = np.zeros((4, w_in, w_out), np.float32)
    for kw in range(4):
        for iw in range(w_in):
            ow = 2 * iw - 1 + kw
            if 0 <= ow < w_out:
                p[kw, iw, ow] = 1.0
    w_s = w_iohw.astype(jnp.float32) * scale[None, :, None, None]       # (i,o,kh,kw)
    b = jnp.einsum("kab,iohk->haibo", jnp.asarray(p), w_s)              # (kh,iw,ci,ow,co)
    return b.reshape(4 * w_in * cin, w_out * cout).astype(MXU_DTYPE)


def _affine_fold(cout, bias=None, bn=None):
    """Fold conv bias / eval-mode BatchNorm into per-channel (scale, shift)."""
    if bn is None:
        scale = jnp.ones((cout,), jnp.float32)
        shift = bias if bias is not None else jnp.zeros((cout,), jnp.float32)
    else:
        gamma, beta, mean, var = bn
        scale = gamma * jax.lax.rsqrt(var + BN_EPS)
        shift = beta - scale * mean
        if bias is not None:
            shift = shift + scale * bias
    return scale, shift


def _lane_shift(shift, w_out):
    """Per-channel shift tiled over the (wo, co) lane layout -> (1, w_out*C) fp32."""
    return jnp.tile(shift, w_out).reshape(1, -1).astype(jnp.float32)


def _build_kernel_inputs(params, n, h, w):
    h0, w0 = h, w
    h1, w1 = h // 2, w // 2
    h2, w2 = h // 4, w // 4
    h3, w3 = h // 8, w // 8

    # L1: Conv 4->8 (bias, LeakyReLU)
    sc, sh = _affine_fold(8, bias=params["outer_conv_b"])
    s1 = _row_select_conv(n, h0)
    b1 = _col_weights_conv(params["outer_conv_w"], sc, w0)
    t1 = _lane_shift(sh, w1)
    # L2: Conv 8->16 (BN, LeakyReLU)
    sc, sh = _affine_fold(16, bn=(params["mid_bn_in_g"], params["mid_bn_in_b"],
                                  params["mid_bn_in_m"], params["mid_bn_in_v"]))
    s2 = _row_select_conv(n, h1)
    b2 = _col_weights_conv(params["mid_conv_w"], sc, w1)
    t2 = _lane_shift(sh, w2)
    # L3: Conv 16->16 (bias, ReLU)
    sc, sh = _affine_fold(16, bias=params["inner_conv_b"])
    s3 = _row_select_conv(n, h2)
    b3 = _col_weights_conv(params["inner_conv_w"], sc, w2)
    t3 = _lane_shift(sh, w3)
    # L4: ConvT 16->16 (bias, Dropout(eval)=id, ReLU)
    sc, sh = _affine_fold(16, bias=params["inner_convt_b"])
    s4 = _row_select_convt(n, h3)
    b4 = _col_weights_convt(params["inner_convt_w"], sc, w3)
    t4 = _lane_shift(sh, w2)
    # L5: ConvT 32->8 (BN, ReLU) on cat(e1, d2)
    sc, sh = _affine_fold(8, bn=(params["mid_bn_out_g"], params["mid_bn_out_b"],
                                 params["mid_bn_out_m"], params["mid_bn_out_v"]))
    s5 = _row_select_convt(n, h2)
    b5 = jnp.concatenate([_col_weights_convt(params["mid_convt_w"][:16], sc, w2),
                          _col_weights_convt(params["mid_convt_w"][16:], sc, w2)], axis=0)
    t5 = _lane_shift(sh, w1)
    # L6: ConvT 16->4 (bias, no act) on cat(e0, d1)
    sc, sh = _affine_fold(4, bias=params["outer_convt_b"])
    s6 = _row_select_convt(n, h1)
    b6 = jnp.concatenate([_col_weights_convt(params["outer_convt_w"][:8], sc, w1),
                          _col_weights_convt(params["outer_convt_w"][8:], sc, w1)], axis=0)
    t6 = _lane_shift(sh, w0)
    return (s1, b1, t1, s2, b2, t2, s3, b3, t3,
            s4, b4, t4, s5, b5, t5, s6, b6, t6)


# ------------------------------ Generator ------------------------------------
@jax.jit
def generator_forward(params, x_nchw):
    n, c_in, h, w = x_nchw.shape
    c_out = params["outer_convt_w"].shape[1]
    x_nhwc = jnp.transpose(x_nchw, (0, 2, 3, 1))
    x2d = x_nhwc.reshape(n * h, w * c_in).astype(jnp.float32)   # rows=(n,h), cols=(w,c)
    consts = _build_kernel_inputs(params, n, h, w)

    vmem = pl.BlockSpec(memory_space=pltpu.MemorySpace.VMEM)
    d0_2d = pl.pallas_call(
        _unet_kernel,
        out_shape=jax.ShapeDtypeStruct((n * h, w * c_out), jnp.float32),
        in_specs=[vmem] * (1 + len(consts)),
        out_specs=vmem,
    )(x2d, *consts)

    d0 = d0_2d.reshape(n, h, w, c_out)
    out_nhwc = jnp.concatenate([x_nhwc, d0], axis=-1)            # outer skip: cat([x, model(x)])
    return jnp.transpose(out_nhwc, (0, 3, 1, 2))                 # NHWC -> NCHW


# ------------------------- pure-JAX reference (check) ------------------------
def _conv_ref(x, w_oihw):
    return jax.lax.conv_general_dilated(
        x, jnp.transpose(w_oihw, (2, 3, 1, 0)), window_strides=(2, 2),
        padding=[(1, 1), (1, 1)], dimension_numbers=("NHWC", "HWIO", "NHWC"))


def _convt_ref(x, w_iohw):
    w = jnp.transpose(w_iohw[:, :, ::-1, ::-1], (2, 3, 0, 1))
    return jax.lax.conv_general_dilated(
        x, w, window_strides=(1, 1), padding=[(2, 2), (2, 2)], lhs_dilation=(2, 2),
        dimension_numbers=("NHWC", "HWIO", "NHWC"))


def _bn_ref(x, g, b, m, v):
    return g * (x - m) * jax.lax.rsqrt(v + BN_EPS) + b


def _leaky(x):
    return jnp.where(x >= 0, x, LEAKY_SLOPE * x)


@jax.jit
def generator_reference(params, x_nchw):
    x = jnp.transpose(x_nchw, (0, 2, 3, 1))
    e0 = _leaky(_conv_ref(x, params["outer_conv_w"]) + params["outer_conv_b"])
    e1 = _leaky(_bn_ref(_conv_ref(e0, params["mid_conv_w"]),
                        params["mid_bn_in_g"], params["mid_bn_in_b"],
                        params["mid_bn_in_m"], params["mid_bn_in_v"]))
    e2 = jnp.maximum(_conv_ref(e1, params["inner_conv_w"]) + params["inner_conv_b"], 0.0)
    d2 = jnp.maximum(_convt_ref(e2, params["inner_convt_w"]) + params["inner_convt_b"], 0.0)
    d1 = jnp.maximum(_bn_ref(_convt_ref(jnp.concatenate([e1, d2], -1), params["mid_convt_w"]),
                             params["mid_bn_out_g"], params["mid_bn_out_b"],
                             params["mid_bn_out_m"], params["mid_bn_out_v"]), 0.0)
    d0 = _convt_ref(jnp.concatenate([e0, d1], -1), params["outer_convt_w"]) + params["outer_convt_b"]
    out = jnp.concatenate([x, d0], axis=-1)
    return jnp.transpose(out, (0, 3, 1, 2))


# --------------------------------- params ------------------------------------
def init_params(key):
    def normal(k, shape, std=0.02):
        return std * jax.random.normal(k, shape, jnp.float32)

    ks = jax.random.split(key, 18)
    return {
        "outer_conv_w":  normal(ks[0], (8, 4, 4, 4)),       # Conv2d(4->8), bias
        "outer_conv_b":  normal(ks[1], (8,)),
        "outer_convt_w": normal(ks[2], (16, 4, 4, 4)),       # ConvT(16->4), bias
        "outer_convt_b": normal(ks[3], (4,)),
        "mid_conv_w":    normal(ks[4], (16, 8, 4, 4)),       # Conv2d(8->16), BN
        "mid_bn_in_g":   1.0 + normal(ks[5], (16,)),
        "mid_bn_in_b":   normal(ks[6], (16,)),
        "mid_bn_in_m":   normal(ks[7], (16,), std=0.1),
        "mid_bn_in_v":   1.0 + 0.1 * jax.random.uniform(ks[8], (16,)),
        "mid_convt_w":   normal(ks[9], (32, 8, 4, 4)),       # ConvT(32->8), BN
        "mid_bn_out_g":  1.0 + normal(ks[10], (8,)),
        "mid_bn_out_b":  normal(ks[11], (8,)),
        "mid_bn_out_m":  normal(ks[12], (8,), std=0.1),
        "mid_bn_out_v":  1.0 + 0.1 * jax.random.uniform(ks[13], (8,)),
        "inner_conv_w":  normal(ks[14], (16, 16, 4, 4)),     # Conv2d(16->16), bias
        "inner_conv_b":  normal(ks[15], (16,)),
        "inner_convt_w": normal(ks[16], (16, 16, 4, 4)),     # ConvT(16->16), bias
        "inner_convt_b": normal(ks[17], (16,)),
    }


if __name__ == "__main__":
    key = jax.random.PRNGKey(0)
    pkey, xkey = jax.random.split(key)
    params = init_params(pkey)
    x = jax.random.normal(xkey, (2, 4, 16, 16), jnp.float32)          # NCHW input

    out = jax.block_until_ready(generator_forward(params, x))
    assert out.shape == (2, 8, 16, 16), out.shape                     # 4 input + 4 generated ch
    assert bool(jnp.all(jnp.isfinite(out)))

    ref = jax.block_until_ready(generator_reference(params, x))
    gen, gen_ref = out[:, 4:], ref[:, 4:]                             # generated channels only
    err = float(jnp.max(jnp.abs(gen - gen_ref)))
    tol = 0.08 * float(jnp.max(jnp.abs(gen_ref))) + 1e-3              # bf16 MXU operands
    assert err <= tol, (err, tol)

    print("KERNEL_OK")
</pallas_src>

<mosaic_0001>
module attributes {stable_mosaic.version = 11 : i64} {
  func.func @_unet_kernel(%arg0: memref<32x64xf32, #tpu.memory_space<vmem>>, %arg1: memref<4x16x32xbf16, #tpu.memory_space<vmem>>, %arg2: memref<256x64xbf16, #tpu.memory_space<vmem>>, %arg3: memref<1x64xf32, #tpu.memory_space<vmem>>, %arg4: memref<4x8x16xbf16, #tpu.memory_space<vmem>>, %arg5: memref<256x64xbf16, #tpu.memory_space<vmem>>, %arg6: memref<1x64xf32, #tpu.memory_space<vmem>>, %arg7: memref<4x4x8xbf16, #tpu.memory_space<vmem>>, %arg8: memref<256x32xbf16, #tpu.memory_space<vmem>>, %arg9: memref<1x32xf32, #tpu.memory_space<vmem>>, %arg10: memref<4x8x4xbf16, #tpu.memory_space<vmem>>, %arg11: memref<128x64xbf16, #tpu.memory_space<vmem>>, %arg12: memref<1x64xf32, #tpu.memory_space<vmem>>, %arg13: memref<4x16x8xbf16, #tpu.memory_space<vmem>>, %arg14: memref<512x64xbf16, #tpu.memory_space<vmem>>, %arg15: memref<1x64xf32, #tpu.memory_space<vmem>>, %arg16: memref<4x32x16xbf16, #tpu.memory_space<vmem>>, %arg17: memref<512x64xbf16, #tpu.memory_space<vmem>>, %arg18: memref<1x64xf32, #tpu.memory_space<vmem>>, %arg19: memref<32x64xf32, #tpu.memory_space<vmem>>) attributes {dimension_semantics = [], scalar_prefetch = 0 : i64, scratch_operands = 0 : i64, tpu.core_type = #tpu.core_type<tc>} {
    %c0 = arith.constant 0 : index
    %c0_0 = arith.constant 0 : index
    %0 = vector.load %arg0[%c0, %c0_0] : memref<32x64xf32, #tpu.memory_space<vmem>>, vector<32x64xf32>
    %1 = arith.truncf %0 : vector<32x64xf32> to vector<32x64xbf16>
    %c0_1 = arith.constant 0 : index
    %c0_2 = arith.constant 0 : index
    %c0_3 = arith.constant 0 : index
    %2 = vector.load %arg1[%c0_1, %c0_2, %c0_3] : memref<4x16x32xbf16, #tpu.memory_space<vmem>>, vector<1x16x32xbf16>
    %3 = vector.shape_cast %2 : vector<1x16x32xbf16> to vector<16x32xbf16>
    %cst = arith.constant dense<0.000000e+00> : vector<16x64xf32>
    %4 = tpu.matmul %3, %1, %cst {dimension_numbers = #tpu.dot_dimension_numbers<[1], [0], [0], [1], [0, 0, 1, 1], [], []>} : vector<16x32xbf16>, vector<32x64xbf16>, vector<16x64xf32> -> vector<16x64xf32>
    %5 = arith.truncf %4 : vector<16x64xf32> to vector<16x64xbf16>
    %c1 = arith.constant 1 : index
    %c0_4 = arith.constant 0 : index
    %c0_5 = arith.constant 0 : index
    %6 = vector.load %arg1[%c1, %c0_4, %c0_5] : memref<4x16x32xbf16, #tpu.memory_space<vmem>>, vector<1x16x32xbf16>
    %7 = vector.shape_cast %6 : vector<1x16x32xbf16> to vector<16x32xbf16>
    %cst_6 = arith.constant dense<0.000000e+00> : vector<16x64xf32>
    %8 = tpu.matmul %7, %1, %cst_6 {dimension_numbers = #tpu.dot_dimension_numbers<[1], [0], [0], [1], [0, 0, 1, 1], [], []>} : vector<16x32xbf16>, vector<32x64xbf16>, vector<16x64xf32> -> vector<16x64xf32>
    %9 = arith.truncf %8 : vector<16x64xf32> to vector<16x64xbf16>
    %c2 = arith.constant 2 : index
    %c0_7 = arith.constant 0 : index
    %c0_8 = arith.constant 0 : index
    %10 = vector.load %arg1[%c2, %c0_7, %c0_8] : memref<4x16x32xbf16, #tpu.memory_space<vmem>>, vector<1x16x32xbf16>
    %11 = vector.shape_cast %10 : vector<1x16x32xbf16> to vector<16x32xbf16>
    %cst_9 = arith.constant dense<0.000000e+00> : vector<16x64xf32>
    %12 = tpu.matmul %11, %1, %cst_9 {dimension_numbers = #tpu.dot_dimension_numbers<[1], [0], [0], [1], [0, 0, 1, 1], [], []>} : vector<16x32xbf16>, vector<32x64xbf16>, vector<16x64xf32> -> vector<16x64xf32>
    %13 = arith.truncf %12 : vector<16x64xf32> to vector<16x64xbf16>
    %c3 = arith.constant 3 : index
    %c0_10 = arith.constant 0 : index
    %c0_11 = arith.constant 0 : index
    %14 = vector.load %arg1[%c3, %c0_10, %c0_11] : memref<4x16x32xbf16, #tpu.memory_space<vmem>>, vector<1x16x32xbf16>
    %15 = vector.shape_cast %14 : vector<1x16x32xbf16> to vector<16x32xbf16>
    %cst_12 = arith.constant dense<0.000000e+00> : vector<16x64xf32>
    %16 = tpu.matmul %15, %1, %cst_12 {dimension_numbers = #tpu.dot_dimension_numbers<[1], [0], [0], [1], [0, 0, 1, 1], [], []>} : vector<16x32xbf16>, vector<32x64xbf16>, vector<16x64xf32> -> vector<16x64xf32>
    %17 = arith.truncf %16 : vector<16x64xf32> to vector<16x64xbf16>
    %18 = tpu.concatenate %5, %9, %13, %17 in 1 : vector<16x64xbf16>, vector<16x64xbf16>, vector<16x64xbf16>, vector<16x64xbf16> -> vector<16x256xbf16>
    %c0_13 = arith.constant 0 : index
    %c0_14 = arith.constant 0 : index
    %19 = vector.load %arg2[%c0_13, %c0_14] : memref<256x64xbf16, #tpu.memory_space<vmem>>, vector<256x64xbf16>
    %cst_15 = arith.constant dense<0.000000e+00> : vector<16x64xf32>
    %20 = tpu.matmul %18, %19, %cst_15 {dimension_numbers = #tpu.dot_dimension_numbers<[1], [0], [0], [1], [0, 0, 1, 1], [], []>} : vector<16x256xbf16>, vector<256x64xbf16>, vector<16x64xf32> -> vector<16x64xf32>
    %c0_16 = arith.constant 0 : index
    %c0_17 = arith.constant 0 : index
    %21 = vector.load %arg3[%c0_16, %c0_17] : memref<1x64xf32, #tpu.memory_space<vmem>>, vector<1x64xf32>
    %22 = vector.broadcast %21 : vector<1x64xf32> to vector<16x64xf32>
    %23 = arith.addf %20, %22 : vector<16x64xf32>
    %cst_18 = arith.constant 0.000000e+00 : f32
    %24 = vector.broadcast %cst_18 : f32 to vector<16x64xf32>
    %25 = arith.cmpf oge, %23, %24 : vector<16x64xf32>
    %cst_19 = arith.constant 2.000000e-01 : f32
    %26 = vector.broadcast %cst_19 : f32 to vector<16x64xf32>
    %27 = arith.mulf %26, %23 : vector<16x64xf32>
    %28 = arith.select %25, %23, %27 : vector<16x64xi1>, vector<16x64xf32>
    %29 = arith.truncf %28 : vector<16x64xf32> to vector<16x64xbf16>
    %c0_20 = arith.constant 0 : index
    %c0_21 = arith.constant 0 : index
    %c0_22 = arith.constant 0 : index
    %30 = vector.load %arg4[%c0_20, %c0_21, %c0_22] : memref<4x8x16xbf16, #tpu.memory_space<vmem>>, vector<1x8x16xbf16>
    %31 = vector.shape_cast %30 : vector<1x8x16xbf16> to vector<8x16xbf16>
    %cst_23 = arith.constant dense<0.000000e+00> : vector<8x64xf32>
    %32 = tpu.matmul %31, %29, %cst_23 {dimension_numbers = #tpu.dot_dimension_numbers<[1], [0], [0], [1], [0, 0, 1, 1], [], []>} : vector<8x16xbf16>, vector<16x64xbf16>, vector<8x64xf32> -> vector<8x64xf32>
    %33 = arith.truncf %32 : vector<8x64xf32> to vector<8x64xbf16>
    %c1_24 = arith.constant 1 : index
    %c0_25 = arith.constant 0 : index
    %c0_26 = arith.constant 0 : index
    %34 = vector.load %arg4[%c1_24, %c0_25, %c0_26] : memref<4x8x16xbf16, #tpu.memory_space<vmem>>, vector<1x8x16xbf16>
    %35 = vector.shape_cast %34 : vector<1x8x16xbf16> to vector<8x16xbf16>
    %cst_27 = arith.constant dense<0.000000e+00> : vector<8x64xf32>
    %36 = tpu.matmul %35, %29, %cst_27 {dimension_numbers = #tpu.dot_dimension_numbers<[1], [0], [0], [1], [0, 0, 1, 1], [], []>} : vector<8x16xbf16>, vector<16x64xbf16>, vector<8x64xf32> -> vector<8x64xf32>
    %37 = arith.truncf %36 : vector<8x64xf32> to vector<8x64xbf16>
    %c2_28 = arith.constant 2 : index
    %c0_29 = arith.constant 0 : index
    %c0_30 = arith.constant 0 : index
    %38 = vector.load %arg4[%c2_28, %c0_29, %c0_30] : memref<4x8x16xbf16, #tpu.memory_space<vmem>>, vector<1x8x16xbf16>
    %39 = vector.shape_cast %38 : vector<1x8x16xbf16> to vector<8x16xbf16>
    %cst_31 = arith.constant dense<0.000000e+00> : vector<8x64xf32>
    %40 = tpu.matmul %39, %29, %cst_31 {dimension_numbers = #tpu.dot_dimension_numbers<[1], [0], [0], [1], [0, 0, 1, 1], [], []>} : vector<8x16xbf16>, vector<16x64xbf16>, vector<8x64xf32> -> vector<8x64xf32>
    %41 = arith.truncf %40 : vector<8x64xf32> to vector<8x64xbf16>
    %c3_32 = arith.constant 3 : index
    %c0_33 = arith.constant 0 : index
    %c0_34 = arith.constant 0 : index
    %42 = vector.load %arg4[%c3_32, %c0_33, %c0_34] : memref<4x8x16xbf16, #tpu.memory_space<vmem>>, vector<1x8x16xbf16>
    %43 = vector.shape_cast %42 : vector<1x8x16xbf16> to vector<8x16xbf16>
    %cst_35 = arith.constant dense<0.000000e+00> : vector<8x64xf32>
    %44 = tpu.matmul %43, %29, %cst_35 {dimension_numbers = #tpu.dot_dimension_numbers<[1], [0], [0], [1], [0, 0, 1, 1], [], []>} : vector<8x16xbf16>, vector<16x64xbf16>, vector<8x64xf32> -> vector<8x64xf32>
    %45 = arith.truncf %44 : vector<8x64xf32> to vector<8x64xbf16>
    %46 = tpu.concatenate %33, %37, %41, %45 in 1 : vector<8x64xbf16>, vector<8x64xbf16>, vector<8x64xbf16>, vector<8x64xbf16> -> vector<8x256xbf16>
    %c0_36 = arith.constant 0 : index
    %c0_37 = arith.constant 0 : index
    %47 = vector.load %arg5[%c0_36, %c0_37] : memref<256x64xbf16, #tpu.memory_space<vmem>>, vector<256x64xbf16>
    %cst_38 = arith.constant dense<0.000000e+00> : vector<8x64xf32>
    %48 = tpu.matmul %46, %47, %cst_38 {dimension_numbers = #tpu.dot_dimension_numbers<[1], [0], [0], [1], [0, 0, 1, 1], [], []>} : vector<8x256xbf16>, vector<256x64xbf16>, vector<8x64xf32> -> vector<8x64xf32>
    %c0_39 = arith.constant 0 : index
    %c0_40 = arith.constant 0 : index
    %49 = vector.load %arg6[%c0_39, %c0_40] : memref<1x64xf32, #tpu.memory_space<vmem>>, vector<1x64xf32>
    %50 = vector.broadcast %49 : vector<1x64xf32> to vector<8x64xf32>
    %51 = arith.addf %48, %50 : vector<8x64xf32>
    %cst_41 = arith.constant 0.000000e+00 : f32
    %52 = vector.broadcast %cst_41 : f32 to vector<8x64xf32>
    %53 = arith.cmpf oge, %51, %52 : vector<8x64xf32>
    %cst_42 = arith.constant 2.000000e-01 : f32
    %54 = vector.broadcast %cst_42 : f32 to vector<8x64xf32>
    %55 = arith.mulf %54, %51 : vector<8x64xf32>
    %56 = arith.select %53, %51, %55 : vector<8x64xi1>, vector<8x64xf32>
    %57 = arith.truncf %56 : vector<8x64xf32> to vector<8x64xbf16>
    %c0_43 = arith.constant 0 : index
    %c0_44 = arith.constant 0 : index
    %c0_45 = arith.constant 0 : index
    %58 = vector.load %arg7[%c0_43, %c0_44, %c0_45] : memref<4x4x8xbf16, #tpu.memory_space<vmem>>, vector<1x4x8xbf16>
    %59 = vector.shape_cast %58 : vector<1x4x8xbf16> to vector<4x8xbf16>
    %cst_46 = arith.constant dense<0.000000e+00> : vector<4x64xf32>
    %60 = tpu.matmul %59, %57, %cst_46 {dimension_numbers = #tpu.dot_dimension_numbers<[1], [0], [0], [1], [0, 0, 1, 1], [], []>} : vector<4x8xbf16>, vector<8x64xbf16>, vector<4x64xf32> -> vector<4x64xf32>
    %61 = arith.truncf %60 : vector<4x64xf32> to vector<4x64xbf16>
    %c1_47 = arith.constant 1 : index
    %c0_48 = arith.constant 0 : index
    %c0_49 = arith.constant 0 : index
    %62 = vector.load %arg7[%c1_47, %c0_48, %c0_49] : memref<4x4x8xbf16, #tpu.memory_space<vmem>>, vector<1x4x8xbf16>
    %63 = vector.shape_cast %62 : vector<1x4x8xbf16> to vector<4x8xbf16>
    %cst_50 = arith.constant dense<0.000000e+00> : vector<4x64xf32>
    %64 = tpu.matmul %63, %57, %cst_50 {dimension_numbers = #tpu.dot_dimension_numbers<[1], [0], [0], [1], [0, 0, 1, 1], [], []>} : vector<4x8xbf16>, vector<8x64xbf16>, vector<4x64xf32> -> vector<4x64xf32>
    %65 = arith.truncf %64 : vector<4x64xf32> to vector<4x64xbf16>
    %c2_51 = arith.constant 2 : index
    %c0_52 = arith.constant 0 : index
    %c0_53 = arith.constant 0 : index
    %66 = vector.load %arg7[%c2_51, %c0_52, %c0_53] : memref<4x4x8xbf16, #tpu.memory_space<vmem>>, vector<1x4x8xbf16>
    %67 = vector.shape_cast %66 : vector<1x4x8xbf16> to vector<4x8xbf16>
    %cst_54 = arith.constant dense<0.000000e+00> : vector<4x64xf32>
    %68 = tpu.matmul %67, %57, %cst_54 {dimension_numbers = #tpu.dot_dimension_numbers<[1], [0], [0], [1], [0, 0, 1, 1], [], []>} : vector<4x8xbf16>, vector<8x64xbf16>, vector<4x64xf32> -> vector<4x64xf32>
    %69 = arith.truncf %68 : vector<4x64xf32> to vector<4x64xbf16>
    %c3_55 = arith.constant 3 : index
    %c0_56 = arith.constant 0 : index
    %c0_57 = arith.constant 0 : index
    %70 = vector.load %arg7[%c3_55, %c0_56, %c0_57] : memref<4x4x8xbf16, #tpu.memory_space<vmem>>, vector<1x4x8xbf16>
    %71 = vector.shape_cast %70 : vector<1x4x8xbf16> to vector<4x8xbf16>
    %cst_58 = arith.constant dense<0.000000e+00> : vector<4x64xf32>
    %72 = tpu.matmul %71, %57, %cst_58 {dimension_numbers = #tpu.dot_dimension_numbers<[1], [0], [0], [1], [0, 0, 1, 1], [], []>} : vector<4x8xbf16>, vector<8x64xbf16>, vector<4x64xf32> -> vector<4x64xf32>
    %73 = arith.truncf %72 : vector<4x64xf32> to vector<4x64xbf16>
    %74 = tpu.concatenate %61, %65, %69, %73 in 1 : vector<4x64xbf16>, vector<4x64xbf16>, vector<4x64xbf16>, vector<4x64xbf16> -> vector<4x256xbf16>
    %c0_59 = arith.constant 0 : index
    %c0_60 = arith.constant 0 : index
    %75 = vector.load %arg8[%c0_59, %c0_60] : memref<256x32xbf16, #tpu.memory_space<vmem>>, vector<256x32xbf16>
    %cst_61 = arith.constant dense<0.000000e+00> : vector<4x32xf32>
    %76 = tpu.matmul %74, %75, %cst_61 {dimension_numbers = #tpu.dot_dimension_numbers<[1], [0], [0], [1], [0, 0, 1, 1], [], []>} : vector<4x256xbf16>, vector<256x32xbf16>, vector<4x32xf32> -> vector<4x32xf32>
    %c0_62 = arith.constant 0 : index
    %c0_63 = arith.constant 0 : index
    %77 = vector.load %arg9[%c0_62, %c0_63] : memref<1x32xf32, #tpu.memory_space<vmem>>, vector<1x32xf32>
    %78 = vector.broadcast %77 : vector<1x32xf32> to vector<4x32xf32>
    %79 = arith.addf %76, %78 : vector<4x32xf32>
    %cst_64 = arith.constant 0.000000e+00 : f32
    %80 = vector.broadcast %cst_64 : f32 to vector<4x32xf32>
    %81 = arith.maximumf %79, %80 : vector<4x32xf32>
    %82 = arith.truncf %81 : vector<4x32xf32> to vector<4x32xbf16>
    %c0_65 = arith.constant 0 : index
    %c0_66 = arith.constant 0 : index
    %c0_67 = arith.constant 0 : index
    %83 = vector.load %arg10[%c0_65, %c0_66, %c0_67] : memref<4x8x4xbf16, #tpu.memory_space<vmem>>, vector<1x8x4xbf16>
    %84 = vector.shape_cast %83 : vector<1x8x4xbf16> to vector<8x4xbf16>
    %cst_68 = arith.constant dense<0.000000e+00> : vector<8x32xf32>
    %85 = tpu.matmul %84, %82, %cst_68 {dimension_numbers = #tpu.dot_dimension_numbers<[1], [0], [0], [1], [0, 0, 1, 1], [], []>} : vector<8x4xbf16>, vector<4x32xbf16>, vector<8x32xf32> -> vector<8x32xf32>
    %86 = arith.truncf %85 : vector<8x32xf32> to vector<8x32xbf16>
    %c1_69 = arith.constant 1 : index
    %c0_70 = arith.constant 0 : index
    %c0_71 = arith.constant 0 : index
    %87 = vector.load %arg10[%c1_69, %c0_70, %c0_71] : memref<4x8x4xbf16, #tpu.memory_space<vmem>>, vector<1x8x4xbf16>
    %88 = vector.shape_cast %87 : vector<1x8x4xbf16> to vector<8x4xbf16>
    %cst_72 = arith.constant dense<0.000000e+00> : vector<8x32xf32>
    %89 = tpu.matmul %88, %82, %cst_72 {dimension_numbers = #tpu.dot_dimension_numbers<[1], [0], [0], [1], [0, 0, 1, 1], [], []>} : vector<8x4xbf16>, vector<4x32xbf16>, vector<8x32xf32> -> vector<8x32xf32>
    %90 = arith.truncf %89 : vector<8x32xf32> to vector<8x32xbf16>
    %c2_73 = arith.constant 2 : index
    %c0_74 = arith.constant 0 : index
    %c0_75 = arith.constant 0 : index
    %91 = vector.load %arg10[%c2_73, %c0_74, %c0_75] : memref<4x8x4xbf16, #tpu.memory_space<vmem>>, vector<1x8x4xbf16>
    %92 = vector.shape_cast %91 : vector<1x8x4xbf16> to vector<8x4xbf16>
    %cst_76 = arith.constant dense<0.000000e+00> : vector<8x32xf32>
    %93 = tpu.matmul %92, %82, %cst_76 {dimension_numbers = #tpu.dot_dimension_numbers<[1], [0], [0], [1], [0, 0, 1, 1], [], []>} : vector<8x4xbf16>, vector<4x32xbf16>, vector<8x32xf32> -> vector<8x32xf32>
    %94 = arith.truncf %93 : vector<8x32xf32> to vector<8x32xbf16>
    %c3_77 = arith.constant 3 : index
    %c0_78 = arith.constant 0 : index
    %c0_79 = arith.constant 0 : index
    %95 = vector.load %arg10[%c3_77, %c0_78, %c0_79] : memref<4x8x4xbf16, #tpu.memory_space<vmem>>, vector<1x8x4xbf16>
    %96 = vector.shape_cast %95 : vector<1x8x4xbf16> to vector<8x4xbf16>
    %cst_80 = arith.constant dense<0.000000e+00> : vector<8x32xf32>
    %97 = tpu.matmul %96, %82, %cst_80 {dimension_numbers = #tpu.dot_dimension_numbers<[1], [0], [0], [1], [0, 0, 1, 1], [], []>} : vector<8x4xbf16>, vector<4x32xbf16>, vector<8x32xf32> -> vector<8x32xf32>
    %98 = arith.truncf %97 : vector<8x32xf32> to vector<8x32xbf16>
    %99 = tpu.concatenate %86, %90, %94, %98 in 1 : vector<8x32xbf16>, vector<8x32xbf16>, vector<8x32xbf16>, vector<8x32xbf16> -> vector<8x128xbf16>
    %c0_81 = arith.constant 0 : index
    %c0_82 = arith.constant 0 : index
    %100 = vector.load %arg11[%c0_81, %c0_82] : memref<128x64xbf16, #tpu.memory_space<vmem>>, vector<128x64xbf16>
    %cst_83 = arith.constant dense<0.000000e+00> : vector<8x64xf32>
    %101 = tpu.matmul %99, %100, %cst_83 {dimension_numbers = #tpu.dot_dimension_numbers<[1], [0], [0], [1], [0, 0, 1, 1], [], []>} : vector<8x128xbf16>, vector<128x64xbf16>, vector<8x64xf32> -> vector<8x64xf32>
    %c0_84 = arith.constant 0 : index
    %c0_85 = arith.constant 0 : index
    %102 = vector.load %arg12[%c0_84, %c0_85] : memref<1x64xf32, #tpu.memory_space<vmem>>, vector<1x64xf32>
    %103 = vector.broadcast %102 : vector<1x64xf32> to vector<8x64xf32>
    %104 = arith.addf %101, %103 : vector<8x64xf32>
    %cst_86 = arith.constant 0.000000e+00 : f32
    %105 = vector.broadcast %cst_86 : f32 to vector<8x64xf32>
    %106 = arith.maximumf %104, %105 : vector<8x64xf32>
    %107 = arith.truncf %56 : vector<8x64xf32> to vector<8x64xbf16>
    %108 = arith.truncf %106 : vector<8x64xf32> to vector<8x64xbf16>
    %c0_87 = arith.constant 0 : index
    %c0_88 = arith.constant 0 : index
    %c0_89 = arith.constant 0 : index
    %109 = vector.load %arg13[%c0_87, %c0_88, %c0_89] : memref<4x16x8xbf16, #tpu.memory_space<vmem>>, vector<1x16x8xbf16>
    %110 = vector.shape_cast %109 : vector<1x16x8xbf16> to vector<16x8xbf16>
    %cst_90 = arith.constant dense<0.000000e+00> : vector<16x64xf32>
    %111 = tpu.matmul %110, %107, %cst_90 {dimension_numbers = #tpu.dot_dimension_numbers<[1], [0], [0], [1], [0, 0, 1, 1], [], []>} : vector<16x8xbf16>, vector<8x64xbf16>, vector<16x64xf32> -> vector<16x64xf32>
    %112 = arith.truncf %111 : vector<16x64xf32> to vector<16x64xbf16>
    %c1_91 = arith.constant 1 : index
    %c0_92 = arith.constant 0 : index
    %c0_93 = arith.constant 0 : index
    %113 = vector.load %arg13[%c1_91, %c0_92, %c0_93] : memref<4x16x8xbf16, #tpu.memory_space<vmem>>, vector<1x16x8xbf16>
    %114 = vector.shape_cast %113 : vector<1x16x8xbf16> to vector<16x8xbf16>
    %cst_94 = arith.constant dense<0.000000e+00> : vector<16x64xf32>
    %115 = tpu.matmul %114, %107, %cst_94 {dimension_numbers = #tpu.dot_dimension_numbers<[1], [0], [0], [1], [0, 0, 1, 1], [], []>} : vector<16x8xbf16>, vector<8x64xbf16>, vector<16x64xf32> -> vector<16x64xf32>
    %116 = arith.truncf %115 : vector<16x64xf32> to vector<16x64xbf16>
    %c2_95 = arith.constant 2 : index
    %c0_96 = arith.constant 0 : index
    %c0_97 = arith.constant 0 : index
    %117 = vector.load %arg13[%c2_95, %c0_96, %c0_97] : memref<4x16x8xbf16, #tpu.memory_space<vmem>>, vector<1x16x8xbf16>
    %118 = vector.shape_cast %117 : vector<1x16x8xbf16> to vector<16x8xbf16>
    %cst_98 = arith.constant dense<0.000000e+00> : vector<16x64xf32>
    %119 = tpu.matmul %118, %107, %cst_98 {dimension_numbers = #tpu.dot_dimension_numbers<[1], [0], [0], [1], [0, 0, 1, 1], [], []>} : vector<16x8xbf16>, vector<8x64xbf16>, vector<16x64xf32> -> vector<16x64xf32>
    %120 = arith.truncf %119 : vector<16x64xf32> to vector<16x64xbf16>
    %c3_99 = arith.constant 3 : index
    %c0_100 = arith.constant 0 : index
    %c0_101 = arith.constant 0 : index
    %121 = vector.load %arg13[%c3_99, %c0_100, %c0_101] : memref<4x16x8xbf16, #tpu.memory_space<vmem>>, vector<1x16x8xbf16>
    %122 = vector.shape_cast %121 : vector<1x16x8xbf16> to vector<16x8xbf16>
    %cst_102 = arith.constant dense<0.000000e+00> : vector<16x64xf32>
    %123 = tpu.matmul %122, %107, %cst_102 {dimension_numbers = #tpu.dot_dimension_numbers<[1], [0], [0], [1], [0, 0, 1, 1], [], []>} : vector<16x8xbf16>, vector<8x64xbf16>, vector<16x64xf32> -> vector<16x64xf32>
    %124 = arith.truncf %123 : vector<16x64xf32> to vector<16x64xbf16>
    %c0_103 = arith.constant 0 : index
    %c0_104 = arith.constant 0 : index
    %c0_105 = arith.constant 0 : index
    %125 = vector.load %arg13[%c0_103, %c0_104, %c0_105] : memref<4x16x8xbf16, #tpu.memory_space<vmem>>, vector<1x16x8xbf16>
    %126 = vector.shape_cast %125 : vector<1x16x8xbf16> to vector<16x8xbf16>
    %cst_106 = arith.constant dense<0.000000e+00> : vector<16x64xf32>
    %127 = tpu.matmul %126, %108, %cst_106 {dimension_numbers = #tpu.dot_dimension_numbers<[1], [0], [0], [1], [0, 0, 1, 1], [], []>} : vector<16x8xbf16>, vector<8x64xbf16>, vector<16x64xf32> -> vector<16x64xf32>
    %128 = arith.truncf %127 : vector<16x64xf32> to vector<16x64xbf16>
    %c1_107 = arith.constant 1 : index
    %c0_108 = arith.constant 0 : index
    %c0_109 = arith.constant 0 : index
    %129 = vector.load %arg13[%c1_107, %c0_108, %c0_109] : memref<4x16x8xbf16, #tpu.memory_space<vmem>>, vector<1x16x8xbf16>
    %130 = vector.shape_cast %129 : vector<1x16x8xbf16> to vector<16x8xbf16>
    %cst_110 = arith.constant dense<0.000000e+00> : vector<16x64xf32>
    %131 = tpu.matmul %130, %108, %cst_110 {dimension_numbers = #tpu.dot_dimension_numbers<[1], [0], [0], [1], [0, 0, 1, 1], [], []>} : vector<16x8xbf16>, vector<8x64xbf16>, vector<16x64xf32> -> vector<16x64xf32>
    %132 = arith.truncf %131 : vector<16x64xf32> to vector<16x64xbf16>
    %c2_111 = arith.constant 2 : index
    %c0_112 = arith.constant 0 : index
    %c0_113 = arith.constant 0 : index
    %133 = vector.load %arg13[%c2_111, %c0_112, %c0_113] : memref<4x16x8xbf16, #tpu.memory_space<vmem>>, vector<1x16x8xbf16>
    %134 = vector.shape_cast %133 : vector<1x16x8xbf16> to vector<16x8xbf16>
    %cst_114 = arith.constant dense<0.000000e+00> : vector<16x64xf32>
    %135 = tpu.matmul %134, %108, %cst_114 {dimension_numbers = #tpu.dot_dimension_numbers<[1], [0], [0], [1], [0, 0, 1, 1], [], []>} : vector<16x8xbf16>, vector<8x64xbf16>, vector<16x64xf32> -> vector<16x64xf32>
    %136 = arith.truncf %135 : vector<16x64xf32> to vector<16x64xbf16>
    %c3_115 = arith.constant 3 : index
    %c0_116 = arith.constant 0 : index
    %c0_117 = arith.constant 0 : index
    %137 = vector.load %arg13[%c3_115, %c0_116, %c0_117] : memref<4x16x8xbf16, #tpu.memory_space<vmem>>, vector<1x16x8xbf16>
    %138 = vector.shape_cast %137 : vector<1x16x8xbf16> to vector<16x8xbf16>
    %cst_118 = arith.constant dense<0.000000e+00> : vector<16x64xf32>
    %139 = tpu.matmul %138, %108, %cst_118 {dimension_numbers = #tpu.dot_dimension_numbers<[1], [0], [0], [1], [0, 0, 1, 1], [], []>} : vector<16x8xbf16>, vector<8x64xbf16>, vector<16x64xf32> -> vector<16x64xf32>
    %140 = arith.truncf %139 : vector<16x64xf32> to vector<16x64xbf16>
    %141 = tpu.concatenate %112, %116, %120, %124, %128, %132, %136, %140 in 1 : vector<16x64xbf16>, vector<16x64xbf16>, vector<16x64xbf16>, vector<16x64xbf16>, vector<16x64xbf16>, vector<16x64xbf16>, vector<16x64xbf16>, vector<16x64xbf16> -> vector<16x512xbf16>
    %c0_119 = arith.constant 0 : index
    %c0_120 = arith.constant 0 : index
    %142 = vector.load %arg14[%c0_119, %c0_120] : memref<512x64xbf16, #tpu.memory_space<vmem>>, vector<512x64xbf16>
    %cst_121 = arith.constant dense<0.000000e+00> : vector<16x64xf32>
    %143 = tpu.matmul %141, %142, %cst_121 {dimension_numbers = #tpu.dot_dimension_numbers<[1], [0], [0], [1], [0, 0, 1, 1], [], []>} : vector<16x512xbf16>, vector<512x64xbf16>, vector<16x64xf32> -> vector<16x64xf32>
    %c0_122 = arith.constant 0 : index
    %c0_123 = arith.constant 0 : index
    %144 = vector.load %arg15[%c0_122, %c0_123] : memref<1x64xf32, #tpu.memory_space<vmem>>, vector<1x64xf32>
    %145 = vector.broadcast %144 : vector<1x64xf32> to vector<16x64xf32>
    %146 = arith.addf %143, %145 : vector<16x64xf32>
    %cst_124 = arith.constant 0.000000e+00 : f32
    %147 = vector.broadcast %cst_124 : f32 to vector<16x64xf32>
    %148 = arith.maximumf %146, %147 : vector<16x64xf32>
    %149 = arith.truncf %28 : vector<16x64xf32> to vector<16x64xbf16>
    %150 = arith.truncf %148 : vector<16x64xf32> to vector<16x64xbf16>
    %c0_125 = arith.constant 0 : index
    %c0_126 = arith.constant 0 : index
    %c0_127 = arith.constant 0 : index
    %151 = vector.load %arg16[%c0_125, %c0_126, %c0_127] : memref<4x32x16xbf16, #tpu.memory_space<vmem>>, vector<1x32x16xbf16>
    %152 = vector.shape_cast %151 : vector<1x32x16xbf16> to vector<32x16xbf16>
    %cst_128 = arith.constant dense<0.000000e+00> : vector<32x64xf32>
    %153 = tpu.matmul %152, %149, %cst_128 {dimension_numbers = #tpu.dot_dimension_numbers<[1], [0], [0], [1], [0, 0, 1, 1], [], []>} : vector<32x16xbf16>, vector<16x64xbf16>, vector<32x64xf32> -> vector<32x64xf32>
    %154 = arith.truncf %153 : vector<32x64xf32> to vector<32x64xbf16>
    %c1_129 = arith.constant 1 : index
    %c0_130 = arith.constant 0 : index
    %c0_131 = arith.constant 0 : index
    %155 = vector.load %arg16[%c1_129, %c0_130, %c0_131] : memref<4x32x16xbf16, #tpu.memory_space<vmem>>, vector<1x32x16xbf16>
    %156 = vector.shape_cast %155 : vector<1x32x16xbf16> to vector<32x16xbf16>
    %cst_132 = arith.constant dense<0.000000e+00> : vector<32x64xf32>
    %157 = tpu.matmul %156, %149, %cst_132 {dimension_numbers = #tpu.dot_dimension_numbers<[1], [0], [0], [1], [0, 0, 1, 1], [], []>} : vector<32x16xbf16>, vector<16x64xbf16>, vector<32x64xf32> -> vector<32x64xf32>
    %158 = arith.truncf %157 : vector<32x64xf32> to vector<32x64xbf16>
    %c2_133 = arith.constant 2 : index
    %c0_134 = arith.constant 0 : index
    %c0_135 = arith.constant 0 : index
    %159 = vector.load %arg16[%c2_133, %c0_134, %c0_135] : memref<4x32x16xbf16, #tpu.memory_space<vmem>>, vector<1x32x16xbf16>
    %160 = vector.shape_cast %159 : vector<1x32x16xbf16> to vector<32x16xbf16>
    %cst_136 = arith.constant dense<0.000000e+00> : vector<32x64xf32>
    %161 = tpu.matmul %160, %149, %cst_136 {dimension_numbers = #tpu.dot_dimension_numbers<[1], [0], [0], [1], [0, 0, 1, 1], [], []>} : vector<32x16xbf16>, vector<16x64xbf16>, vector<32x64xf32> -> vector<32x64xf32>
    %162 = arith.truncf %161 : vector<32x64xf32> to vector<32x64xbf16>
    %c3_137 = arith.constant 3 : index
    %c0_138 = arith.constant 0 : index
    %c0_139 = arith.constant 0 : index
    %163 = vector.load %arg16[%c3_137, %c0_138, %c0_139] : memref<4x32x16xbf16, #tpu.memory_space<vmem>>, vector<1x32x16xbf16>
    %164 = vector.shape_cast %163 : vector<1x32x16xbf16> to vector<32x16xbf16>
    %cst_140 = arith.constant dense<0.000000e+00> : vector<32x64xf32>
    %165 = tpu.matmul %164, %149, %cst_140 {dimension_numbers = #tpu.dot_dimension_numbers<[1], [0], [0], [1], [0, 0, 1, 1], [], []>} : vector<32x16xbf16>, vector<16x64xbf16>, vector<32x64xf32> -> vector<32x64xf32>
    %166 = arith.truncf %165 : vector<32x64xf32> to vector<32x64xbf16>
    %c0_141 = arith.constant 0 : index
    %c0_142 = arith.constant 0 : index
    %c0_143 = arith.constant 0 : index
    %167 = vector.load %arg16[%c0_141, %c0_142, %c0_143] : memref<4x32x16xbf16, #tpu.memory_space<vmem>>, vector<1x32x16xbf16>
    %168 = vector.shape_cast %167 : vector<1x32x16xbf16> to vector<32x16xbf16>
    %cst_144 = arith.constant dense<0.000000e+00> : vector<32x64xf32>
    %169 = tpu.matmul %168, %150, %cst_144 {dimension_numbers = #tpu.dot_dimension_numbers<[1], [0], [0], [1], [0, 0, 1, 1], [], []>} : vector<32x16xbf16>, vector<16x64xbf16>, vector<32x64xf32> -> vector<32x64xf32>
    %170 = arith.truncf %169 : vector<32x64xf32> to vector<32x64xbf16>
    %c1_145 = arith.constant 1 : index
    %c0_146 = arith.constant 0 : index
    %c0_147 = arith.constant 0 : index
    %171 = vector.load %arg16[%c1_145, %c0_146, %c0_147] : memref<4x32x16xbf16, #tpu.memory_space<vmem>>, vector<1x32x16xbf16>
    %172 = vector.shape_cast %171 : vector<1x32x16xbf16> to vector<32x16xbf16>
    %cst_148 = arith.constant dense<0.000000e+00> : vector<32x64xf32>
    %173 = tpu.matmul %172, %150, %cst_148 {dimension_numbers = #tpu.dot_dimension_numbers<[1], [0], [0], [1], [0, 0, 1, 1], [], []>} : vector<32x16xbf16>, vector<16x64xbf16>, vector<32x64xf32> -> vector<32x64xf32>
    %174 = arith.truncf %173 : vector<32x64xf32> to vector<32x64xbf16>
    %c2_149 = arith.constant 2 : index
    %c0_150 = arith.constant 0 : index
    %c0_151 = arith.constant 0 : index
    %175 = vector.load %arg16[%c2_149, %c0_150, %c0_151] : memref<4x32x16xbf16, #tpu.memory_space<vmem>>, vector<1x32x16xbf16>
    %176 = vector.shape_cast %175 : vector<1x32x16xbf16> to vector<32x16xbf16>
    %cst_152 = arith.constant dense<0.000000e+00> : vector<32x64xf32>
    %177 = tpu.matmul %176, %150, %cst_152 {dimension_numbers = #tpu.dot_dimension_numbers<[1], [0], [0], [1], [0, 0, 1, 1], [], []>} : vector<32x16xbf16>, vector<16x64xbf16>, vector<32x64xf32> -> vector<32x64xf32>
    %178 = arith.truncf %177 : vector<32x64xf32> to vector<32x64xbf16>
    %c3_153 = arith.constant 3 : index
    %c0_154 = arith.constant 0 : index
    %c0_155 = arith.constant 0 : index
    %179 = vector.load %arg16[%c3_153, %c0_154, %c0_155] : memref<4x32x16xbf16, #tpu.memory_space<vmem>>, vector<1x32x16xbf16>
    %180 = vector.shape_cast %179 : vector<1x32x16xbf16> to vector<32x16xbf16>
    %cst_156 = arith.constant dense<0.000000e+00> : vector<32x64xf32>
    %181 = tpu.matmul %180, %150, %cst_156 {dimension_numbers = #tpu.dot_dimension_numbers<[1], [0], [0], [1], [0, 0, 1, 1], [], []>} : vector<32x16xbf16>, vector<16x64xbf16>, vector<32x64xf32> -> vector<32x64xf32>
    %182 = arith.truncf %181 : vector<32x64xf32> to vector<32x64xbf16>
    %183 = tpu.concatenate %154, %158, %162, %166, %170, %174, %178, %182 in 1 : vector<32x64xbf16>, vector<32x64xbf16>, vector<32x64xbf16>, vector<32x64xbf16>, vector<32x64xbf16>, vector<32x64xbf16>, vector<32x64xbf16>, vector<32x64xbf16> -> vector<32x512xbf16>
    %c0_157 = arith.constant 0 : index
    %c0_158 = arith.constant 0 : index
    %184 = vector.load %arg17[%c0_157, %c0_158] : memref<512x64xbf16, #tpu.memory_space<vmem>>, vector<512x64xbf16>
    %cst_159 = arith.constant dense<0.000000e+00> : vector<32x64xf32>
    %185 = tpu.matmul %183, %184, %cst_159 {dimension_numbers = #tpu.dot_dimension_numbers<[1], [0], [0], [1], [0, 0, 1, 1], [], []>} : vector<32x512xbf16>, vector<512x64xbf16>, vector<32x64xf32> -> vector<32x64xf32>
    %c0_160 = arith.constant 0 : index
    %c0_161 = arith.constant 0 : index
    %186 = vector.load %arg18[%c0_160, %c0_161] : memref<1x64xf32, #tpu.memory_space<vmem>>, vector<1x64xf32>
    %187 = vector.broadcast %186 : vector<1x64xf32> to vector<32x64xf32>
    %188 = arith.addf %185, %187 : vector<32x64xf32>
    %c0_162 = arith.constant 0 : index
    %c0_163 = arith.constant 0 : index
    %189 = vector.load %arg19[%c0_162, %c0_163] : memref<32x64xf32, #tpu.memory_space<vmem>>, vector<32x64xf32>
    tpu.vector_store %arg19[%c0_162, %c0_163], %188 {strides = array<i32>} : memref<32x64xf32, #tpu.memory_space<vmem>>, vector<32x64xf32>,
    return
  }
}

</mosaic_0001>

<llo_original>
// kernel: tile.53
$region0: #{tile.53}
  #allocation0 [shape = 's32[1]{0}', space=sflag, size = 0x4, scoped, tag = 'scoped memory for tile.53']
  %s0 = inlined_call_operand.vmem [shape: f32[8], index: 0, kind: input, shape index: {}]
  %s1 = inlined_call_operand.vmem [shape: f32[8,8], index: 1, kind: output, shape index: {}]
  // Predicated region
  $region2: #{tile.53} parent=0 // pred_check
    _
  $region3: #{tile.53} parent=0 // pred_check_branch
    %3 = sbr.rel (0) target = $region5
  $region4: #{tile.53} parent=0 // pred_region
    _
  $region5: #{tile.53} parent=0 // pred_fallthru
    _
  %v4 = vld [vmem:[%s0] ss:$0 sm:$0xff]
  %5 = vst [vmem:[%s1] sm:$0xff] %v4

// kernel: tile.54
$region0: #{tile.54}
  %s0 = inlined_call_operand.vmem [shape: f32[8,8], index: 0, kind: input, shape index: {}]
  %s1 = inlined_call_operand.vmem [shape: f32[1,64], index: 1, kind: output, shape index: {}]
  $region1: #{tile.54} parent=0
    #allocation0 [shape = 'u8[4096]{0}', space=vmem, size = 0x1000, scoped, tag = 'scoped mem for output reshape']
    %v2 = vld [vmem:[%s0] sm:$0x1]
    %vm3 = vcmask 64512
    %4 = vst.msk [vmem:[#allocation0] sm:$0x1] %vm3, %v2
    %s5 = scalar_lea.vmem %s0, 7
    %v6 = vld [vmem:[%s5] sm:$0x1]
    %7 = vrot.lane.b32.xlu0 %v6, 56
    %v8 = vpop.permute.xlu0 %7
    %vm9 = vcmask 523712
    %10 = vst.msk [vmem:[#allocation0] sm:$0x1] %vm9, %v8
    %s11 = scalar_lea.vmem %s0, 6
    %v12 = vld [vmem:[%s11] sm:$0x1]
    %13 = vrot.lane.b32.xlu0 %v12, 48
    %v14 = vpop.permute.xlu0 %13
    %vm15 = vcmask 458112
    %16 = vst.msk [vmem:[#allocation0] sm:$0x1] %vm15, %v14
    %s17 = scalar_lea.vmem %s0, 5
    %v18 = vld [vmem:[%s17] sm:$0x1]
    %19 = vrot.lane.b32.xlu0 %v18, 40
    %v20 = vpop.permute.xlu0 %19
    %vm21 = vcmask 392512
    %22 = vst.msk [vmem:[#allocation0] sm:$0x1] %vm21, %v20
    %s23 = scalar_lea.vmem %s0, 4
    %v24 = vld [vmem:[%s23] sm:$0x1]
    %25 = vrot.lane.b32.xlu0 %v24, 32
    %v26 = vpop.permute.xlu0 %25
    %vm27 = vcmask 326912
    %28 = vst.msk [vmem:[#allocation0] sm:$0x1] %vm27, %v26
    %s29 = scalar_lea.vmem %s0, 3
    %v30 = vld [vmem:[%s29] sm:$0x1]
    %31 = vrot.lane.b32.xlu0 %v30, 24
    %v32 = vpop.permute.xlu0 %31
    %vm33 = vcmask 261312
    %34 = vst.msk [vmem:[#allocation0] sm:$0x1] %vm33, %v32
    %s35 = scalar_lea.vmem %s0, 2
    %v36 = vld [vmem:[%s35] sm:$0x1]
    %37 = vrot.lane.b32.xlu0 %v36, 16
    %v38 = vpop.permute.xlu0 %37
    %vm39 = vcmask 195712
    %40 = vst.msk [vmem:[#allocation0] sm:$0x1] %vm39, %v38
    %s41 = scalar_lea.vmem %s0, 1
    %v42 = vld [vmem:[%s41] sm:$0x1]
    %43 = vrot.lane.b32.xlu0 %v42, 8
    %v44 = vpop.permute.xlu0 %43
    %vm45 = vcmask 130112
    %46 = vst.msk [vmem:[#allocation0] sm:$0x1] %vm45, %v44
    %s48 = sshllo.u32 0, 1
    %v50 = vld [vmem:[#allocation0] sm:%s48]
    %s51 = sshllo.u32 0, 1
    %52 = vst [vmem:[%s1] sm:%s51] %v50

// kernel: tile.38
$region0: #{tile.38}
  #allocation0 [shape = 's32[1]{0}', space=sflag, size = 0x4, scoped, tag = 'scoped memory for tile.38']
  %s0 = inlined_call_operand.vmem [shape: f32[16], index: 0, kind: input, shape index: {}]
  %s1 = inlined_call_operand.vmem [shape: f32[4,16], index: 1, kind: output, shape index: {}]
  // Predicated region
  $region2: #{tile.38} parent=0 // pred_check
    _
  $region3: #{tile.38} parent=0 // pred_check_branch
    %3 = sbr.rel (0) target = $region5
  $region4: #{tile.38} parent=0 // pred_region
    _
  $region5: #{tile.38} parent=0 // pred_fallthru
    _
  %v4 = vld [vmem:[%s0] ss:$0 sm:$0xff]
  %5 = vst [vmem:[%s1] sm:$0xf] %v4

// kernel: tile.39
$region0: #{tile.39}
  %s0 = inlined_call_operand.vmem [shape: f32[4,16], index: 0, kind: input, shape index: {}]
  %s1 = inlined_call_operand.vmem [shape: f32[1,64], index: 1, kind: output, shape index: {}]
  $region1: #{tile.39} parent=0
    #allocation0 [shape = 'u8[4096]{0}', space=vmem, size = 0x1000, scoped, tag = 'scoped mem for output reshape']
    #allocation1 [shape = 'u8[4096]{0}', space=vmem, size = 0x1000, scoped, tag = 'scoped mem for input reshape']
    %s3 = sshllo.u32 0, 4
    %v4 = vld [vmem:[%s0] sm:%s3]
    %5 = vst [vmem:[#allocation1] sm:%s3] %v4
    %v6 = vld [vmem:[#allocation1] sm:$0x1]
    %vm7 = vcmask 130048
    %8 = vst.msk [vmem:[#allocation0] sm:$0x1] %vm7, %v6
    %s9 = scalar_lea.vmem [#allocation1], 3
    %v10 = vld [vmem:[%s9] sm:$0x1]
    %11 = vrot.lane.b32.xlu0 %v10, 48
    %v12 = vpop.permute.xlu0 %11
    %vm13 = vcmask 523648
    %14 = vst.msk [vmem:[#allocation0] sm:$0x1] %vm13, %v12
    %s15 = scalar_lea.vmem [#allocation1], 2
    %v16 = vld [vmem:[%s15] sm:$0x1]
    %17 = vrot.lane.b32.xlu0 %v16, 32
    %v18 = vpop.permute.xlu0 %17
    %vm19 = vcmask 392448
    %20 = vst.msk [vmem:[#allocation0] sm:$0x1] %vm19, %v18
    %s21 = scalar_lea.vmem [#allocation1], 1
    %v22 = vld [vmem:[%s21] sm:$0x1]
    %23 = vrot.lane.b32.xlu0 %v22, 16
    %v24 = vpop.permute.xlu0 %23
    %vm25 = vcmask 261248
    %26 = vst.msk [vmem:[#allocation0] sm:$0x1] %vm25, %v24
    %s28 = sshllo.u32 0, 1
    %v30 = vld [vmem:[#allocation0] sm:%s28]
    %s31 = sshllo.u32 0, 1
    %32 = vst [vmem:[%s1] sm:%s31] %v30

// kernel: tile.58
$region0: #{tile.58}
  #allocation0 [shape = 's32[1]{0}', space=sflag, size = 0x4, scoped, tag = 'scoped memory for tile.58']
  %s0 = inlined_call_operand.vmem [shape: f32[4], index: 0, kind: input, shape index: {}]
  %s1 = inlined_call_operand.vmem [shape: f32[16,4], index: 1, kind: output, shape index: {}]
  // Predicated region
  $region2: #{tile.58} parent=0 // pred_check
    _
  $region3: #{tile.58} parent=0 // pred_check_branch
    %3 = sbr.rel (0) target = $region5
  $region4: #{tile.58} parent=0 // pred_region
    _
  $region5: #{tile.58} parent=0 // pred_fallthru
    _
  %v4 = vld [vmem:[%s0] ss:$0 sm:$0xff]
  %5 = vst [vmem:[%s1] sm:$0xff] %v4
  %s6 = scalar_lea.vmem %s1, 8
  %7 = vst [vmem:[%s6] sm:$0xff] %v4

// kernel: tile.59
$region0: #{tile.59}
  %s0 = inlined_call_operand.vmem [shape: f32[16,4], index: 0, kind: input, shape index: {}]
  %s1 = inlined_call_operand.vmem [shape: f32[1,64], index: 1, kind: output, shape index: {}]
  $region1: #{tile.59} parent=0
    #allocation0 [shape = 'u8[4096]{0}', space=vmem, size = 0x1000, scoped, tag = 'scoped mem for output reshape']
    %v2 = vld [vmem:[%s0] sm:$0x1]
    %vm3 = vcmask 31744
    %4 = vst.msk [vmem:[#allocation0] sm:$0x1] %vm3, %v2
    %s5 = scalar_lea.vmem %s0, 15
    %v6 = vld [vmem:[%s5] sm:$0x1]
    %7 = vrot.lane.b32.xlu0 %v6, 60
    %v8 = vpop.permute.xlu0 %7
    %vm9 = vcmask 523744
    %10 = vst.msk [vmem:[#allocation0] sm:$0x1] %vm9, %v8
    %s11 = scalar_lea.vmem %s0, 14
    %v12 = vld [vmem:[%s11] sm:$0x1]
    %13 = vrot.lane.b32.xlu0 %v12, 56
    %v14 = vpop.permute.xlu0 %13
    %vm15 = vcmask 490944
    %16 = vst.msk [vmem:[#allocation0] sm:$0x1] %vm15, %v14
    %s17 = scalar_lea.vmem %s0, 13
    %v18 = vld [vmem:[%s17] sm:$0x1]
    %19 = vrot.lane.b32.xlu0 %v18, 52
    %v20 = vpop.permute.xlu0 %19
    %vm21 = vcmask 458144
    %22 = vst.msk [vmem:[#allocation0] sm:$0x1] %vm21, %v20
    %s23 = scalar_lea.vmem %s0, 12
    %v24 = vld [vmem:[%s23] sm:$0x1]
    %25 = vrot.lane.b32.xlu0 %v24, 48
    %v26 = vpop.permute.xlu0 %25
    %vm27 = vcmask 425344
    %28 = vst.msk [vmem:[#allocation0] sm:$0x1] %vm27, %v26
    %s29 = scalar_lea.vmem %s0, 11
    %v30 = vld [vmem:[%s29] sm:$0x1]
    %31 = vrot.lane.b32.xlu0 %v30, 44
    %v32 = vpop.permute.xlu0 %31
    %vm33 = vcmask 392544
    %34 = vst.msk [vmem:[#allocation0] sm:$0x1] %vm33, %v32
    %s35 = scalar_lea.vmem %s0, 10
    %v36 = vld [vmem:[%s35] sm:$0x1]
    %37 = vrot.lane.b32.xlu0 %v36, 40
    %v38 = vpop.permute.xlu0 %37
    %vm39 = vcmask 359744
    %40 = vst.msk [vmem:[#allocation0] sm:$0x1] %vm39, %v38
    %s41 = scalar_lea.vmem %s0, 9
    %v42 = vld [vmem:[%s41] sm:$0x1]
    %43 = vrot.lane.b32.xlu0 %v42, 36
    %v44 = vpop.permute.xlu0 %43
    %vm45 = vcmask 326944
    %46 = vst.msk [vmem:[#allocation0] sm:$0x1] %vm45, %v44
    %s47 = scalar_lea.vmem %s0, 8
    %v48 = vld [vmem:[%s47] sm:$0x1]
    %49 = vrot.lane.b32.xlu0 %v48, 32
    %v50 = vpop.permute.xlu0 %49
    %vm51 = vcmask 294144
    %52 = vst.msk [vmem:[#allocation0] sm:$0x1] %vm51, %v50
    %s53 = scalar_lea.vmem %s0, 7
    %v54 = vld [vmem:[%s53] sm:$0x1]
    %55 = vrot.lane.b32.xlu0 %v54, 28
    %v56 = vpop.permute.xlu0 %55
    %vm57 = vcmask 261344
    %58 = vst.msk [vmem:[#allocation0] sm:$0x1] %vm57, %v56
    %s59 = scalar_lea.vmem %s0, 6
    %v60 = vld [vmem:[%s59] sm:$0x1]
    %61 = vrot.lane.b32.xlu0 %v60, 24
    %v62 = vpop.permute.xlu0 %61
    %vm63 = vcmask 228544
    %64 = vst.msk [vmem:[#allocation0] sm:$0x1] %vm63, %v62
    %s65 = scalar_lea.vmem %s0, 5
    %v66 = vld [vmem:[%s65] sm:$0x1]
    %67 = vrot.lane.b32.xlu0 %v66, 20
    %v68 = vpop.permute.xlu0 %67
    %vm69 = vcmask 195744
    %70 = vst.msk [vmem:[#allocation0] sm:$0x1] %vm69, %v68
    %s71 = scalar_lea.vmem %s0, 4
    %v72 = vld [vmem:[%s71] sm:$0x1]
    %73 = vrot.lane.b32.xlu0 %v72, 16
    %v74 = vpop.permute.xlu0 %73
    %vm75 = vcmask 162944
    %76 = vst.msk [vmem:[#allocation0] sm:$0x1] %vm75, %v74
    %s77 = scalar_lea.vmem %s0, 3
    %v78 = vld [vmem:[%s77] sm:$0x1]
    %79 = vrot.lane.b32.xlu0 %v78, 12
    %v80 = vpop.permute.xlu0 %79
    %vm81 = vcmask 130144
    %82 = vst.msk [vmem:[#allocation0] sm:$0x1] %vm81, %v80
    %s83 = scalar_lea.vmem %s0, 2
    %v84 = vld [vmem:[%s83] sm:$0x1]
    %85 = vrot.lane.b32.xlu0 %v84, 8
    %v86 = vpop.permute.xlu0 %85
    %vm87 = vcmask 97344
    %88 = vst.msk [vmem:[#allocation0] sm:$0x1] %vm87, %v86
    %s89 = scalar_lea.vmem %s0, 1
    %v90 = vld [vmem:[%s89] sm:$0x1]
    %91 = vrot.lane.b32.xlu0 %v90, 4
    %v92 = vpop.permute.xlu0 %91
    %vm93 = vcmask 64544
    %94 = vst.msk [vmem:[#allocation0] sm:$0x1] %vm93, %v92
    %s96 = sshllo.u32 0, 1
    %v98 = vld [vmem:[#allocation0] sm:%s96]
    %s99 = sshllo.u32 0, 1
    %100 = vst [vmem:[%s1] sm:%s99] %v98

// kernel: tile.43
$region0: #{tile.43}
  #allocation0 [shape = 's32[1]{0}', space=sflag, size = 0x4, scoped, tag = 'scoped memory for tile.43']
  %s0 = inlined_call_operand.vmem [shape: f32[16], index: 0, kind: input, shape index: {}]
  %s1 = inlined_call_operand.vmem [shape: f32[2,16], index: 1, kind: output, shape index: {}]
  // Predicated region
  $region2: #{tile.43} parent=0 // pred_check
    _
  $region3: #{tile.43} parent=0 // pred_check_branch
    %3 = sbr.rel (0) target = $region5
  $region4: #{tile.43} parent=0 // pred_region
    _
  $region5: #{tile.43} parent=0 // pred_fallthru
    _
  %v4 = vld [vmem:[%s0] ss:$0 sm:$0xff]
  %5 = vst [vmem:[%s1] sm:$0x3] %v4

// kernel: tile.44
$region0: #{tile.44}
  %s0 = inlined_call_operand.vmem [shape: f32[2,16], index: 0, kind: input, shape index: {}]
  %s1 = inlined_call_operand.vmem [shape: f32[1,32], index: 1, kind: output, shape index: {}]
  $region1: #{tile.44} parent=0
    #allocation0 [shape = 'u8[4096]{0}', space=vmem, size = 0x1000, scoped, tag = 'scoped mem for output reshape']
    #allocation1 [shape = 'u8[4096]{0}', space=vmem, size = 0x1000, scoped, tag = 'scoped mem for input reshape']
    %s3 = sshllo.u32 0, 2
    %v4 = vld [vmem:[%s0] sm:%s3]
    %5 = vst [vmem:[#allocation1] sm:%s3] %v4
    %v6 = vld [vmem:[#allocation1] sm:$0x1]
    %vm7 = vcmask 130048
    %8 = vst.msk [vmem:[#allocation0] sm:$0x1] %vm7, %v6
    %s9 = scalar_lea.vmem [#allocation1], 1
    %v10 = vld [vmem:[%s9] sm:$0x1]
    %11 = vrot.lane.b32.xlu0 %v10, 16
    %v12 = vpop.permute.xlu0 %11
    %vm13 = vcmask 261248
    %14 = vst.msk [vmem:[#allocation0] sm:$0x1] %vm13, %v12
    %s16 = sshllo.u32 0, 1
    %v18 = vld [vmem:[#allocation0] sm:%s16]
    %s19 = sshllo.u32 0, 1
    %20 = vst [vmem:[%s1] sm:%s19] %v18

// kernel: generator_forward.1
$region0: #{generator_forward.1}
  #allocation0 [shape = 'u32[]', space=smem, size = 0x4, offset = 0x4, fixed_abs, tag = 'smem constant byte address 0x4 - core index']
  #allocation1 [shape = 'u32[144,128]{1,0:T(1,128)}', space=vmem, size = 0x12000, scoped, tag = 'internal scratch']
  %s0 = inlined_call_operand.vmem [shape: f32[32,64], index: 0, kind: input, shape index: {}]
  %s1 = inlined_call_operand.vmem [shape: bf16[4,16,32], index: 1, kind: input, shape index: {}]
  %s2 = inlined_call_operand.vmem [shape: bf16[256,64], index: 2, kind: input, shape index: {}]
  %s3 = inlined_call_operand.vmem [shape: f32[1,64], index: 3, kind: input, shape index: {}]
  %s4 = inlined_call_operand.vmem [shape: bf16[4,8,16], index: 4, kind: input, shape index: {}]
  %s5 = inlined_call_operand.vmem [shape: bf16[256,64], index: 5, kind: input, shape index: {}]
  %s6 = inlined_call_operand.vmem [shape: f32[1,64], index: 6, kind: input, shape index: {}]
  %s7 = inlined_call_operand.vmem [shape: bf16[4,4,8], index: 7, kind: input, shape index: {}]
  %s8 = inlined_call_operand.vmem [shape: bf16[256,32], index: 8, kind: input, shape index: {}]
  %s9 = inlined_call_operand.vmem [shape: f32[1,32], index: 9, kind: input, shape index: {}]
  %s10 = inlined_call_operand.vmem [shape: bf16[4,8,4], index: 10, kind: input, shape index: {}]
  %s11 = inlined_call_operand.vmem [shape: bf16[128,64], index: 11, kind: input, shape index: {}]
  %s12 = inlined_call_operand.vmem [shape: f32[1,64], index: 12, kind: input, shape index: {}]
  %s13 = inlined_call_operand.vmem [shape: bf16[4,16,8], index: 13, kind: input, shape index: {}]
  %s14 = inlined_call_operand.vmem [shape: bf16[512,64], index: 14, kind: input, shape index: {}]
  %s15 = inlined_call_operand.vmem [shape: f32[1,64], index: 15, kind: input, shape index: {}]
  %s16 = inlined_call_operand.vmem [shape: bf16[4,32,16], index: 16, kind: input, shape index: {}]
  %s17 = inlined_call_operand.vmem [shape: bf16[512,64], index: 17, kind: input, shape index: {}]
  %s18 = inlined_call_operand.vmem [shape: f32[1,64], index: 18, kind: input, shape index: {}]
  %s19 = inlined_call_operand.vmem [shape: f32[32,64], index: 19, kind: output, shape index: {}]
  %s20 = sld [smem:[#allocation0]]
  $region86: #{generator_forward.1} parent=0
    _
  %s22 = ssub.s32 1, %s20
  %s23 = scalar_select 0, %s22, %s20
  // Predicated region
  $region2: #{generator_forward.1} parent=0 // pred_check
    _
  $region3: #{generator_forward.1} parent=0 // pred_check_branch
    %25 = sbr.rel (0) target = $region5
  $region4: #{generator_forward.1} parent=0 // pred_region
    _
  $region5: #{generator_forward.1} parent=0 // pred_fallthru
    _
  // Predicated region
  $region6: #{generator_forward.1} parent=0 // pred_check
    _
  $region7: #{generator_forward.1} parent=0 // pred_check_branch
    %27 = sbr.rel (0) target = $region9
  $region8: #{generator_forward.1} parent=0 // pred_region
    _
  $region9: #{generator_forward.1} parent=0 // pred_fallthru
    _
  // Predicated region
  $region10: #{generator_forward.1} parent=0 // pred_check
    _
  $region11: #{generator_forward.1} parent=0 // pred_check_branch
    %29 = sbr.rel (0) target = $region13
  $region12: #{generator_forward.1} parent=0 // pred_region
    _
  $region13: #{generator_forward.1} parent=0 // pred_fallthru
    _
  // Predicated region
  $region14: #{generator_forward.1} parent=0 // pred_check
    _
  $region15: #{generator_forward.1} parent=0 // pred_check_branch
    %31 = sbr.rel (0) target = $region17
  $region16: #{generator_forward.1} parent=0 // pred_region
    _
  $region17: #{generator_forward.1} parent=0 // pred_fallthru
    _
  // Predicated region
  $region18: #{generator_forward.1} parent=0 // pred_check
    _
  $region19: #{generator_forward.1} parent=0 // pred_check_branch
    %33 = sbr.rel (0) target = $region21
  $region20: #{generator_forward.1} parent=0 // pred_region
    _
  $region21: #{generator_forward.1} parent=0 // pred_fallthru
    _
  // Predicated region
  $region22: #{generator_forward.1} parent=0 // pred_check
    _
  $region23: #{generator_forward.1} parent=0 // pred_check_branch
    %35 = sbr.rel (0) target = $region25
  $region24: #{generator_forward.1} parent=0 // pred_region
    _
  $region25: #{generator_forward.1} parent=0 // pred_fallthru
    _
  // Predicated region
  $region26: #{generator_forward.1} parent=0 // pred_check
    _
  $region27: #{generator_forward.1} parent=0 // pred_check_branch
    %37 = sbr.rel (0) target = $region29
  $region28: #{generator_forward.1} parent=0 // pred_region
    _
  $region29: #{generator_forward.1} parent=0 // pred_fallthru
    _
  // Predicated region
  $region30: #{generator_forward.1} parent=0 // pred_check
    _
  $region31: #{generator_forward.1} parent=0 // pred_check_branch
    %39 = sbr.rel (0) target = $region33
  $region32: #{generator_forward.1} parent=0 // pred_region
    _
  $region33: #{generator_forward.1} parent=0 // pred_fallthru
    _
  // Predicated region
  $region34: #{generator_forward.1} parent=0 // pred_check
    _
  $region35: #{generator_forward.1} parent=0 // pred_check_branch
    %41 = sbr.rel (0) target = $region37
  $region36: #{generator_forward.1} parent=0 // pred_region
    _
  $region37: #{generator_forward.1} parent=0 // pred_fallthru
    _
  // Predicated region
  $region38: #{generator_forward.1} parent=0 // pred_check
    _
  $region39: #{generator_forward.1} parent=0 // pred_check_branch
    %43 = sbr.rel (0) target = $region41
  $region40: #{generator_forward.1} parent=0 // pred_region
    _
  $region41: #{generator_forward.1} parent=0 // pred_fallthru
    _
  // Predicated region
  $region42: #{generator_forward.1} parent=0 // pred_check
    _
  $region43: #{generator_forward.1} parent=0 // pred_check_branch
    %45 = sbr.rel (0) target = $region45
  $region44: #{generator_forward.1} parent=0 // pred_region
    _
  $region45: #{generator_forward.1} parent=0 // pred_fallthru
    _
  // Predicated region
  $region46: #{generator_forward.1} parent=0 // pred_check
    _
  $region47: #{generator_forward.1} parent=0 // pred_check_branch
    %47 = sbr.rel (0) target = $region49
  $region48: #{generator_forward.1} parent=0 // pred_region
    _
  $region49: #{generator_forward.1} parent=0 // pred_fallthru
    _
  // Predicated region
  $region50: #{generator_forward.1} parent=0 // pred_check
    _
  $region51: #{generator_forward.1} parent=0 // pred_check_branch
    %49 = sbr.rel (0) target = $region53
  $region52: #{generator_forward.1} parent=0 // pred_region
    _
  $region53: #{generator_forward.1} parent=0 // pred_fallthru
    _
  // Predicated region
  $region54: #{generator_forward.1} parent=0 // pred_check
    _
  $region55: #{generator_forward.1} parent=0 // pred_check_branch
    %51 = sbr.rel (0) target = $region57
  $region56: #{generator_forward.1} parent=0 // pred_region
    _
  $region57: #{generator_forward.1} parent=0 // pred_fallthru
    _
  // Predicated region
  $region58: #{generator_forward.1} parent=0 // pred_check
    _
  $region59: #{generator_forward.1} parent=0 // pred_check_branch
    %53 = sbr.rel (0) target = $region61
  $region60: #{generator_forward.1} parent=0 // pred_region
    _
  $region61: #{generator_forward.1} parent=0 // pred_fallthru
    _
  // Predicated region
  $region62: #{generator_forward.1} parent=0 // pred_check
    _
  $region63: #{generator_forward.1} parent=0 // pred_check_branch
    %55 = sbr.rel (0) target = $region65
  $region64: #{generator_forward.1} parent=0 // pred_region
    _
  $region65: #{generator_forward.1} parent=0 // pred_fallthru
    _
  // Predicated region
  $region66: #{generator_forward.1} parent=0 // pred_check
    _
  $region67: #{generator_forward.1} parent=0 // pred_check_branch
    %57 = sbr.rel (0) target = $region69
  $region68: #{generator_forward.1} parent=0 // pred_region
    _
  $region69: #{generator_forward.1} parent=0 // pred_fallthru
    _
  // Predicated region
  $region70: #{generator_forward.1} parent=0 // pred_check
    _
  $region71: #{generator_forward.1} parent=0 // pred_check_branch
    %59 = sbr.rel (0) target = $region73
  $region72: #{generator_forward.1} parent=0 // pred_region
    _
  $region73: #{generator_forward.1} parent=0 // pred_fallthru
    _
  // Predicated region
  $region74: #{generator_forward.1} parent=0 // pred_check
    _
  $region75: #{generator_forward.1} parent=0 // pred_check_branch
    %61 = sbr.rel (0) target = $region77
  $region76: #{generator_forward.1} parent=0 // pred_region
    _
  $region77: #{generator_forward.1} parent=0 // pred_fallthru
    _
  %v63 = vld [vmem:[%s0] sm:$0xff]
  %v64 = vld [vmem:[%s0 + $0x8] sm:$0xff]
  %v65 = vld [vmem:[%s0 + $0x10] sm:$0xff]
  %v66 = vld [vmem:[%s0 + $0x18] sm:$0xff]
  %v67 = vpack.c.bf16 %v64, %v63
  %v68 = vpack.c.bf16 %v66, %v65
  %v69 = vld [vmem:[%s1] sm:$0xf]
  %v70 = vld [vmem:[%s1 + $0x4] sm:$0xf]
  %v73 = vunpack.c.l.b16 %v69
  %v74 = vunpack.c.l.b16 %v70
  %v75 = vpack.c.b16 %v74, %v73
  %vm76 = vcmask 261120
  %v78 = vsel %vm76, %v75, 0
  %80 = vmatprep.subr.bf16.mxu0 0
  %81 = vmatpush1.bf16.msra.mxu0 %v67
  %82 = vmatprep.subr.bf16.mxu0 0
  %83 = vmatpush1.bf16.msra.mxu0 %v68
  %84 = vmatprep.subr.bf16.mxu0 0
  %85 = vmatpush1.bf16.msra.mxu0 0
  %86 = vmatprep.subr.bf16.mxu0 0
  %87 = vmatpush1.bf16.msra.mxu0 0
  %88 = vmatprep.subr.bf16.mxu0 0
  %89 = vmatpush1.bf16.msra.mxu0 0
  %90 = vmatprep.subr.bf16.mxu0 0
  %91 = vmatpush1.bf16.msra.mxu0 0
  %92 = vmatprep.subr.bf16.mxu0 0
  %93 = vmatpush1.bf16.msra.mxu0 0
  %94 = vmatprep.subr.bf16.mxu0 0
  %95 = vmatpush1.bf16.msra.mxu0 0
  %96 = vmatprep.subr.bf16.mxu0 0
  %97 = vmatpush1.bf16.msra.mxu0 0
  %98 = vmatprep.subr.bf16.mxu0 0
  %99 = vmatpush1.bf16.msra.mxu0 0
  %100 = vmatprep.subr.bf16.mxu0 0
  %101 = vmatpush1.bf16.msra.mxu0 0
  %102 = vmatprep.subr.bf16.mxu0 0
  %103 = vmatpush1.bf16.msra.mxu0 0
  %104 = vmatprep.subr.bf16.mxu0 0
  %105 = vmatpush1.bf16.msra.mxu0 0
  %106 = vmatprep.subr.bf16.mxu0 0
  %107 = vmatpush1.bf16.msra.mxu0 0
  %108 = vmatprep.subr.bf16.mxu0 0
  %109 = vmatpush1.bf16.msra.mxu0 0
  %110 = vmatprep.subr.bf16.mxu0 0
  %111 = vmatpush1.bf16.msra.mxu0 0
  %112 = vmatprep.mubr.bf16.mxu0 0
  %113 = vmatmul.mubr.bf16.gmra.mrb[0].mxu0 %v78
  %v114 = vpop.f32.mrb[0].mxu0
  %v115 = vadd.f32 0.0, %v114
  %v116 = vpop.f32.mrb[0].mxu0
  %v117 = vpop.f32.mrb[0].mxu0
  %v118 = vadd.f32 0.0, %v117
  %v119 = vpop.f32.mrb[0].mxu0
  %120 = vdwg.mxu0
  %v121 = vpack.c.bf16 %v118, %v115
  %s122 = scalar_lea.vmem %s1, 8
  %v123 = vld [vmem:[%s122] sm:$0xf]
  %v124 = vld [vmem:[%s122 + $0x4] sm:$0xf]
  %v127 = vunpack.c.l.b16 %v123
  %v128 = vunpack.c.l.b16 %v124
  %v129 = vpack.c.b16 %v128, %v127
  %v131 = vsel %vm76, %v129, 0
  %133 = vmatprep.subr.bf16.mxu0 0
  %134 = vmatpush1.bf16.msra.mxu0 %v67
  %135 = vmatprep.subr.bf16.mxu0 0
  %136 = vmatpush1.bf16.msra.mxu0 %v68
  %137 = vmatprep.subr.bf16.mxu0 0
  %138 = vmatpush1.bf16.msra.mxu0 0
  %139 = vmatprep.subr.bf16.mxu0 0
  %140 = vmatpush1.bf16.msra.mxu0 0
  %141 = vmatprep.subr.bf16.mxu0 0
  %142 = vmatpush1.bf16.msra.mxu0 0
  %143 = vmatprep.subr.bf16.mxu0 0
  %144 = vmatpush1.bf16.msra.mxu0 0
  %145 = vmatprep.subr.bf16.mxu0 0
  %146 = vmatpush1.bf16.msra.mxu0 0
  %147 = vmatprep.subr.bf16.mxu0 0
  %148 = vmatpush1.bf16.msra.mxu0 0
  %149 = vmatprep.subr.bf16.mxu0 0
  %150 = vmatpush1.bf16.msra.mxu0 0
  %151 = vmatprep.subr.bf16.mxu0 0
  %152 = vmatpush1.bf16.msra.mxu0 0
  %153 = vmatprep.subr.bf16.mxu0 0
  %154 = vmatpush1.bf16.msra.mxu0 0
  %155 = vmatprep.subr.bf16.mxu0 0
  %156 = vmatpush1.bf16.msra.mxu0 0
  %157 = vmatprep.subr.bf16.mxu0 0
  %158 = vmatpush1.bf16.msra.mxu0 0
  %159 = vmatprep.subr.bf16.mxu0 0
  %160 = vmatpush1.bf16.msra.mxu0 0
  %161 = vmatprep.subr.bf16.mxu0 0
  %162 = vmatpush1.bf16.msra.mxu0 0
  %163 = vmatprep.subr.bf16.mxu0 0
  %164 = vmatpush1.bf16.msra.mxu0 0
  %165 = vmatprep.mubr.bf16.mxu0 0
  %166 = vmatmul.mubr.bf16.gmra.mrb[0].mxu0 %v131
  %v167 = vpop.f32.mrb[0].mxu0
  %v168 = vadd.f32 0.0, %v167
  %v169 = vpop.f32.mrb[0].mxu0
  %v170 = vpop.f32.mrb[0].mxu0
  %v171 = vadd.f32 0.0, %v170
  %v172 = vpop.f32.mrb[0].mxu0
  %173 = vdwg.mxu0
  %v174 = vpack.c.bf16 %v171, %v168
  %s175 = scalar_lea.vmem %s1, 16
  %v176 = vld [vmem:[%s175] sm:$0xf]
  %v177 = vld [vmem:[%s175 + $0x4] sm:$0xf]
  %v180 = vunpack.c.l.b16 %v176
  %v181 = vunpack.c.l.b16 %v177
  %v182 = vpack.c.b16 %v181, %v180
  %v184 = vsel %vm76, %v182, 0
  %186 = vmatprep.subr.bf16.mxu0 0
  %187 = vmatpush1.bf16.msra.mxu0 %v67
  %188 = vmatprep.subr.bf16.mxu0 0
  %189 = vmatpush1.bf16.msra.mxu0 %v68
  %190 = vmatprep.subr.bf16.mxu0 0
  %191 = vmatpush1.bf16.msra.mxu0 0
  %192 = vmatprep.subr.bf16.mxu0 0
  %193 = vmatpush1.bf16.msra.mxu0 0
  %194 = vmatprep.subr.bf16.mxu0 0
  %195 = vmatpush1.bf16.msra.mxu0 0
  %196 = vmatprep.subr.bf16.mxu0 0
  %197 = vmatpush1.bf16.msra.mxu0 0
  %198 = vmatprep.subr.bf16.mxu0 0
  %199 = vmatpush1.bf16.msra.mxu0 0
  %200 = vmatprep.subr.bf16.mxu0 0
  %201 = vmatpush1.bf16.msra.mxu0 0
  %202 = vmatprep.subr.bf16.mxu0 0
  %203 = vmatpush1.bf16.msra.mxu0 0
  %204 = vmatprep.subr.bf16.mxu0 0
  %205 = vmatpush1.bf16.msra.mxu0 0
  %206 = vmatprep.subr.bf16.mxu0 0
  %207 = vmatpush1.bf16.msra.mxu0 0
  %208 = vmatprep.subr.bf16.mxu0 0
  %209 = vmatpush1.bf16.msra.mxu0 0
  %210 = vmatprep.subr.bf16.mxu0 0
  %211 = vmatpush1.bf16.msra.mxu0 0
  %212 = vmatprep.subr.bf16.mxu0 0
  %213 = vmatpush1.bf16.msra.mxu0 0
  %214 = vmatprep.subr.bf16.mxu0 0
  %215 = vmatpush1.bf16.msra.mxu0 0
  %216 = vmatprep.subr.bf16.mxu0 0
  %217 = vmatpush1.bf16.msra.mxu0 0
  %218 = vmatprep.mubr.bf16.mxu0 0
  %219 = vmatmul.mubr.bf16.gmra.mrb[0].mxu0 %v184
  %v220 = vpop.f32.mrb[0].mxu0
  %v221 = vadd.f32 0.0, %v220
  %v222 = vpop.f32.mrb[0].mxu0
  %v223 = vpop.f32.mrb[0].mxu0
  %v224 = vadd.f32 0.0, %v223
  %v225 = vpop.f32.mrb[0].mxu0
  %226 = vdwg.mxu0
  %v227 = vpack.c.bf16 %v224, %v221
  %s228 = scalar_lea.vmem %s1, 24
  %v229 = vld [vmem:[%s228] sm:$0xf]
  %v230 = vld [vmem:[%s228 + $0x4] sm:$0xf]
  %v233 = vunpack.c.l.b16 %v229
  %v234 = vunpack.c.l.b16 %v230
  %v235 = vpack.c.b16 %v234, %v233
  %v237 = vsel %vm76, %v235, 0
  %239 = vmatprep.subr.bf16.mxu0 0
  %240 = vmatpush1.bf16.msra.mxu0 %v67
  %241 = vmatprep.subr.bf16.mxu0 0
  %242 = vmatpush1.bf16.msra.mxu0 %v68
  %243 = vmatprep.subr.bf16.mxu0 0
  %244 = vmatpush1.bf16.msra.mxu0 0
  %245 = vmatprep.subr.bf16.mxu0 0
  %246 = vmatpush1.bf16.msra.mxu0 0
  %247 = vmatprep.subr.bf16.mxu0 0
  %248 = vmatpush1.bf16.msra.mxu0 0
  %249 = vmatprep.subr.bf16.mxu0 0
  %250 = vmatpush1.bf16.msra.mxu0 0
  %251 = vmatprep.subr.bf16.mxu0 0
  %252 = vmatpush1.bf16.msra.mxu0 0
  %253 = vmatprep.subr.bf16.mxu0 0
  %254 = vmatpush1.bf16.msra.mxu0 0
  %255 = vmatprep.subr.bf16.mxu0 0
  %256 = vmatpush1.bf16.msra.mxu0 0
  %257 = vmatprep.subr.bf16.mxu0 0
  %258 = vmatpush1.bf16.msra.mxu0 0
  %259 = vmatprep.subr.bf16.mxu0 0
  %260 = vmatpush1.bf16.msra.mxu0 0
  %261 = vmatprep.subr.bf16.mxu0 0
  %262 = vmatpush1.bf16.msra.mxu0 0
  %263 = vmatprep.subr.bf16.mxu0 0
  %264 = vmatpush1.bf16.msra.mxu0 0
  %265 = vmatprep.subr.bf16.mxu0 0
  %266 = vmatpush1.bf16.msra.mxu0 0
  %267 = vmatprep.subr.bf16.mxu0 0
  %268 = vmatpush1.bf16.msra.mxu0 0
  %269 = vmatprep.subr.bf16.mxu0 0
  %270 = vmatpush1.bf16.msra.mxu0 0
  %271 = vmatprep.mubr.bf16.mxu0 0
  %272 = vmatmul.mubr.bf16.gmra.mrb[0].mxu0 %v237
  %v273 = vpop.f32.mrb[0].mxu0
  %v274 = vadd.f32 0.0, %v273
  %v275 = vpop.f32.mrb[0].mxu0
  %v276 = vpop.f32.mrb[0].mxu0
  %v277 = vadd.f32 0.0, %v276
  %v278 = vpop.f32.mrb[0].mxu0
  %279 = vdwg.mxu0
  %v280 = vpack.c.bf16 %v277, %v274
  %282 = vrot.lane.b32.xlu0 %v174, 64
  %v283 = vpop.permute.xlu0 %282
  %285 = vrot.lane.b32.xlu0 %v280, 64
  %v286 = vpop.permute.xlu0 %285
  %vm287 = vcmask 523264
  %v290 = vsel %vm287, %v121, %v283
  %v294 = vsel %vm287, %v227, %v286
  %v296 = vld [vmem:[%s2] sm:$0xf]
  %v297 = vld [vmem:[%s2 + $0x4] sm:$0xf]
  %v298 = vld [vmem:[%s2 + $0x8] sm:$0xf]
  %v299 = vld [vmem:[%s2 + $0xc] sm:$0xf]
  %v300 = vld [vmem:[%s2 + $0x10] sm:$0xf]
  %v301 = vld [vmem:[%s2 + $0x14] sm:$0xf]
  %v302 = vld [vmem:[%s2 + $0x18] sm:$0xf]
  %v303 = vld [vmem:[%s2 + $0x1c] sm:$0xf]
  %v304 = vld [vmem:[%s2 + $0x20] sm:$0xf]
  %v305 = vld [vmem:[%s2 + $0x24] sm:$0xf]
  %v306 = vld [vmem:[%s2 + $0x28] sm:$0xf]
  %v307 = vld [vmem:[%s2 + $0x2c] sm:$0xf]
  %v308 = vld [vmem:[%s2 + $0x30] sm:$0xf]
  %v309 = vld [vmem:[%s2 + $0x34] sm:$0xf]
  %v310 = vld [vmem:[%s2 + $0x38] sm:$0xf]
  %v311 = vld [vmem:[%s2 + $0x3c] sm:$0xf]
  %v312 = vld [vmem:[%s2 + $0x40] sm:$0xf]
  %v313 = vld [vmem:[%s2 + $0x44] sm:$0xf]
  %v314 = vld [vmem:[%s2 + $0x48] sm:$0xf]
  %v315 = vld [vmem:[%s2 + $0x4c] sm:$0xf]
  %v316 = vld [vmem:[%s2 + $0x50] sm:$0xf]
  %v317 = vld [vmem:[%s2 + $0x54] sm:$0xf]
  %v318 = vld [vmem:[%s2 + $0x58] sm:$0xf]
  %v319 = vld [vmem:[%s2 + $0x5c] sm:$0xf]
  %v320 = vld [vmem:[%s2 + $0x60] sm:$0xf]
  %v321 = vld [vmem:[%s2 + $0x64] sm:$0xf]
  %v322 = vld [vmem:[%s2 + $0x68] sm:$0xf]
  %v323 = vld [vmem:[%s2 + $0x6c] sm:$0xf]
  %v324 = vld [vmem:[%s2 + $0x70] sm:$0xf]
  %v325 = vld [vmem:[%s2 + $0x74] sm:$0xf]
  %v326 = vld [vmem:[%s2 + $0x78] sm:$0xf]
  %v327 = vld [vmem:[%s2 + $0x7c] sm:$0xf]
  %v328 = vld [vmem:[%s3] sm:$0x1]
  %v330 = vlaneseq
  %v331 = vshrl.u32 %v330, 7
  %v332 = vsub.s32 0, %v331
  %v333 = vrot.slane %v328, %v332
  %v367 = vunpack.c.l.b16 %v296
  %v368 = vunpack.c.l.b16 %v297
  %v369 = vunpack.c.l.b16 %v298
  %v370 = vunpack.c.l.b16 %v299
  %v371 = vunpack.c.l.b16 %v300
  %v372 = vunpack.c.l.b16 %v301
  %v373 = vunpack.c.l.b16 %v302
  %v374 = vunpack.c.l.b16 %v303
  %v375 = vunpack.c.l.b16 %v304
  %v376 = vunpack.c.l.b16 %v305
  %v377 = vunpack.c.l.b16 %v306
  %v378 = vunpack.c.l.b16 %v307
  %v379 = vunpack.c.l.b16 %v308
  %v380 = vunpack.c.l.b16 %v309
  %v381 = vunpack.c.l.b16 %v310
  %v382 = vunpack.c.l.b16 %v311
  %v383 = vunpack.c.l.b16 %v312
  %v384 = vunpack.c.l.b16 %v313
  %v385 = vunpack.c.l.b16 %v314
  %v386 = vunpack.c.l.b16 %v315
  %v387 = vunpack.c.l.b16 %v316
  %v388 = vunpack.c.l.b16 %v317
  %v389 = vunpack.c.l.b16 %v318
  %v390 = vunpack.c.l.b16 %v319
  %v391 = vunpack.c.l.b16 %v320
  %v392 = vunpack.c.l.b16 %v321
  %v393 = vunpack.c.l.b16 %v322
  %v394 = vunpack.c.l.b16 %v323
  %v395 = vunpack.c.l.b16 %v324
  %v396 = vunpack.c.l.b16 %v325
  %v397 = vunpack.c.l.b16 %v326
  %v398 = vunpack.c.l.b16 %v327
  %v399 = vpack.c.b16 %v368, %v367
  %v400 = vpack.c.b16 %v370, %v369
  %v401 = vpack.c.b16 %v372, %v371
  %v402 = vpack.c.b16 %v374, %v373
  %v403 = vpack.c.b16 %v376, %v375
  %v404 = vpack.c.b16 %v378, %v377
  %v405 = vpack.c.b16 %v380, %v379
  %v406 = vpack.c.b16 %v382, %v381
  %v407 = vpack.c.b16 %v384, %v383
  %v408 = vpack.c.b16 %v386, %v385
  %v409 = vpack.c.b16 %v388, %v387
  %v410 = vpack.c.b16 %v390, %v389
  %v411 = vpack.c.b16 %v392, %v391
  %v412 = vpack.c.b16 %v394, %v393
  %v413 = vpack.c.b16 %v396, %v395
  %v414 = vpack.c.b16 %v398, %v397
  %431 = vmatprep.subr.bf16.mxu0 0
  %432 = vmatpush1.bf16.msra.mxu0 %v399
  %433 = vmatprep.subr.bf16.mxu0 0
  %434 = vmatpush1.bf16.msra.mxu0 %v400
  %435 = vmatprep.subr.bf16.mxu0 0
  %436 = vmatpush1.bf16.msra.mxu0 %v401
  %437 = vmatprep.subr.bf16.mxu0 0
  %438 = vmatpush1.bf16.msra.mxu0 %v402
  %439 = vmatprep.subr.bf16.mxu0 0
  %440 = vmatpush1.bf16.msra.mxu0 %v403
  %441 = vmatprep.subr.bf16.mxu0 0
  %442 = vmatpush1.bf16.msra.mxu0 %v404
  %443 = vmatprep.subr.bf16.mxu0 0
  %444 = vmatpush1.bf16.msra.mxu0 %v405
  %445 = vmatprep.subr.bf16.mxu0 0
  %446 = vmatpush1.bf16.msra.mxu0 %v406
  %447 = vmatprep.subr.bf16.mxu0 0
  %448 = vmatpush1.bf16.msra.mxu0 %v407
  %449 = vmatprep.subr.bf16.mxu0 0
  %450 = vmatpush1.bf16.msra.mxu0 %v408
  %451 = vmatprep.subr.bf16.mxu0 0
  %452 = vmatpush1.bf16.msra.mxu0 %v409
  %453 = vmatprep.subr.bf16.mxu0 0
  %454 = vmatpush1.bf16.msra.mxu0 %v410
  %455 = vmatprep.subr.bf16.mxu0 0
  %456 = vmatpush1.bf16.msra.mxu0 %v411
  %457 = vmatprep.subr.bf16.mxu0 0
  %458 = vmatpush1.bf16.msra.mxu0 %v412
  %459 = vmatprep.subr.bf16.mxu0 0
  %460 = vmatpush1.bf16.msra.mxu0 %v413
  %461 = vmatprep.subr.bf16.mxu0 0
  %462 = vmatpush1.bf16.msra.mxu0 %v414
  %463 = vmatprep.mubr.bf16.mxu0 %v294
  %464 = vmatmul.mubr.bf16.gmra.mrb[0].mxu0 %v290
  %v465 = vpop.f32.mrb[0].mxu0
  %v466 = vadd.f32 %v333, %v465
  %v467 = vpop.f32.mrb[0].mxu0
  %v468 = vpop.f32.mrb[0].mxu0
  %v469 = vadd.f32 %v333, %v468
  %v470 = vpop.f32.mrb[0].mxu0
  %471 = vdwg.mxu0
  %vm472 = vcmp.ge.f32.partialorder %v466, 0.0
  %vm473 = vcmp.ge.f32.partialorder %v469, 0.0
  %v474 = vmul.f32 %v466, 0.2
  %v475 = vmul.f32 %v469, 0.2
  %v476 = vsel %vm472, %v466, %v474
  %v477 = vsel %vm473, %v469, %v475
  %v478 = vpack.c.bf16 %v477, %v476
  %v479 = vld [vmem:[%s4] sm:$0xf]
  %vm480 = vcmask 130048
  %v482 = vsel %vm480, %v479, 0
  %484 = vmatprep.subr.bf16.mxu0 0
  %485 = vmatpush1.bf16.msra.mxu0 %v478
  %486 = vmatprep.subr.bf16.mxu0 0
  %487 = vmatpush1.bf16.msra.mxu0 0
  %488 = vmatprep.subr.bf16.mxu0 0
  %489 = vmatpush1.bf16.msra.mxu0 0
  %490 = vmatprep.subr.bf16.mxu0 0
  %491 = vmatpush1.bf16.msra.mxu0 0
  %492 = vmatprep.subr.bf16.mxu0 0
  %493 = vmatpush1.bf16.msra.mxu0 0
  %494 = vmatprep.subr.bf16.mxu0 0
  %495 = vmatpush1.bf16.msra.mxu0 0
  %496 = vmatprep.subr.bf16.mxu0 0
  %497 = vmatpush1.bf16.msra.mxu0 0
  %498 = vmatprep.subr.bf16.mxu0 0
  %499 = vmatpush1.bf16.msra.mxu0 0
  %500 = vmatprep.subr.bf16.mxu0 0
  %501 = vmatpush1.bf16.msra.mxu0 0
  %502 = vmatprep.subr.bf16.mxu0 0
  %503 = vmatpush1.bf16.msra.mxu0 0
  %504 = vmatprep.subr.bf16.mxu0 0
  %505 = vmatpush1.bf16.msra.mxu0 0
  %506 = vmatprep.subr.bf16.mxu0 0
  %507 = vmatpush1.bf16.msra.mxu0 0
  %508 = vmatprep.subr.bf16.mxu0 0
  %509 = vmatpush1.bf16.msra.mxu0 0
  %510 = vmatprep.subr.bf16.mxu0 0
  %511 = vmatpush1.bf16.msra.mxu0 0
  %512 = vmatprep.subr.bf16.mxu0 0
  %513 = vmatpush1.bf16.msra.mxu0 0
  %514 = vmatprep.subr.bf16.mxu0 0
  %515 = vmatpush1.bf16.msra.mxu0 0
  %516 = vmatprep.mubr.bf16.mxu0 0
  %517 = vmatmul.mubr.bf16.gmra.mrb[0].mxu0 %v482
  %v518 = vpop.f32.mrb[0].mxu0
  %v519 = vadd.f32 0.0, %v518
  %v520 = vpop.f32.mrb[0].mxu0
  %v521 = vpop.f32.mrb[0].mxu0
  %v522 = vpop.f32.mrb[0].mxu0
  %523 = vdwg.mxu0
  %v524 = vpack.c.bf16 %v519, %v519
  %s525 = scalar_lea.vmem %s4, 4
  %v526 = vld [vmem:[%s525] sm:$0xf]
  %v528 = vsel %vm480, %v526, 0
  %530 = vmatprep.subr.bf16.mxu0 0
  %531 = vmatpush1.bf16.msra.mxu0 %v478
  %532 = vmatprep.subr.bf16.mxu0 0
  %533 = vmatpush1.bf16.msra.mxu0 0
  %534 = vmatprep.subr.bf16.mxu0 0
  %535 = vmatpush1.bf16.msra.mxu0 0
  %536 = vmatprep.subr.bf16.mxu0 0
  %537 = vmatpush1.bf16.msra.mxu0 0
  %538 = vmatprep.subr.bf16.mxu0 0
  %539 = vmatpush1.bf16.msra.mxu0 0
  %540 = vmatprep.subr.bf16.mxu0 0
  %541 = vmatpush1.bf16.msra.mxu0 0
  %542 = vmatprep.subr.bf16.mxu0 0
  %543 = vmatpush1.bf16.msra.mxu0 0
  %544 = vmatprep.subr.bf16.mxu0 0
  %545 = vmatpush1.bf16.msra.mxu0 0
  %546 = vmatprep.subr.bf16.mxu0 0
  %547 = vmatpush1.bf16.msra.mxu0 0
  %548 = vmatprep.subr.bf16.mxu0 0
  %549 = vmatpush1.bf16.msra.mxu0 0
  %550 = vmatprep.subr.bf16.mxu0 0
  %551 = vmatpush1.bf16.msra.mxu0 0
  %552 = vmatprep.subr.bf16.mxu0 0
  %553 = vmatpush1.bf16.msra.mxu0 0
  %554 = vmatprep.subr.bf16.mxu0 0
  %555 = vmatpush1.bf16.msra.mxu0 0
  %556 = vmatprep.subr.bf16.mxu0 0
  %557 = vmatpush1.bf16.msra.mxu0 0
  %558 = vmatprep.subr.bf16.mxu0 0
  %559 = vmatpush1.bf16.msra.mxu0 0
  %560 = vmatprep.subr.bf16.mxu0 0
  %561 = vmatpush1.bf16.msra.mxu0 0
  %562 = vmatprep.mubr.bf16.mxu0 0
  %563 = vmatmul.mubr.bf16.gmra.mrb[0].mxu0 %v528
  %v564 = vpop.f32.mrb[0].mxu0
  %v565 = vadd.f32 0.0, %v564
  %v566 = vpop.f32.mrb[0].mxu0
  %v567 = vpop.f32.mrb[0].mxu0
  %v568 = vpop.f32.mrb[0].mxu0
  %569 = vdwg.mxu0
  %v570 = vpack.c.bf16 %v565, %v565
  %s571 = scalar_lea.vmem %s4, 8
  %v572 = vld [vmem:[%s571] sm:$0xf]
  %v574 = vsel %vm480, %v572, 0
  %576 = vmatprep.subr.bf16.mxu0 0
  %577 = vmatpush1.bf16.msra.mxu0 %v478
  %578 = vmatprep.subr.bf16.mxu0 0
  %579 = vmatpush1.bf16.msra.mxu0 0
  %580 = vmatprep.subr.bf16.mxu0 0
  %581 = vmatpush1.bf16.msra.mxu0 0
  %582 = vmatprep.subr.bf16.mxu0 0
  %583 = vmatpush1.bf16.msra.mxu0 0
  %584 = vmatprep.subr.bf16.mxu0 0
  %585 = vmatpush1.bf16.msra.mxu0 0
  %586 = vmatprep.subr.bf16.mxu0 0
  %587 = vmatpush1.bf16.msra.mxu0 0
  %588 = vmatprep.subr.bf16.mxu0 0
  %589 = vmatpush1.bf16.msra.mxu0 0
  %590 = vmatprep.subr.bf16.mxu0 0
  %591 = vmatpush1.bf16.msra.mxu0 0
  %592 = vmatprep.subr.bf16.mxu0 0
  %593 = vmatpush1.bf16.msra.mxu0 0
  %594 = vmatprep.subr.bf16.mxu0 0
  %595 = vmatpush1.bf16.msra.mxu0 0
  %596 = vmatprep.subr.bf16.mxu0 0
  %597 = vmatpush1.bf16.msra.mxu0 0
  %598 = vmatprep.subr.bf16.mxu0 0
  %599 = vmatpush1.bf16.msra.mxu0 0
  %600 = vmatprep.subr.bf16.mxu0 0
  %601 = vmatpush1.bf16.msra.mxu0 0
  %602 = vmatprep.subr.bf16.mxu0 0
  %603 = vmatpush1.bf16.msra.mxu0 0
  %604 = vmatprep.subr.bf16.mxu0 0
  %605 = vmatpush1.bf16.msra.mxu0 0
  %606 = vmatprep.subr.bf16.mxu0 0
  %607 = vmatpush1.bf16.msra.mxu0 0
  %608 = vmatprep.mubr.bf16.mxu0 0
  %609 = vmatmul.mubr.bf16.gmra.mrb[0].mxu0 %v574
  %v610 = vpop.f32.mrb[0].mxu0
  %v611 = vadd.f32 0.0, %v610
  %v612 = vpop.f32.mrb[0].mxu0
  %v613 = vpop.f32.mrb[0].mxu0
  %v614 = vpop.f32.mrb[0].mxu0
  %615 = vdwg.mxu0
  %v616 = vpack.c.bf16 %v611, %v611
  %s617 = scalar_lea.vmem %s4, 12
  %v618 = vld [vmem:[%s617] sm:$0xf]
  %v620 = vsel %vm480, %v618, 0
  %622 = vmatprep.subr.bf16.mxu0 0
  %623 = vmatpush1.bf16.msra.mxu0 %v478
  %624 = vmatprep.subr.bf16.mxu0 0
  %625 = vmatpush1.bf16.msra.mxu0 0
  %626 = vmatprep.subr.bf16.mxu0 0
  %627 = vmatpush1.bf16.msra.mxu0 0
  %628 = vmatprep.subr.bf16.mxu0 0
  %629 = vmatpush1.bf16.msra.mxu0 0
  %630 = vmatprep.subr.bf16.mxu0 0
  %631 = vmatpush1.bf16.msra.mxu0 0
  %632 = vmatprep.subr.bf16.mxu0 0
  %633 = vmatpush1.bf16.msra.mxu0 0
  %634 = vmatprep.subr.bf16.mxu0 0
  %635 = vmatpush1.bf16.msra.mxu0 0
  %636 = vmatprep.subr.bf16.mxu0 0
  %637 = vmatpush1.bf16.msra.mxu0 0
  %638 = vmatprep.subr.bf16.mxu0 0
  %639 = vmatpush1.bf16.msra.mxu0 0
  %640 = vmatprep.subr.bf16.mxu0 0
  %641 = vmatpush1.bf16.msra.mxu0 0
  %642 = vmatprep.subr.bf16.mxu0 0
  %643 = vmatpush1.bf16.msra.mxu0 0
  %644 = vmatprep.subr.bf16.mxu0 0
  %645 = vmatpush1.bf16.msra.mxu0 0
  %646 = vmatprep.subr.bf16.mxu0 0
  %647 = vmatpush1.bf16.msra.mxu0 0
  %648 = vmatprep.subr.bf16.mxu0 0
  %649 = vmatpush1.bf16.msra.mxu0 0
  %650 = vmatprep.subr.bf16.mxu0 0
  %651 = vmatpush1.bf16.msra.mxu0 0
  %652 = vmatprep.subr.bf16.mxu0 0
  %653 = vmatpush1.bf16.msra.mxu0 0
  %654 = vmatprep.mubr.bf16.mxu0 0
  %655 = vmatmul.mubr.bf16.gmra.mrb[0].mxu0 %v620
  %v656 = vpop.f32.mrb[0].mxu0
  %v657 = vadd.f32 0.0, %v656
  %v658 = vpop.f32.mrb[0].mxu0
  %v659 = vpop.f32.mrb[0].mxu0
  %v660 = vpop.f32.mrb[0].mxu0
  %661 = vdwg.mxu0
  %v662 = vpack.c.bf16 %v657, %v657
  %664 = vrot.lane.b32.xlu0 %v570, 64
  %v665 = vpop.permute.xlu0 %664
  %667 = vrot.lane.b32.xlu0 %v662, 64
  %v668 = vpop.permute.xlu0 %667
  %v671 = vsel %vm287, %v524, %v665
  %v675 = vsel %vm287, %v616, %v668
  %v677 = vld [vmem:[%s5] sm:$0xf]
  %v678 = vld [vmem:[%s5 + $0x4] sm:$0xf]
  %v679 = vld [vmem:[%s5 + $0x8] sm:$0xf]
  %v680 = vld [vmem:[%s5 + $0xc] sm:$0xf]
  %v681 = vld [vmem:[%s5 + $0x10] sm:$0xf]
  %v682 = vld [vmem:[%s5 + $0x14] sm:$0xf]
  %v683 = vld [vmem:[%s5 + $0x18] sm:$0xf]
  %v684 = vld [vmem:[%s5 + $0x1c] sm:$0xf]
  %v685 = vld [vmem:[%s5 + $0x20] sm:$0xf]
  %v686 = vld [vmem:[%s5 + $0x24] sm:$0xf]
  %v687 = vld [vmem:[%s5 + $0x28] sm:$0xf]
  %v688 = vld [vmem:[%s5 + $0x2c] sm:$0xf]
  %v689 = vld [vmem:[%s5 + $0x30] sm:$0xf]
  %v690 = vld [vmem:[%s5 + $0x34] sm:$0xf]
  %v691 = vld [vmem:[%s5 + $0x38] sm:$0xf]
  %v692 = vld [vmem:[%s5 + $0x3c] sm:$0xf]
  %v693 = vld [vmem:[%s5 + $0x40] sm:$0xf]
  %v694 = vld [vmem:[%s5 + $0x44] sm:$0xf]
  %v695 = vld [vmem:[%s5 + $0x48] sm:$0xf]
  %v696 = vld [vmem:[%s5 + $0x4c] sm:$0xf]
  %v697 = vld [vmem:[%s5 + $0x50] sm:$0xf]
  %v698 = vld [vmem:[%s5 + $0x54] sm:$0xf]
  %v699 = vld [vmem:[%s5 + $0x58] sm:$0xf]
  %v700 = vld [vmem:[%s5 + $0x5c] sm:$0xf]
  %v701 = vld [vmem:[%s5 + $0x60] sm:$0xf]
  %v702 = vld [vmem:[%s5 + $0x64] sm:$0xf]
  %v703 = vld [vmem:[%s5 + $0x68] sm:$0xf]
  %v704 = vld [vmem:[%s5 + $0x6c] sm:$0xf]
  %v705 = vld [vmem:[%s5 + $0x70] sm:$0xf]
  %v706 = vld [vmem:[%s5 + $0x74] sm:$0xf]
  %v707 = vld [vmem:[%s5 + $0x78] sm:$0xf]
  %v708 = vld [vmem:[%s5 + $0x7c] sm:$0xf]
  %v709 = vld [vmem:[%s6] sm:$0x1]
  %v711 = vlaneseq
  %v712 = vshrl.u32 %v711, 7
  %v713 = vsub.s32 0, %v712
  %v714 = vrot.slane %v709, %v713
  %v748 = vunpack.c.l.b16 %v677
  %v749 = vunpack.c.l.b16 %v678
  %v750 = vunpack.c.l.b16 %v679
  %v751 = vunpack.c.l.b16 %v680
  %v752 = vunpack.c.l.b16 %v681
  %v753 = vunpack.c.l.b16 %v682
  %v754 = vunpack.c.l.b16 %v683
  %v755 = vunpack.c.l.b16 %v684
  %v756 = vunpack.c.l.b16 %v685
  %v757 = vunpack.c.l.b16 %v686
  %v758 = vunpack.c.l.b16 %v687
  %v759 = vunpack.c.l.b16 %v688
  %v760 = vunpack.c.l.b16 %v689
  %v761 = vunpack.c.l.b16 %v690
  %v762 = vunpack.c.l.b16 %v691
  %v763 = vunpack.c.l.b16 %v692
  %v764 = vunpack.c.l.b16 %v693
  %v765 = vunpack.c.l.b16 %v694
  %v766 = vunpack.c.l.b16 %v695
  %v767 = vunpack.c.l.b16 %v696
  %v768 = vunpack.c.l.b16 %v697
  %v769 = vunpack.c.l.b16 %v698
  %v770 = vunpack.c.l.b16 %v699
  %v771 = vunpack.c.l.b16 %v700
  %v772 = vunpack.c.l.b16 %v701
  %v773 = vunpack.c.l.b16 %v702
  %v774 = vunpack.c.l.b16 %v703
  %v775 = vunpack.c.l.b16 %v704
  %v776 = vunpack.c.l.b16 %v705
  %v777 = vunpack.c.l.b16 %v706
  %v778 = vunpack.c.l.b16 %v707
  %v779 = vunpack.c.l.b16 %v708
  %v780 = vpack.c.b16 %v749, %v748
  %v781 = vpack.c.b16 %v751, %v750
  %v782 = vpack.c.b16 %v753, %v752
  %v783 = vpack.c.b16 %v755, %v754
  %v784 = vpack.c.b16 %v757, %v756
  %v785 = vpack.c.b16 %v759, %v758
  %v786 = vpack.c.b16 %v761, %v760
  %v787 = vpack.c.b16 %v763, %v762
  %v788 = vpack.c.b16 %v765, %v764
  %v789 = vpack.c.b16 %v767, %v766
  %v790 = vpack.c.b16 %v769, %v768
  %v791 = vpack.c.b16 %v771, %v770
  %v792 = vpack.c.b16 %v773, %v772
  %v793 = vpack.c.b16 %v775, %v774
  %v794 = vpack.c.b16 %v777, %v776
  %v795 = vpack.c.b16 %v779, %v778
  %812 = vmatprep.subr.bf16.mxu0 0
  %813 = vmatpush1.bf16.msra.mxu0 %v780
  %814 = vmatprep.subr.bf16.mxu0 0
  %815 = vmatpush1.bf16.msra.mxu0 %v781
  %816 = vmatprep.subr.bf16.mxu0 0
  %817 = vmatpush1.bf16.msra.mxu0 %v782
  %818 = vmatprep.subr.bf16.mxu0 0
  %819 = vmatpush1.bf16.msra.mxu0 %v783
  %820 = vmatprep.subr.bf16.mxu0 0
  %821 = vmatpush1.bf16.msra.mxu0 %v784
  %822 = vmatprep.subr.bf16.mxu0 0
  %823 = vmatpush1.bf16.msra.mxu0 %v785
  %824 = vmatprep.subr.bf16.mxu0 0
  %825 = vmatpush1.bf16.msra.mxu0 %v786
  %826 = vmatprep.subr.bf16.mxu0 0
  %827 = vmatpush1.bf16.msra.mxu0 %v787
  %828 = vmatprep.subr.bf16.mxu0 0
  %829 = vmatpush1.bf16.msra.mxu0 %v788
  %830 = vmatprep.subr.bf16.mxu0 0
  %831 = vmatpush1.bf16.msra.mxu0 %v789
  %832 = vmatprep.subr.bf16.mxu0 0
  %833 = vmatpush1.bf16.msra.mxu0 %v790
  %834 = vmatprep.subr.bf16.mxu0 0
  %835 = vmatpush1.bf16.msra.mxu0 %v791
  %836 = vmatprep.subr.bf16.mxu0 0
  %837 = vmatpush1.bf16.msra.mxu0 %v792
  %838 = vmatprep.subr.bf16.mxu0 0
  %839 = vmatpush1.bf16.msra.mxu0 %v793
  %840 = vmatprep.subr.bf16.mxu0 0
  %841 = vmatpush1.bf16.msra.mxu0 %v794
  %842 = vmatprep.subr.bf16.mxu0 0
  %843 = vmatpush1.bf16.msra.mxu0 %v795
  %844 = vmatprep.mubr.bf16.mxu0 %v675
  %845 = vmatmul.mubr.bf16.gmra.mrb[0].mxu0 %v671
  %v846 = vpop.f32.mrb[0].mxu0
  %v847 = vadd.f32 %v714, %v846
  %v848 = vpop.f32.mrb[0].mxu0
  %v849 = vpop.f32.mrb[0].mxu0
  %v850 = vpop.f32.mrb[0].mxu0
  %851 = vdwg.mxu0
  %vm852 = vcmp.ge.f32.partialorder %v847, 0.0
  %v853 = vmul.f32 %v847, 0.2
  %v854 = vsel %vm852, %v847, %v853
  %v855 = vpack.c.bf16 %v854, %v854
  %v856 = vld [vmem:[%s7] sm:$0x3]
  %vm857 = vcmask 64512
  %v859 = vsel %vm857, %v856, 0
  %vm861 = vcmask 1043456
  %v863 = vsel %vm861, %v855, 0
  %865 = vmatprep.subr.bf16.mxu0 0
  %866 = vmatpush1.bf16.msra.mxu0 %v863
  %867 = vmatprep.subr.bf16.mxu0 0
  %868 = vmatpush1.bf16.msra.mxu0 0
  %869 = vmatprep.subr.bf16.mxu0 0
  %870 = vmatpush1.bf16.msra.mxu0 0
  %871 = vmatprep.subr.bf16.mxu0 0
  %872 = vmatpush1.bf16.msra.mxu0 0
  %873 = vmatprep.subr.bf16.mxu0 0
  %874 = vmatpush1.bf16.msra.mxu0 0
  %875 = vmatprep.subr.bf16.mxu0 0
  %876 = vmatpush1.bf16.msra.mxu0 0
  %877 = vmatprep.subr.bf16.mxu0 0
  %878 = vmatpush1.bf16.msra.mxu0 0
  %879 = vmatprep.subr.bf16.mxu0 0
  %880 = vmatpush1.bf16.msra.mxu0 0
  %881 = vmatprep.subr.bf16.mxu0 0
  %882 = vmatpush1.bf16.msra.mxu0 0
  %883 = vmatprep.subr.bf16.mxu0 0
  %884 = vmatpush1.bf16.msra.mxu0 0
  %885 = vmatprep.subr.bf16.mxu0 0
  %886 = vmatpush1.bf16.msra.mxu0 0
  %887 = vmatprep.subr.bf16.mxu0 0
  %888 = vmatpush1.bf16.msra.mxu0 0
  %889 = vmatprep.subr.bf16.mxu0 0
  %890 = vmatpush1.bf16.msra.mxu0 0
  %891 = vmatprep.subr.bf16.mxu0 0
  %892 = vmatpush1.bf16.msra.mxu0 0
  %893 = vmatprep.subr.bf16.mxu0 0
  %894 = vmatpush1.bf16.msra.mxu0 0
  %895 = vmatprep.subr.bf16.mxu0 0
  %896 = vmatpush1.bf16.msra.mxu0 0
  %897 = vmatprep.mubr.bf16.mxu0 0
  %898 = vmatmul.mubr.bf16.gmra.mrb[0].mxu0 %v859
  %v899 = vpop.f32.mrb[0].mxu0
  %v900 = vadd.f32 0.0, %v899
  %v901 = vpop.f32.mrb[0].mxu0
  %v902 = vpop.f32.mrb[0].mxu0
  %v903 = vpop.f32.mrb[0].mxu0
  %904 = vdwg.mxu0
  %v905 = vpack.c.bf16 %v900, %v900
  %s906 = scalar_lea.vmem %s7, 2
  %v907 = vld [vmem:[%s906] sm:$0x3]
  %v909 = vsel %vm857, %v907, 0
  %911 = vmatprep.subr.bf16.mxu0 0
  %912 = vmatpush1.bf16.msra.mxu0 %v863
  %913 = vmatprep.subr.bf16.mxu0 0
  %914 = vmatpush1.bf16.msra.mxu0 0
  %915 = vmatprep.subr.bf16.mxu0 0
  %916 = vmatpush1.bf16.msra.mxu0 0
  %917 = vmatprep.subr.bf16.mxu0 0
  %918 = vmatpush1.bf16.msra.mxu0 0
  %919 = vmatprep.subr.bf16.mxu0 0
  %920 = vmatpush1.bf16.msra.mxu0 0
  %921 = vmatprep.subr.bf16.mxu0 0
  %922 = vmatpush1.bf16.msra.mxu0 0
  %923 = vmatprep.subr.bf16.mxu0 0
  %924 = vmatpush1.bf16.msra.mxu0 0
  %925 = vmatprep.subr.bf16.mxu0 0
  %926 = vmatpush1.bf16.msra.mxu0 0
  %927 = vmatprep.subr.bf16.mxu0 0
  %928 = vmatpush1.bf16.msra.mxu0 0
  %929 = vmatprep.subr.bf16.mxu0 0
  %930 = vmatpush1.bf16.msra.mxu0 0
  %931 = vmatprep.subr.bf16.mxu0 0
  %932 = vmatpush1.bf16.msra.mxu0 0
  %933 = vmatprep.subr.bf16.mxu0 0
  %934 = vmatpush1.bf16.msra.mxu0 0
  %935 = vmatprep.subr.bf16.mxu0 0
  %936 = vmatpush1.bf16.msra.mxu0 0
  %937 = vmatprep.subr.bf16.mxu0 0
  %938 = vmatpush1.bf16.msra.mxu0 0
  %939 = vmatprep.subr.bf16.mxu0 0
  %940 = vmatpush1.bf16.msra.mxu0 0
  %941 = vmatprep.subr.bf16.mxu0 0
  %942 = vmatpush1.bf16.msra.mxu0 0
  %943 = vmatprep.mubr.bf16.mxu0 0
  %944 = vmatmul.mubr.bf16.gmra.mrb[0].mxu0 %v909
  %v945 = vpop.f32.mrb[0].mxu0
  %v946 = vadd.f32 0.0, %v945
  %v947 = vpop.f32.mrb[0].mxu0
  %v948 = vpop.f32.mrb[0].mxu0
  %v949 = vpop.f32.mrb[0].mxu0
  %950 = vdwg.mxu0
  %v951 = vpack.c.bf16 %v946, %v946
  %s952 = scalar_lea.vmem %s7, 4
  %v953 = vld [vmem:[%s952] sm:$0x3]
  %v955 = vsel %vm857, %v953, 0
  %957 = vmatprep.subr.bf16.mxu0 0
  %958 = vmatpush1.bf16.msra.mxu0 %v863
  %959 = vmatprep.subr.bf16.mxu0 0
  %960 = vmatpush1.bf16.msra.mxu0 0
  %961 = vmatprep.subr.bf16.mxu0 0
  %962 = vmatpush1.bf16.msra.mxu0 0
  %963 = vmatprep.subr.bf16.mxu0 0
  %964 = vmatpush1.bf16.msra.mxu0 0
  %965 = vmatprep.subr.bf16.mxu0 0
  %966 = vmatpush1.bf16.msra.mxu0 0
  %967 = vmatprep.subr.bf16.mxu0 0
  %968 = vmatpush1.bf16.msra.mxu0 0
  %969 = vmatprep.subr.bf16.mxu0 0
  %970 = vmatpush1.bf16.msra.mxu0 0
  %971 = vmatprep.subr.bf16.mxu0 0
  %972 = vmatpush1.bf16.msra.mxu0 0
  %973 = vmatprep.subr.bf16.mxu0 0
  %974 = vmatpush1.bf16.msra.mxu0 0
  %975 = vmatprep.subr.bf16.mxu0 0
  %976 = vmatpush1.bf16.msra.mxu0 0
  %977 = vmatprep.subr.bf16.mxu0 0
  %978 = vmatpush1.bf16.msra.mxu0 0
  %979 = vmatprep.subr.bf16.mxu0 0
  %980 = vmatpush1.bf16.msra.mxu0 0
  %981 = vmatprep.subr.bf16.mxu0 0
  %982 = vmatpush1.bf16.msra.mxu0 0
  %983 = vmatprep.subr.bf16.mxu0 0
  %984 = vmatpush1.bf16.msra.mxu0 0
  %985 = vmatprep.subr.bf16.mxu0 0
  %986 = vmatpush1.bf16.msra.mxu0 0
  %987 = vmatprep.subr.bf16.mxu0 0
  %988 = vmatpush1.bf16.msra.mxu0 0
  %989 = vmatprep.mubr.bf16.mxu0 0
  %990 = vmatmul.mubr.bf16.gmra.mrb[0].mxu0 %v955
  %v991 = vpop.f32.mrb[0].mxu0
  %v992 = vadd.f32 0.0, %v991
  %v993 = vpop.f32.mrb[0].mxu0
  %v994 = vpop.f32.mrb[0].mxu0
  %v995 = vpop.f32.mrb[0].mxu0
  %996 = vdwg.mxu0
  %v997 = vpack.c.bf16 %v992, %v992
  %s998 = scalar_lea.vmem %s7, 6
  %v999 = vld [vmem:[%s998] sm:$0x3]
  %v1001 = vsel %vm857, %v999, 0
  %1003 = vmatprep.subr.bf16.mxu0 0
  %1004 = vmatpush1.bf16.msra.mxu0 %v863
  %1005 = vmatprep.subr.bf16.mxu0 0
  %1006 = vmatpush1.bf16.msra.mxu0 0
  %1007 = vmatprep.subr.bf16.mxu0 0
  %1008 = vmatpush1.bf16.msra.mxu0 0
  %1009 = vmatprep.subr.bf16.mxu0 0
  %1010 = vmatpush1.bf16.msra.mxu0 0
  %1011 = vmatprep.subr.bf16.mxu0 0
  %1012 = vmatpush1.bf16.msra.mxu0 0
  %1013 = vmatprep.subr.bf16.mxu0 0
  %1014 = vmatpush1.bf16.msra.mxu0 0
  %1015 = vmatprep.subr.bf16.mxu0 0
  %1016 = vmatpush1.bf16.msra.mxu0 0
  %1017 = vmatprep.subr.bf16.mxu0 0
  %1018 = vmatpush1.bf16.msra.mxu0 0
  %1019 = vmatprep.subr.bf16.mxu0 0
  %1020 = vmatpush1.bf16.msra.mxu0 0
  %1021 = vmatprep.subr.bf16.mxu0 0
  %1022 = vmatpush1.bf16.msra.mxu0 0
  %1023 = vmatprep.subr.bf16.mxu0 0
  %1024 = vmatpush1.bf16.msra.mxu0 0
  %1025 = vmatprep.subr.bf16.mxu0 0
  %1026 = vmatpush1.bf16.msra.mxu0 0
  %1027 = vmatprep.subr.bf16.mxu0 0
  %1028 = vmatpush1.bf16.msra.mxu0 0
  %1029 = vmatprep.subr.bf16.mxu0 0
  %1030 = vmatpush1.bf16.msra.mxu0 0
  %1031 = vmatprep.subr.bf16.mxu0 0
  %1032 = vmatpush1.bf16.msra.mxu0 0
  %1033 = vmatprep.subr.bf16.mxu0 0
  %1034 = vmatpush1.bf16.msra.mxu0 0
  %1035 = vmatprep.mubr.bf16.mxu0 0
  %1036 = vmatmul.mubr.bf16.gmra.mrb[0].mxu0 %v1001
  %v1037 = vpop.f32.mrb[0].mxu0
  %v1038 = vadd.f32 0.0, %v1037
  %v1039 = vpop.f32.mrb[0].mxu0
  %v1040 = vpop.f32.mrb[0].mxu0
  %v1041 = vpop.f32.mrb[0].mxu0
  %1042 = vdwg.mxu0
  %v1043 = vpack.c.bf16 %v1038, %v1038
  %1045 = vrot.lane.b32.xlu0 %v951, 64
  %v1046 = vpop.permute.xlu0 %1045
  %1048 = vrot.lane.b32.xlu0 %v1043, 64
  %v1049 = vpop.permute.xlu0 %1048
  %v1052 = vsel %vm287, %v905, %v1046
  %v1056 = vsel %vm287, %v997, %v1049
  %v1058 = vld [vmem:[%s8] sm:$0xf]
  %v1059 = vld [vmem:[%s8 + $0x4] sm:$0xf]
  %v1060 = vld [vmem:[%s8 + $0x8] sm:$0xf]
  %v1061 = vld [vmem:[%s8 + $0xc] sm:$0xf]
  %v1062 = vld [vmem:[%s8 + $0x10] sm:$0xf]
  %v1063 = vld [vmem:[%s8 + $0x14] sm:$0xf]
  %v1064 = vld [vmem:[%s8 + $0x18] sm:$0xf]
  %v1065 = vld [vmem:[%s8 + $0x1c] sm:$0xf]
  %v1066 = vld [vmem:[%s8 + $0x20] sm:$0xf]
  %v1067 = vld [vmem:[%s8 + $0x24] sm:$0xf]
  %v1068 = vld [vmem:[%s8 + $0x28] sm:$0xf]
  %v1069 = vld [vmem:[%s8 + $0x2c] sm:$0xf]
  %v1070 = vld [vmem:[%s8 + $0x30] sm:$0xf]
  %v1071 = vld [vmem:[%s8 + $0x34] sm:$0xf]
  %v1072 = vld [vmem:[%s8 + $0x38] sm:$0xf]
  %v1073 = vld [vmem:[%s8 + $0x3c] sm:$0xf]
  %v1074 = vld [vmem:[%s8 + $0x40] sm:$0xf]
  %v1075 = vld [vmem:[%s8 + $0x44] sm:$0xf]
  %v1076 = vld [vmem:[%s8 + $0x48] sm:$0xf]
  %v1077 = vld [vmem:[%s8 + $0x4c] sm:$0xf]
  %v1078 = vld [vmem:[%s8 + $0x50] sm:$0xf]
  %v1079 = vld [vmem:[%s8 + $0x54] sm:$0xf]
  %v1080 = vld [vmem:[%s8 + $0x58] sm:$0xf]
  %v1081 = vld [vmem:[%s8 + $0x5c] sm:$0xf]
  %v1082 = vld [vmem:[%s8 + $0x60] sm:$0xf]
  %v1083 = vld [vmem:[%s8 + $0x64] sm:$0xf]
  %v1084 = vld [vmem:[%s8 + $0x68] sm:$0xf]
  %v1085 = vld [vmem:[%s8 + $0x6c] sm:$0xf]
  %v1086 = vld [vmem:[%s8 + $0x70] sm:$0xf]
  %v1087 = vld [vmem:[%s8 + $0x74] sm:$0xf]
  %v1088 = vld [vmem:[%s8 + $0x78] sm:$0xf]
  %v1089 = vld [vmem:[%s8 + $0x7c] sm:$0xf]
  %v1090 = vld [vmem:[%s9] sm:$0x1]
  %v1092 = vlaneseq
  %v1093 = vshrl.u32 %v1092, 7
  %v1094 = vsub.s32 0, %v1093
  %v1095 = vrot.slane %v1090, %v1094
  %v1129 = vunpack.c.l.b16 %v1058
  %v1130 = vunpack.c.l.b16 %v1059
  %v1131 = vunpack.c.l.b16 %v1060
  %v1132 = vunpack.c.l.b16 %v1061
  %v1133 = vunpack.c.l.b16 %v1062
  %v1134 = vunpack.c.l.b16 %v1063
  %v1135 = vunpack.c.l.b16 %v1064
  %v1136 = vunpack.c.l.b16 %v1065
  %v1137 = vunpack.c.l.b16 %v1066
  %v1138 = vunpack.c.l.b16 %v1067
  %v1139 = vunpack.c.l.b16 %v1068
  %v1140 = vunpack.c.l.b16 %v1069
  %v1141 = vunpack.c.l.b16 %v1070
  %v1142 = vunpack.c.l.b16 %v1071
  %v1143 = vunpack.c.l.b16 %v1072
  %v1144 = vunpack.c.l.b16 %v1073
  %v1145 = vunpack.c.l.b16 %v1074
  %v1146 = vunpack.c.l.b16 %v1075
  %v1147 = vunpack.c.l.b16 %v1076
  %v1148 = vunpack.c.l.b16 %v1077
  %v1149 = vunpack.c.l.b16 %v1078
  %v1150 = vunpack.c.l.b16 %v1079
  %v1151 = vunpack.c.l.b16 %v1080
  %v1152 = vunpack.c.l.b16 %v1081
  %v1153 = vunpack.c.l.b16 %v1082
  %v1154 = vunpack.c.l.b16 %v1083
  %v1155 = vunpack.c.l.b16 %v1084
  %v1156 = vunpack.c.l.b16 %v1085
  %v1157 = vunpack.c.l.b16 %v1086
  %v1158 = vunpack.c.l.b16 %v1087
  %v1159 = vunpack.c.l.b16 %v1088
  %v1160 = vunpack.c.l.b16 %v1089
  %v1161 = vpack.c.b16 %v1130, %v1129
  %v1162 = vpack.c.b16 %v1132, %v1131
  %v1163 = vpack.c.b16 %v1134, %v1133
  %v1164 = vpack.c.b16 %v1136, %v1135
  %v1165 = vpack.c.b16 %v1138, %v1137
  %v1166 = vpack.c.b16 %v1140, %v1139
  %v1167 = vpack.c.b16 %v1142, %v1141
  %v1168 = vpack.c.b16 %v1144, %v1143
  %v1169 = vpack.c.b16 %v1146, %v1145
  %v1170 = vpack.c.b16 %v1148, %v1147
  %v1171 = vpack.c.b16 %v1150, %v1149
  %v1172 = vpack.c.b16 %v1152, %v1151
  %v1173 = vpack.c.b16 %v1154, %v1153
  %v1174 = vpack.c.b16 %v1156, %v1155
  %v1175 = vpack.c.b16 %v1158, %v1157
  %v1176 = vpack.c.b16 %v1160, %v1159
  %1193 = vmatprep.subr.bf16.mxu0 0
  %1194 = vmatpush1.bf16.msra.mxu0 %v1161
  %1195 = vmatprep.subr.bf16.mxu0 0
  %1196 = vmatpush1.bf16.msra.mxu0 %v1162
  %1197 = vmatprep.subr.bf16.mxu0 0
  %1198 = vmatpush1.bf16.msra.mxu0 %v1163
  %1199 = vmatprep.subr.bf16.mxu0 0
  %1200 = vmatpush1.bf16.msra.mxu0 %v1164
  %1201 = vmatprep.subr.bf16.mxu0 0
  %1202 = vmatpush1.bf16.msra.mxu0 %v1165
  %1203 = vmatprep.subr.bf16.mxu0 0
  %1204 = vmatpush1.bf16.msra.mxu0 %v1166
  %1205 = vmatprep.subr.bf16.mxu0 0
  %1206 = vmatpush1.bf16.msra.mxu0 %v1167
  %1207 = vmatprep.subr.bf16.mxu0 0
  %1208 = vmatpush1.bf16.msra.mxu0 %v1168
  %1209 = vmatprep.subr.bf16.mxu0 0
  %1210 = vmatpush1.bf16.msra.mxu0 %v1169
  %1211 = vmatprep.subr.bf16.mxu0 0
  %1212 = vmatpush1.bf16.msra.mxu0 %v1170
  %1213 = vmatprep.subr.bf16.mxu0 0
  %1214 = vmatpush1.bf16.msra.mxu0 %v1171
  %1215 = vmatprep.subr.bf16.mxu0 0
  %1216 = vmatpush1.bf16.msra.mxu0 %v1172
  %1217 = vmatprep.subr.bf16.mxu0 0
  %1218 = vmatpush1.bf16.msra.mxu0 %v1173
  %1219 = vmatprep.subr.bf16.mxu0 0
  %1220 = vmatpush1.bf16.msra.mxu0 %v1174
  %1221 = vmatprep.subr.bf16.mxu0 0
  %1222 = vmatpush1.bf16.msra.mxu0 %v1175
  %1223 = vmatprep.subr.bf16.mxu0 0
  %1224 = vmatpush1.bf16.msra.mxu0 %v1176
  %1225 = vmatprep.mubr.bf16.mxu0 %v1056
  %1226 = vmatmul.mubr.bf16.gmra.mrb[0].mxu0 %v1052
  %v1227 = vpop.f32.mrb[0].mxu0
  %v1228 = vadd.f32 %v1095, %v1227
  %v1229 = vpop.f32.mrb[0].mxu0
  %v1230 = vpop.f32.mrb[0].mxu0
  %v1231 = vpop.f32.mrb[0].mxu0
  %1232 = vdwg.mxu0
  %v1233 = vmax.f32 %v1228, 0.0
  %v1234 = vpack.c.bf16 %v1233, %v1233
  %v1235 = vld [vmem:[%s10] sm:$0xf]
  %vm1236 = vcmask 31744
  %v1238 = vsel %vm1236, %v1235, 0
  %vm1240 = vcmask 1041408
  %v1242 = vsel %vm1240, %v1234, 0
  %1244 = vmatprep.subr.bf16.mxu0 0
  %1245 = vmatpush1.bf16.msra.mxu0 %v1242
  %1246 = vmatprep.subr.bf16.mxu0 0
  %1247 = vmatpush1.bf16.msra.mxu0 0
  %1248 = vmatprep.subr.bf16.mxu0 0
  %1249 = vmatpush1.bf16.msra.mxu0 0
  %1250 = vmatprep.subr.bf16.mxu0 0
  %1251 = vmatpush1.bf16.msra.mxu0 0
  %1252 = vmatprep.subr.bf16.mxu0 0
  %1253 = vmatpush1.bf16.msra.mxu0 0
  %1254 = vmatprep.subr.bf16.mxu0 0
  %1255 = vmatpush1.bf16.msra.mxu0 0
  %1256 = vmatprep.subr.bf16.mxu0 0
  %1257 = vmatpush1.bf16.msra.mxu0 0
  %1258 = vmatprep.subr.bf16.mxu0 0
  %1259 = vmatpush1.bf16.msra.mxu0 0
  %1260 = vmatprep.subr.bf16.mxu0 0
  %1261 = vmatpush1.bf16.msra.mxu0 0
  %1262 = vmatprep.subr.bf16.mxu0 0
  %1263 = vmatpush1.bf16.msra.mxu0 0
  %1264 = vmatprep.subr.bf16.mxu0 0
  %1265 = vmatpush1.bf16.msra.mxu0 0
  %1266 = vmatprep.subr.bf16.mxu0 0
  %1267 = vmatpush1.bf16.msra.mxu0 0
  %1268 = vmatprep.subr.bf16.mxu0 0
  %1269 = vmatpush1.bf16.msra.mxu0 0
  %1270 = vmatprep.subr.bf16.mxu0 0
  %1271 = vmatpush1.bf16.msra.mxu0 0
  %1272 = vmatprep.subr.bf16.mxu0 0
  %1273 = vmatpush1.bf16.msra.mxu0 0
  %1274 = vmatprep.subr.bf16.mxu0 0
  %1275 = vmatpush1.bf16.msra.mxu0 0
  %1276 = vmatprep.mubr.bf16.mxu0 0
  %1277 = vmatmul.mubr.bf16.gmra.mrb[0].mxu0 %v1238
  %v1278 = vpop.f32.mrb[0].mxu0
  %v1279 = vadd.f32 0.0, %v1278
  %v1280 = vpop.f32.mrb[0].mxu0
  %v1281 = vpop.f32.mrb[0].mxu0
  %v1282 = vpop.f32.mrb[0].mxu0
  %1283 = vdwg.mxu0
  %v1284 = vpack.c.bf16 %v1279, %v1279
  %s1285 = scalar_lea.vmem %s10, 4
  %v1286 = vld [vmem:[%s1285] sm:$0xf]
  %v1288 = vsel %vm1236, %v1286, 0
  %1290 = vmatprep.subr.bf16.mxu0 0
  %1291 = vmatpush1.bf16.msra.mxu0 %v1242
  %1292 = vmatprep.subr.bf16.mxu0 0
  %1293 = vmatpush1.bf16.msra.mxu0 0
  %1294 = vmatprep.subr.bf16.mxu0 0
  %1295 = vmatpush1.bf16.msra.mxu0 0
  %1296 = vmatprep.subr.bf16.mxu0 0
  %1297 = vmatpush1.bf16.msra.mxu0 0
  %1298 = vmatprep.subr.bf16.mxu0 0
  %1299 = vmatpush1.bf16.msra.mxu0 0
  %1300 = vmatprep.subr.bf16.mxu0 0
  %1301 = vmatpush1.bf16.msra.mxu0 0
  %1302 = vmatprep.subr.bf16.mxu0 0
  %1303 = vmatpush1.bf16.msra.mxu0 0
  %1304 = vmatprep.subr.bf16.mxu0 0
  %1305 = vmatpush1.bf16.msra.mxu0 0
  %1306 = vmatprep.subr.bf16.mxu0 0
  %1307 = vmatpush1.bf16.msra.mxu0 0
  %1308 = vmatprep.subr.bf16.mxu0 0
  %1309 = vmatpush1.bf16.msra.mxu0 0
  %1310 = vmatprep.subr.bf16.mxu0 0
  %1311 = vmatpush1.bf16.msra.mxu0 0
  %1312 = vmatprep.subr.bf16.mxu0 0
  %1313 = vmatpush1.bf16.msra.mxu0 0
  %1314 = vmatprep.subr.bf16.mxu0 0
  %1315 = vmatpush1.bf16.msra.mxu0 0
  %1316 = vmatprep.subr.bf16.mxu0 0
  %1317 = vmatpush1.bf16.msra.mxu0 0
  %1318 = vmatprep.subr.bf16.mxu0 0
  %1319 = vmatpush1.bf16.msra.mxu0 0
  %1320 = vmatprep.subr.bf16.mxu0 0
  %1321 = vmatpush1.bf16.msra.mxu0 0
  %1322 = vmatprep.mubr.bf16.mxu0 0
  %1323 = vmatmul.mubr.bf16.gmra.mrb[0].mxu0 %v1288
  %v1324 = vpop.f32.mrb[0].mxu0
  %v1325 = vadd.f32 0.0, %v1324
  %v1326 = vpop.f32.mrb[0].mxu0
  %v1327 = vpop.f32.mrb[0].mxu0
  %v1328 = vpop.f32.mrb[0].mxu0
  %1329 = vdwg.mxu0
  %v1330 = vpack.c.bf16 %v1325, %v1325
  %s1331 = scalar_lea.vmem %s10, 8
  %v1332 = vld [vmem:[%s1331] sm:$0xf]
  %v1334 = vsel %vm1236, %v1332, 0
  %1336 = vmatprep.subr.bf16.mxu0 0
  %1337 = vmatpush1.bf16.msra.mxu0 %v1242
  %1338 = vmatprep.subr.bf16.mxu0 0
  %1339 = vmatpush1.bf16.msra.mxu0 0
  %1340 = vmatprep.subr.bf16.mxu0 0
  %1341 = vmatpush1.bf16.msra.mxu0 0
  %1342 = vmatprep.subr.bf16.mxu0 0
  %1343 = vmatpush1.bf16.msra.mxu0 0
  %1344 = vmatprep.subr.bf16.mxu0 0
  %1345 = vmatpush1.bf16.msra.mxu0 0
  %1346 = vmatprep.subr.bf16.mxu0 0
  %1347 = vmatpush1.bf16.msra.mxu0 0
  %1348 = vmatprep.subr.bf16.mxu0 0
  %1349 = vmatpush1.bf16.msra.mxu0 0
  %1350 = vmatprep.subr.bf16.mxu0 0
  %1351 = vmatpush1.bf16.msra.mxu0 0
  %1352 = vmatprep.subr.bf16.mxu0 0
  %1353 = vmatpush1.bf16.msra.mxu0 0
  %1354 = vmatprep.subr.bf16.mxu0 0
  %1355 = vmatpush1.bf16.msra.mxu0 0
  %1356 = vmatprep.subr.bf16.mxu0 0
  %1357 = vmatpush1.bf16.msra.mxu0 0
  %1358 = vmatprep.subr.bf16.mxu0 0
  %1359 = vmatpush1.bf16.msra.mxu0 0
  %1360 = vmatprep.subr.bf16.mxu0 0
  %1361 = vmatpush1.bf16.msra.mxu0 0
  %1362 = vmatprep.subr.bf16.mxu0 0
  %1363 = vmatpush1.bf16.msra.mxu0 0
  %1364 = vmatprep.subr.bf16.mxu0 0
  %1365 = vmatpush1.bf16.msra.mxu0 0
  %1366 = vmatprep.subr.bf16.mxu0 0
  %1367 = vmatpush1.bf16.msra.mxu0 0
  %1368 = vmatprep.mubr.bf16.mxu0 0
  %1369 = vmatmul.mubr.bf16.gmra.mrb[0].mxu0 %v1334
  %v1370 = vpop.f32.mrb[0].mxu0
  %v1371 = vadd.f32 0.0, %v1370
  %v1372 = vpop.f32.mrb[0].mxu0
  %v1373 = vpop.f32.mrb[0].mxu0
  %v1374 = vpop.f32.mrb[0].mxu0
  %1375 = vdwg.mxu0
  %v1376 = vpack.c.bf16 %v1371, %v1371
  %s1377 = scalar_lea.vmem %s10, 12
  %v1378 = vld [vmem:[%s1377] sm:$0xf]
  %v1380 = vsel %vm1236, %v1378, 0
  %1382 = vmatprep.subr.bf16.mxu0 0
  %1383 = vmatpush1.bf16.msra.mxu0 %v1242
  %1384 = vmatprep.subr.bf16.mxu0 0
  %1385 = vmatpush1.bf16.msra.mxu0 0
  %1386 = vmatprep.subr.bf16.mxu0 0
  %1387 = vmatpush1.bf16.msra.mxu0 0
  %1388 = vmatprep.subr.bf16.mxu0 0
  %1389 = vmatpush1.bf16.msra.mxu0 0
  %1390 = vmatprep.subr.bf16.mxu0 0
  %1391 = vmatpush1.bf16.msra.mxu0 0
  %1392 = vmatprep.subr.bf16.mxu0 0
  %1393 = vmatpush1.bf16.msra.mxu0 0
  %1394 = vmatprep.subr.bf16.mxu0 0
  %1395 = vmatpush1.bf16.msra.mxu0 0
  %1396 = vmatprep.subr.bf16.mxu0 0
  %1397 = vmatpush1.bf16.msra.mxu0 0
  %1398 = vmatprep.subr.bf16.mxu0 0
  %1399 = vmatpush1.bf16.msra.mxu0 0
  %1400 = vmatprep.subr.bf16.mxu0 0
  %1401 = vmatpush1.bf16.msra.mxu0 0
  %1402 = vmatprep.subr.bf16.mxu0 0
  %1403 = vmatpush1.bf16.msra.mxu0 0
  %1404 = vmatprep.subr.bf16.mxu0 0
  %1405 = vmatpush1.bf16.msra.mxu0 0
  %1406 = vmatprep.subr.bf16.mxu0 0
  %1407 = vmatpush1.bf16.msra.mxu0 0
  %1408 = vmatprep.subr.bf16.mxu0 0
  %1409 = vmatpush1.bf16.msra.mxu0 0
  %1410 = vmatprep.subr.bf16.mxu0 0
  %1411 = vmatpush1.bf16.msra.mxu0 0
  %1412 = vmatprep.subr.bf16.mxu0 0
  %1413 = vmatpush1.bf16.msra.mxu0 0
  %1414 = vmatprep.mubr.bf16.mxu0 0
  %1415 = vmatmul.mubr.bf16.gmra.mrb[0].mxu0 %v1380
  %v1416 = vpop.f32.mrb[0].mxu0
  %v1417 = vadd.f32 0.0, %v1416
  %v1418 = vpop.f32.mrb[0].mxu0
  %v1419 = vpop.f32.mrb[0].mxu0
  %v1420 = vpop.f32.mrb[0].mxu0
  %1421 = vdwg.mxu0
  %v1422 = vpack.c.bf16 %v1417, %v1417
  %1424 = vrot.lane.b32.xlu0 %v1330, 32
  %v1425 = vpop.permute.xlu0 %1424
  %1427 = vrot.lane.b32.xlu0 %v1376, 64
  %v1428 = vpop.permute.xlu0 %1427
  %1430 = vrot.lane.b32.xlu0 %v1422, 96
  %v1431 = vpop.permute.xlu0 %1430
  %v1434 = vsel %vm76, %v1284, %v1425
  %v1436 = vsel %vm287, %v1434, %v1428
  %vm1437 = vcmask 785408
  %v1439 = vsel %vm1437, %v1436, %v1431
  %v1441 = vld [vmem:[%s11] sm:$0xf]
  %v1442 = vld [vmem:[%s11 + $0x4] sm:$0xf]
  %v1443 = vld [vmem:[%s11 + $0x8] sm:$0xf]
  %v1444 = vld [vmem:[%s11 + $0xc] sm:$0xf]
  %v1445 = vld [vmem:[%s11 + $0x10] sm:$0xf]
  %v1446 = vld [vmem:[%s11 + $0x14] sm:$0xf]
  %v1447 = vld [vmem:[%s11 + $0x18] sm:$0xf]
  %v1448 = vld [vmem:[%s11 + $0x1c] sm:$0xf]
  %v1449 = vld [vmem:[%s11 + $0x20] sm:$0xf]
  %v1450 = vld [vmem:[%s11 + $0x24] sm:$0xf]
  %v1451 = vld [vmem:[%s11 + $0x28] sm:$0xf]
  %v1452 = vld [vmem:[%s11 + $0x2c] sm:$0xf]
  %v1453 = vld [vmem:[%s11 + $0x30] sm:$0xf]
  %v1454 = vld [vmem:[%s11 + $0x34] sm:$0xf]
  %v1455 = vld [vmem:[%s11 + $0x38] sm:$0xf]
  %v1456 = vld [vmem:[%s11 + $0x3c] sm:$0xf]
  %v1457 = vld [vmem:[%s12] sm:$0x1]
  %v1459 = vlaneseq
  %v1460 = vshrl.u32 %v1459, 7
  %v1461 = vsub.s32 0, %v1460
  %v1462 = vrot.slane %v1457, %v1461
  %v1480 = vunpack.c.l.b16 %v1441
  %v1481 = vunpack.c.l.b16 %v1442
  %v1482 = vunpack.c.l.b16 %v1443
  %v1483 = vunpack.c.l.b16 %v1444
  %v1484 = vunpack.c.l.b16 %v1445
  %v1485 = vunpack.c.l.b16 %v1446
  %v1486 = vunpack.c.l.b16 %v1447
  %v1487 = vunpack.c.l.b16 %v1448
  %v1488 = vunpack.c.l.b16 %v1449
  %v1489 = vunpack.c.l.b16 %v1450
  %v1490 = vunpack.c.l.b16 %v1451
  %v1491 = vunpack.c.l.b16 %v1452
  %v1492 = vunpack.c.l.b16 %v1453
  %v1493 = vunpack.c.l.b16 %v1454
  %v1494 = vunpack.c.l.b16 %v1455
  %v1495 = vunpack.c.l.b16 %v1456
  %v1496 = vpack.c.b16 %v1481, %v1480
  %v1497 = vpack.c.b16 %v1483, %v1482
  %v1498 = vpack.c.b16 %v1485, %v1484
  %v1499 = vpack.c.b16 %v1487, %v1486
  %v1500 = vpack.c.b16 %v1489, %v1488
  %v1501 = vpack.c.b16 %v1491, %v1490
  %v1502 = vpack.c.b16 %v1493, %v1492
  %v1503 = vpack.c.b16 %v1495, %v1494
  %1512 = vmatprep.subr.bf16.mxu0 0
  %1513 = vmatpush1.bf16.msra.mxu0 %v1496
  %1514 = vmatprep.subr.bf16.mxu0 0
  %1515 = vmatpush1.bf16.msra.mxu0 %v1497
  %1516 = vmatprep.subr.bf16.mxu0 0
  %1517 = vmatpush1.bf16.msra.mxu0 %v1498
  %1518 = vmatprep.subr.bf16.mxu0 0
  %1519 = vmatpush1.bf16.msra.mxu0 %v1499
  %1520 = vmatprep.subr.bf16.mxu0 0
  %1521 = vmatpush1.bf16.msra.mxu0 %v1500
  %1522 = vmatprep.subr.bf16.mxu0 0
  %1523 = vmatpush1.bf16.msra.mxu0 %v1501
  %1524 = vmatprep.subr.bf16.mxu0 0
  %1525 = vmatpush1.bf16.msra.mxu0 %v1502
  %1526 = vmatprep.subr.bf16.mxu0 0
  %1527 = vmatpush1.bf16.msra.mxu0 %v1503
  %1528 = vmatprep.subr.bf16.mxu0 0
  %1529 = vmatpush1.bf16.msra.mxu0 0
  %1530 = vmatprep.subr.bf16.mxu0 0
  %1531 = vmatpush1.bf16.msra.mxu0 0
  %1532 = vmatprep.subr.bf16.mxu0 0
  %1533 = vmatpush1.bf16.msra.mxu0 0
  %1534 = vmatprep.subr.bf16.mxu0 0
  %1535 = vmatpush1.bf16.msra.mxu0 0
  %1536 = vmatprep.subr.bf16.mxu0 0
  %1537 = vmatpush1.bf16.msra.mxu0 0
  %1538 = vmatprep.subr.bf16.mxu0 0
  %1539 = vmatpush1.bf16.msra.mxu0 0
  %1540 = vmatprep.subr.bf16.mxu0 0
  %1541 = vmatpush1.bf16.msra.mxu0 0
  %1542 = vmatprep.subr.bf16.mxu0 0
  %1543 = vmatpush1.bf16.msra.mxu0 0
  %1544 = vmatprep.mubr.bf16.mxu0 0
  %1545 = vmatmul.mubr.bf16.gmra.mrb[0].mxu0 %v1439
  %v1546 = vpop.f32.mrb[0].mxu0
  %v1547 = vadd.f32 %v1462, %v1546
  %v1548 = vpop.f32.mrb[0].mxu0
  %v1549 = vpop.f32.mrb[0].mxu0
  %v1550 = vpop.f32.mrb[0].mxu0
  %1551 = vdwg.mxu0
  %v1552 = vmax.f32 %v1547, 0.0
  %v1553 = vpack.c.bf16 %v1552, %v1552
  %v1554 = vld [vmem:[%s13] sm:$0xf]
  %v1555 = vld [vmem:[%s13 + $0x4] sm:$0xf]
  %v1558 = vunpack.c.l.b16 %v1554
  %v1559 = vunpack.c.l.b16 %v1555
  %v1560 = vpack.c.b16 %v1559, %v1558
  %v1562 = vsel %vm857, %v1560, 0
  %1564 = vmatprep.subr.bf16.mxu0 0
  %1565 = vmatpush1.bf16.msra.mxu0 %v863
  %1566 = vmatprep.subr.bf16.mxu0 0
  %1567 = vmatpush1.bf16.msra.mxu0 0
  %1568 = vmatprep.subr.bf16.mxu0 0
  %1569 = vmatpush1.bf16.msra.mxu0 0
  %1570 = vmatprep.subr.bf16.mxu0 0
  %1571 = vmatpush1.bf16.msra.mxu0 0
  %1572 = vmatprep.subr.bf16.mxu0 0
  %1573 = vmatpush1.bf16.msra.mxu0 0
  %1574 = vmatprep.subr.bf16.mxu0 0
  %1575 = vmatpush1.bf16.msra.mxu0 0
  %1576 = vmatprep.subr.bf16.mxu0 0
  %1577 = vmatpush1.bf16.msra.mxu0 0
  %1578 = vmatprep.subr.bf16.mxu0 0
  %1579 = vmatpush1.bf16.msra.mxu0 0
  %1580 = vmatprep.subr.bf16.mxu0 0
  %1581 = vmatpush1.bf16.msra.mxu0 0
  %1582 = vmatprep.subr.bf16.mxu0 0
  %1583 = vmatpush1.bf16.msra.mxu0 0
  %1584 = vmatprep.subr.bf16.mxu0 0
  %1585 = vmatpush1.bf16.msra.mxu0 0
  %1586 = vmatprep.subr.bf16.mxu0 0
  %1587 = vmatpush1.bf16.msra.mxu0 0
  %1588 = vmatprep.subr.bf16.mxu0 0
  %1589 = vmatpush1.bf16.msra.mxu0 0
  %1590 = vmatprep.subr.bf16.mxu0 0
  %1591 = vmatpush1.bf16.msra.mxu0 0
  %1592 = vmatprep.subr.bf16.mxu0 0
  %1593 = vmatpush1.bf16.msra.mxu0 0
  %1594 = vmatprep.subr.bf16.mxu0 0
  %1595 = vmatpush1.bf16.msra.mxu0 0
  %1596 = vmatprep.mubr.bf16.mxu0 0
  %1597 = vmatmul.mubr.bf16.gmra.mrb[0].mxu0 %v1562
  %v1598 = vpop.f32.mrb[0].mxu0
  %v1599 = vadd.f32 0.0, %v1598
  %v1600 = vpop.f32.mrb[0].mxu0
  %v1601 = vpop.f32.mrb[0].mxu0
  %v1602 = vadd.f32 0.0, %v1601
  %v1603 = vpop.f32.mrb[0].mxu0
  %1604 = vdwg.mxu0
  %v1605 = vpack.c.bf16 %v1602, %v1599
  %s1606 = scalar_lea.vmem %s13, 8
  %v1607 = vld [vmem:[%s1606] sm:$0xf]
  %v1608 = vld [vmem:[%s1606 + $0x4] sm:$0xf]
  %v1611 = vunpack.c.l.b16 %v1607
  %v1612 = vunpack.c.l.b16 %v1608
  %v1613 = vpack.c.b16 %v1612, %v1611
  %v1615 = vsel %vm857, %v1613, 0
  %1617 = vmatprep.subr.bf16.mxu0 0
  %1618 = vmatpush1.bf16.msra.mxu0 %v863
  %1619 = vmatprep.subr.bf16.mxu0 0
  %1620 = vmatpush1.bf16.msra.mxu0 0
  %1621 = vmatprep.subr.bf16.mxu0 0
  %1622 = vmatpush1.bf16.msra.mxu0 0
  %1623 = vmatprep.subr.bf16.mxu0 0
  %1624 = vmatpush1.bf16.msra.mxu0 0
  %1625 = vmatprep.subr.bf16.mxu0 0
  %1626 = vmatpush1.bf16.msra.mxu0 0
  %1627 = vmatprep.subr.bf16.mxu0 0
  %1628 = vmatpush1.bf16.msra.mxu0 0
  %1629 = vmatprep.subr.bf16.mxu0 0
  %1630 = vmatpush1.bf16.msra.mxu0 0
  %1631 = vmatprep.subr.bf16.mxu0 0
  %1632 = vmatpush1.bf16.msra.mxu0 0
  %1633 = vmatprep.subr.bf16.mxu0 0
  %1634 = vmatpush1.bf16.msra.mxu0 0
  %1635 = vmatprep.subr.bf16.mxu0 0
  %1636 = vmatpush1.bf16.msra.mxu0 0
  %1637 = vmatprep.subr.bf16.mxu0 0
  %1638 = vmatpush1.bf16.msra.mxu0 0
  %1639 = vmatprep.subr.bf16.mxu0 0
  %1640 = vmatpush1.bf16.msra.mxu0 0
  %1641 = vmatprep.subr.bf16.mxu0 0
  %1642 = vmatpush1.bf16.msra.mxu0 0
  %1643 = vmatprep.subr.bf16.mxu0 0
  %1644 = vmatpush1.bf16.msra.mxu0 0
  %1645 = vmatprep.subr.bf16.mxu0 0
  %1646 = vmatpush1.bf16.msra.mxu0 0
  %1647 = vmatprep.subr.bf16.mxu0 0
  %1648 = vmatpush1.bf16.msra.mxu0 0
  %1649 = vmatprep.mubr.bf16.mxu0 0
  %1650 = vmatmul.mubr.bf16.gmra.mrb[0].mxu0 %v1615
  %v1651 = vpop.f32.mrb[0].mxu0
  %v1652 = vadd.f32 0.0, %v1651
  %v1653 = vpop.f32.mrb[0].mxu0
  %v1654 = vpop.f32.mrb[0].mxu0
  %v1655 = vadd.f32 0.0, %v1654
  %v1656 = vpop.f32.mrb[0].mxu0
  %1657 = vdwg.mxu0
  %v1658 = vpack.c.bf16 %v1655, %v1652
  %s1659 = scalar_lea.vmem %s13, 16
  %v1660 = vld [vmem:[%s1659] sm:$0xf]
  %v1661 = vld [vmem:[%s1659 + $0x4] sm:$0xf]
  %v1664 = vunpack.c.l.b16 %v1660
  %v1665 = vunpack.c.l.b16 %v1661
  %v1666 = vpack.c.b16 %v1665, %v1664
  %v1668 = vsel %vm857, %v1666, 0
  %1670 = vmatprep.subr.bf16.mxu0 0
  %1671 = vmatpush1.bf16.msra.mxu0 %v863
  %1672 = vmatprep.subr.bf16.mxu0 0
  %1673 = vmatpush1.bf16.msra.mxu0 0
  %1674 = vmatprep.subr.bf16.mxu0 0
  %1675 = vmatpush1.bf16.msra.mxu0 0
  %1676 = vmatprep.subr.bf16.mxu0 0
  %1677 = vmatpush1.bf16.msra.mxu0 0
  %1678 = vmatprep.subr.bf16.mxu0 0
  %1679 = vmatpush1.bf16.msra.mxu0 0
  %1680 = vmatprep.subr.bf16.mxu0 0
  %1681 = vmatpush1.bf16.msra.mxu0 0
  %1682 = vmatprep.subr.bf16.mxu0 0
  %1683 = vmatpush1.bf16.msra.mxu0 0
  %1684 = vmatprep.subr.bf16.mxu0 0
  %1685 = vmatpush1.bf16.msra.mxu0 0
  %1686 = vmatprep.subr.bf16.mxu0 0
  %1687 = vmatpush1.bf16.msra.mxu0 0
  %1688 = vmatprep.subr.bf16.mxu0 0
  %1689 = vmatpush1.bf16.msra.mxu0 0
  %1690 = vmatprep.subr.bf16.mxu0 0
  %1691 = vmatpush1.bf16.msra.mxu0 0
  %1692 = vmatprep.subr.bf16.mxu0 0
  %1693 = vmatpush1.bf16.msra.mxu0 0
  %1694 = vmatprep.subr.bf16.mxu0 0
  %1695 = vmatpush1.bf16.msra.mxu0 0
  %1696 = vmatprep.subr.bf16.mxu0 0
  %1697 = vmatpush1.bf16.msra.mxu0 0
  %1698 = vmatprep.subr.bf16.mxu0 0
  %1699 = vmatpush1.bf16.msra.mxu0 0
  %1700 = vmatprep.subr.bf16.mxu0 0
  %1701 = vmatpush1.bf16.msra.mxu0 0
  %1702 = vmatprep.mubr.bf16.mxu0 0
  %1703 = vmatmul.mubr.bf16.gmra.mrb[0].mxu0 %v1668
  %v1704 = vpop.f32.mrb[0].mxu0
  %v1705 = vadd.f32 0.0, %v1704
  %v1706 = vpop.f32.mrb[0].mxu0
  %v1707 = vpop.f32.mrb[0].mxu0
  %v1708 = vadd.f32 0.0, %v1707
  %v1709 = vpop.f32.mrb[0].mxu0
  %1710 = vdwg.mxu0
  %v1711 = vpack.c.bf16 %v1708, %v1705
  %s1712 = scalar_lea.vmem %s13, 24
  %v1713 = vld [vmem:[%s1712] sm:$0xf]
  %v1714 = vld [vmem:[%s1712 + $0x4] sm:$0xf]
  %v1717 = vunpack.c.l.b16 %v1713
  %v1718 = vunpack.c.l.b16 %v1714
  %v1719 = vpack.c.b16 %v1718, %v1717
  %v1721 = vsel %vm857, %v1719, 0
  %1723 = vmatprep.subr.bf16.mxu0 0
  %1724 = vmatpush1.bf16.msra.mxu0 %v863
  %1725 = vmatprep.subr.bf16.mxu0 0
  %1726 = vmatpush1.bf16.msra.mxu0 0
  %1727 = vmatprep.subr.bf16.mxu0 0
  %1728 = vmatpush1.bf16.msra.mxu0 0
  %1729 = vmatprep.subr.bf16.mxu0 0
  %1730 = vmatpush1.bf16.msra.mxu0 0
  %1731 = vmatprep.subr.bf16.mxu0 0
  %1732 = vmatpush1.bf16.msra.mxu0 0
  %1733 = vmatprep.subr.bf16.mxu0 0
  %1734 = vmatpush1.bf16.msra.mxu0 0
  %1735 = vmatprep.subr.bf16.mxu0 0
  %1736 = vmatpush1.bf16.msra.mxu0 0
  %1737 = vmatprep.subr.bf16.mxu0 0
  %1738 = vmatpush1.bf16.msra.mxu0 0
  %1739 = vmatprep.subr.bf16.mxu0 0
  %1740 = vmatpush1.bf16.msra.mxu0 0
  %1741 = vmatprep.subr.bf16.mxu0 0
  %1742 = vmatpush1.bf16.msra.mxu0 0
  %1743 = vmatprep.subr.bf16.mxu0 0
  %1744 = vmatpush1.bf16.msra.mxu0 0
  %1745 = vmatprep.subr.bf16.mxu0 0
  %1746 = vmatpush1.bf16.msra.mxu0 0
  %1747 = vmatprep.subr.bf16.mxu0 0
  %1748 = vmatpush1.bf16.msra.mxu0 0
  %1749 = vmatprep.subr.bf16.mxu0 0
  %1750 = vmatpush1.bf16.msra.mxu0 0
  %1751 = vmatprep.subr.bf16.mxu0 0
  %1752 = vmatpush1.bf16.msra.mxu0 0
  %1753 = vmatprep.subr.bf16.mxu0 0
  %1754 = vmatpush1.bf16.msra.mxu0 0
  %1755 = vmatprep.mubr.bf16.mxu0 0
  %1756 = vmatmul.mubr.bf16.gmra.mrb[0].mxu0 %v1721
  %v1757 = vpop.f32.mrb[0].mxu0
  %v1758 = vadd.f32 0.0, %v1757
  %v1759 = vpop.f32.mrb[0].mxu0
  %v1760 = vpop.f32.mrb[0].mxu0
  %v1761 = vadd.f32 0.0, %v1760
  %v1762 = vpop.f32.mrb[0].mxu0
  %1763 = vdwg.mxu0
  %v1764 = vpack.c.bf16 %v1761, %v1758
  %v1766 = vsel %vm861, %v1553, 0
  %1768 = vmatprep.subr.bf16.mxu0 0
  %1769 = vmatpush1.bf16.msra.mxu0 %v1766
  %1770 = vmatprep.subr.bf16.mxu0 0
  %1771 = vmatpush1.bf16.msra.mxu0 0
  %1772 = vmatprep.subr.bf16.mxu0 0
  %1773 = vmatpush1.bf16.msra.mxu0 0
  %1774 = vmatprep.subr.bf16.mxu0 0
  %1775 = vmatpush1.bf16.msra.mxu0 0
  %1776 = vmatprep.subr.bf16.mxu0 0
  %1777 = vmatpush1.bf16.msra.mxu0 0
  %1778 = vmatprep.subr.bf16.mxu0 0
  %1779 = vmatpush1.bf16.msra.mxu0 0
  %1780 = vmatprep.subr.bf16.mxu0 0
  %1781 = vmatpush1.bf16.msra.mxu0 0
  %1782 = vmatprep.subr.bf16.mxu0 0
  %1783 = vmatpush1.bf16.msra.mxu0 0
  %1784 = vmatprep.subr.bf16.mxu0 0
  %1785 = vmatpush1.bf16.msra.mxu0 0
  %1786 = vmatprep.subr.bf16.mxu0 0
  %1787 = vmatpush1.bf16.msra.mxu0 0
  %1788 = vmatprep.subr.bf16.mxu0 0
  %1789 = vmatpush1.bf16.msra.mxu0 0
  %1790 = vmatprep.subr.bf16.mxu0 0
  %1791 = vmatpush1.bf16.msra.mxu0 0
  %1792 = vmatprep.subr.bf16.mxu0 0
  %1793 = vmatpush1.bf16.msra.mxu0 0
  %1794 = vmatprep.subr.bf16.mxu0 0
  %1795 = vmatpush1.bf16.msra.mxu0 0
  %1796 = vmatprep.subr.bf16.mxu0 0
  %1797 = vmatpush1.bf16.msra.mxu0 0
  %1798 = vmatprep.subr.bf16.mxu0 0
  %1799 = vmatpush1.bf16.msra.mxu0 0
  %1800 = vmatprep.mubr.bf16.mxu0 0
  %1801 = vmatmul.mubr.bf16.gmra.mrb[0].mxu0 %v1562
  %v1802 = vpop.f32.mrb[0].mxu0
  %v1803 = vadd.f32 0.0, %v1802
  %v1804 = vpop.f32.mrb[0].mxu0
  %v1805 = vpop.f32.mrb[0].mxu0
  %v1806 = vadd.f32 0.0, %v1805
  %v1807 = vpop.f32.mrb[0].mxu0
  %1808 = vdwg.mxu0
  %v1809 = vpack.c.bf16 %v1806, %v1803
  %1810 = vmatprep.subr.bf16.mxu0 0
  %1811 = vmatpush1.bf16.msra.mxu0 %v1766
  %1812 = vmatprep.subr.bf16.mxu0 0
  %1813 = vmatpush1.bf16.msra.mxu0 0
  %1814 = vmatprep.subr.bf16.mxu0 0
  %1815 = vmatpush1.bf16.msra.mxu0 0
  %1816 = vmatprep.subr.bf16.mxu0 0
  %1817 = vmatpush1.bf16.msra.mxu0 0
  %1818 = vmatprep.subr.bf16.mxu0 0
  %1819 = vmatpush1.bf16.msra.mxu0 0
  %1820 = vmatprep.subr.bf16.mxu0 0
  %1821 = vmatpush1.bf16.msra.mxu0 0
  %1822 = vmatprep.subr.bf16.mxu0 0
  %1823 = vmatpush1.bf16.msra.mxu0 0
  %1824 = vmatprep.subr.bf16.mxu0 0
  %1825 = vmatpush1.bf16.msra.mxu0 0
  %1826 = vmatprep.subr.bf16.mxu0 0
  %1827 = vmatpush1.bf16.msra.mxu0 0
  %1828 = vmatprep.subr.bf16.mxu0 0
  %1829 = vmatpush1.bf16.msra.mxu0 0
  %1830 = vmatprep.subr.bf16.mxu0 0
  %1831 = vmatpush1.bf16.msra.mxu0 0
  %1832 = vmatprep.subr.bf16.mxu0 0
  %1833 = vmatpush1.bf16.msra.mxu0 0
  %1834 = vmatprep.subr.bf16.mxu0 0
  %1835 = vmatpush1.bf16.msra.mxu0 0
  %1836 = vmatprep.subr.bf16.mxu0 0
  %1837 = vmatpush1.bf16.msra.mxu0 0
  %1838 = vmatprep.subr.bf16.mxu0 0
  %1839 = vmatpush1.bf16.msra.mxu0 0
  %1840 = vmatprep.subr.bf16.mxu0 0
  %1841 = vmatpush1.bf16.msra.mxu0 0
  %1842 = vmatprep.mubr.bf16.mxu0 0
  %1843 = vmatmul.mubr.bf16.gmra.mrb[0].mxu0 %v1615
  %v1844 = vpop.f32.mrb[0].mxu0
  %v1845 = vadd.f32 0.0, %v1844
  %v1846 = vpop.f32.mrb[0].mxu0
  %v1847 = vpop.f32.mrb[0].mxu0
  %v1848 = vadd.f32 0.0, %v1847
  %v1849 = vpop.f32.mrb[0].mxu0
  %1850 = vdwg.mxu0
  %v1851 = vpack.c.bf16 %v1848, %v1845
  %1852 = vmatprep.subr.bf16.mxu0 0
  %1853 = vmatpush1.bf16.msra.mxu0 %v1766
  %1854 = vmatprep.subr.bf16.mxu0 0
  %1855 = vmatpush1.bf16.msra.mxu0 0
  %1856 = vmatprep.subr.bf16.mxu0 0
  %1857 = vmatpush1.bf16.msra.mxu0 0
  %1858 = vmatprep.subr.bf16.mxu0 0
  %1859 = vmatpush1.bf16.msra.mxu0 0
  %1860 = vmatprep.subr.bf16.mxu0 0
  %1861 = vmatpush1.bf16.msra.mxu0 0
  %1862 = vmatprep.subr.bf16.mxu0 0
  %1863 = vmatpush1.bf16.msra.mxu0 0
  %1864 = vmatprep.subr.bf16.mxu0 0
  %1865 = vmatpush1.bf16.msra.mxu0 0
  %1866 = vmatprep.subr.bf16.mxu0 0
  %1867 = vmatpush1.bf16.msra.mxu0 0
  %1868 = vmatprep.subr.bf16.mxu0 0
  %1869 = vmatpush1.bf16.msra.mxu0 0
  %1870 = vmatprep.subr.bf16.mxu0 0
  %1871 = vmatpush1.bf16.msra.mxu0 0
  %1872 = vmatprep.subr.bf16.mxu0 0
  %1873 = vmatpush1.bf16.msra.mxu0 0
  %1874 = vmatprep.subr.bf16.mxu0 0
  %1875 = vmatpush1.bf16.msra.mxu0 0
  %1876 = vmatprep.subr.bf16.mxu0 0
  %1877 = vmatpush1.bf16.msra.mxu0 0
  %1878 = vmatprep.subr.bf16.mxu0 0
  %1879 = vmatpush1.bf16.msra.mxu0 0
  %1880 = vmatprep.subr.bf16.mxu0 0
  %1881 = vmatpush1.bf16.msra.mxu0 0
  %1882 = vmatprep.subr.bf16.mxu0 0
  %1883 = vmatpush1.bf16.msra.mxu0 0
  %1884 = vmatprep.mubr.bf16.mxu0 0
  %1885 = vmatmul.mubr.bf16.gmra.mrb[0].mxu0 %v1668
  %v1886 = vpop.f32.mrb[0].mxu0
  %v1887 = vadd.f32 0.0, %v1886
  %v1888 = vpop.f32.mrb[0].mxu0
  %v1889 = vpop.f32.mrb[0].mxu0
  %v1890 = vadd.f32 0.0, %v1889
  %v1891 = vpop.f32.mrb[0].mxu0
  %1892 = vdwg.mxu0
  %v1893 = vpack.c.bf16 %v1890, %v1887
  %1894 = vmatprep.subr.bf16.mxu0 0
  %1895 = vmatpush1.bf16.msra.mxu0 %v1766
  %1896 = vmatprep.subr.bf16.mxu0 0
  %1897 = vmatpush1.bf16.msra.mxu0 0
  %1898 = vmatprep.subr.bf16.mxu0 0
  %1899 = vmatpush1.bf16.msra.mxu0 0
  %1900 = vmatprep.subr.bf16.mxu0 0
  %1901 = vmatpush1.bf16.msra.mxu0 0
  %1902 = vmatprep.subr.bf16.mxu0 0
  %1903 = vmatpush1.bf16.msra.mxu0 0
  %1904 = vmatprep.subr.bf16.mxu0 0
  %1905 = vmatpush1.bf16.msra.mxu0 0
  %1906 = vmatprep.subr.bf16.mxu0 0
  %1907 = vmatpush1.bf16.msra.mxu0 0
  %1908 = vmatprep.subr.bf16.mxu0 0
  %1909 = vmatpush1.bf16.msra.mxu0 0
  %1910 = vmatprep.subr.bf16.mxu0 0
  %1911 = vmatpush1.bf16.msra.mxu0 0
  %1912 = vmatprep.subr.bf16.mxu0 0
  %1913 = vmatpush1.bf16.msra.mxu0 0
  %1914 = vmatprep.subr.bf16.mxu0 0
  %1915 = vmatpush1.bf16.msra.mxu0 0
  %1916 = vmatprep.subr.bf16.mxu0 0
  %1917 = vmatpush1.bf16.msra.mxu0 0
  %1918 = vmatprep.subr.bf16.mxu0 0
  %1919 = vmatpush1.bf16.msra.mxu0 0
  %1920 = vmatprep.subr.bf16.mxu0 0
  %1921 = vmatpush1.bf16.msra.mxu0 0
  %1922 = vmatprep.subr.bf16.mxu0 0
  %1923 = vmatpush1.bf16.msra.mxu0 0
  %1924 = vmatprep.subr.bf16.mxu0 0
  %1925 = vmatpush1.bf16.msra.mxu0 0
  %1926 = vmatprep.mubr.bf16.mxu0 0
  %1927 = vmatmul.mubr.bf16.gmra.mrb[0].mxu0 %v1721
  %v1928 = vpop.f32.mrb[0].mxu0
  %v1929 = vadd.f32 0.0, %v1928
  %v1930 = vpop.f32.mrb[0].mxu0
  %v1931 = vpop.f32.mrb[0].mxu0
  %v1932 = vadd.f32 0.0, %v1931
  %v1933 = vpop.f32.mrb[0].mxu0
  %1934 = vdwg.mxu0
  %v1935 = vpack.c.bf16 %v1932, %v1929
  %1937 = vrot.lane.b32.xlu0 %v1658, 64
  %v1938 = vpop.permute.xlu0 %1937
  %1940 = vrot.lane.b32.xlu0 %v1764, 64
  %v1941 = vpop.permute.xlu0 %1940
  %1943 = vrot.lane.b32.xlu0 %v1851, 64
  %v1944 = vpop.permute.xlu0 %1943
  %1946 = vrot.lane.b32.xlu0 %v1935, 64
  %v1947 = vpop.permute.xlu0 %1946
  %v1950 = vsel %vm287, %v1605, %v1938
  %v1954 = vsel %vm287, %v1711, %v1941
  %v1958 = vsel %vm287, %v1809, %v1944
  %v1962 = vsel %vm287, %v1893, %v1947
  %v1964 = vld [vmem:[%s14] sm:$0xf]
  %v1965 = vld [vmem:[%s14 + $0x4] sm:$0xf]
  %v1966 = vld [vmem:[%s14 + $0x8] sm:$0xf]
  %v1967 = vld [vmem:[%s14 + $0xc] sm:$0xf]
  %v1968 = vld [vmem:[%s14 + $0x10] sm:$0xf]
  %v1969 = vld [vmem:[%s14 + $0x14] sm:$0xf]
  %v1970 = vld [vmem:[%s14 + $0x18] sm:$0xf]
  %v1971 = vld [vmem:[%s14 + $0x1c] sm:$0xf]
  %v1972 = vld [vmem:[%s14 + $0x20] sm:$0xf]
  %v1973 = vld [vmem:[%s14 + $0x24] sm:$0xf]
  %v1974 = vld [vmem:[%s14 + $0x28] sm:$0xf]
  %v1975 = vld [vmem:[%s14 + $0x2c] sm:$0xf]
  %v1976 = vld [vmem:[%s14 + $0x30] sm:$0xf]
  %v1977 = vld [vmem:[%s14 + $0x34] sm:$0xf]
  %v1978 = vld [vmem:[%s14 + $0x38] sm:$0xf]
  %v1979 = vld [vmem:[%s14 + $0x3c] sm:$0xf]
  %v1980 = vld [vmem:[%s14 + $0x40] sm:$0xf]
  %v1981 = vld [vmem:[%s14 + $0x44] sm:$0xf]
  %v1982 = vld [vmem:[%s14 + $0x48] sm:$0xf]
  %v1983 = vld [vmem:[%s14 + $0x4c] sm:$0xf]
  %v1984 = vld [vmem:[%s14 + $0x50] sm:$0xf]
  %v1985 = vld [vmem:[%s14 + $0x54] sm:$0xf]
  %v1986 = vld [vmem:[%s14 + $0x58] sm:$0xf]
  %v1987 = vld [vmem:[%s14 + $0x5c] sm:$0xf]
  %v1988 = vld [vmem:[%s14 + $0x60] sm:$0xf]
  %v1989 = vld [vmem:[%s14 + $0x64] sm:$0xf]
  %v1990 = vld [vmem:[%s14 + $0x68] sm:$0xf]
  %v1991 = vld [vmem:[%s14 + $0x6c] sm:$0xf]
  %v1992 = vld [vmem:[%s14 + $0x70] sm:$0xf]
  %v1993 = vld [vmem:[%s14 + $0x74] sm:$0xf]
  %v1994 = vld [vmem:[%s14 + $0x78] sm:$0xf]
  %v1995 = vld [vmem:[%s14 + $0x7c] sm:$0xf]
  %v1996 = vld [vmem:[%s14 + $0x80] sm:$0xf]
  %v1997 = vld [vmem:[%s14 + $0x84] sm:$0xf]
  %v1998 = vld [vmem:[%s14 + $0x88] sm:$0xf]
  %v1999 = vld [vmem:[%s14 + $0x8c] sm:$0xf]
  %v2000 = vld [vmem:[%s14 + $0x90] sm:$0xf]
  %v2001 = vld [vmem:[%s14 + $0x94] sm:$0xf]
  %v2002 = vld [vmem:[%s14 + $0x98] sm:$0xf]
  %v2003 = vld [vmem:[%s14 + $0x9c] sm:$0xf]
  %v2004 = vld [vmem:[%s14 + $0xa0] sm:$0xf]
  %v2005 = vld [vmem:[%s14 + $0xa4] sm:$0xf]
  %v2006 = vld [vmem:[%s14 + $0xa8] sm:$0xf]
  %v2007 = vld [vmem:[%s14 + $0xac] sm:$0xf]
  %v2008 = vld [vmem:[%s14 + $0xb0] sm:$0xf]
  %v2009 = vld [vmem:[%s14 + $0xb4] sm:$0xf]
  %v2010 = vld [vmem:[%s14 + $0xb8] sm:$0xf]
  %v2011 = vld [vmem:[%s14 + $0xbc] sm:$0xf]
  %v2012 = vld [vmem:[%s14 + $0xc0] sm:$0xf]
  %v2013 = vld [vmem:[%s14 + $0xc4] sm:$0xf]
  %v2014 = vld [vmem:[%s14 + $0xc8] sm:$0xf]
  %v2015 = vld [vmem:[%s14 + $0xcc] sm:$0xf]
  %v2016 = vld [vmem:[%s14 + $0xd0] sm:$0xf]
  %v2017 = vld [vmem:[%s14 + $0xd4] sm:$0xf]
  %v2018 = vld [vmem:[%s14 + $0xd8] sm:$0xf]
  %v2019 = vld [vmem:[%s14 + $0xdc] sm:$0xf]
  %v2020 = vld [vmem:[%s14 + $0xe0] sm:$0xf]
  %v2021 = vld [vmem:[%s14 + $0xe4] sm:$0xf]
  %v2022 = vld [vmem:[%s14 + $0xe8] sm:$0xf]
  %v2023 = vld [vmem:[%s14 + $0xec] sm:$0xf]
  %v2024 = vld [vmem:[%s14 + $0xf0] sm:$0xf]
  %v2025 = vld [vmem:[%s14 + $0xf4] sm:$0xf]
  %v2026 = vld [vmem:[%s14 + $0xf8] sm:$0xf]
  %v2027 = vld [vmem:[%s14 + $0xfc] sm:$0xf]
  %v2028 = vld [vmem:[%s15] sm:$0x1]
  %v2030 = vlaneseq
  %v2031 = vshrl.u32 %v2030, 7
  %v2032 = vsub.s32 0, %v2031
  %v2033 = vrot.slane %v2028, %v2032
  %v2099 = vunpack.c.l.b16 %v1964
  %v2100 = vunpack.c.l.b16 %v1965
  %v2101 = vunpack.c.l.b16 %v1966
  %v2102 = vunpack.c.l.b16 %v1967
  %v2103 = vunpack.c.l.b16 %v1968
  %v2104 = vunpack.c.l.b16 %v1969
  %v2105 = vunpack.c.l.b16 %v1970
  %v2106 = vunpack.c.l.b16 %v1971
  %v2107 = vunpack.c.l.b16 %v1972
  %v2108 = vunpack.c.l.b16 %v1973
  %v2109 = vunpack.c.l.b16 %v1974
  %v2110 = vunpack.c.l.b16 %v1975
  %v2111 = vunpack.c.l.b16 %v1976
  %v2112 = vunpack.c.l.b16 %v1977
  %v2113 = vunpack.c.l.b16 %v1978
  %v2114 = vunpack.c.l.b16 %v1979
  %v2115 = vunpack.c.l.b16 %v1980
  %v2116 = vunpack.c.l.b16 %v1981
  %v2117 = vunpack.c.l.b16 %v1982
  %v2118 = vunpack.c.l.b16 %v1983
  %v2119 = vunpack.c.l.b16 %v1984
  %v2120 = vunpack.c.l.b16 %v1985
  %v2121 = vunpack.c.l.b16 %v1986
  %v2122 = vunpack.c.l.b16 %v1987
  %v2123 = vunpack.c.l.b16 %v1988
  %v2124 = vunpack.c.l.b16 %v1989
  %v2125 = vunpack.c.l.b16 %v1990
  %v2126 = vunpack.c.l.b16 %v1991
  %v2127 = vunpack.c.l.b16 %v1992
  %v2128 = vunpack.c.l.b16 %v1993
  %v2129 = vunpack.c.l.b16 %v1994
  %v2130 = vunpack.c.l.b16 %v1995
  %v2131 = vunpack.c.l.b16 %v1996
  %v2132 = vunpack.c.l.b16 %v1997
  %v2133 = vunpack.c.l.b16 %v1998
  %v2134 = vunpack.c.l.b16 %v1999
  %v2135 = vunpack.c.l.b16 %v2000
  %v2136 = vunpack.c.l.b16 %v2001
  %v2137 = vunpack.c.l.b16 %v2002
  %v2138 = vunpack.c.l.b16 %v2003
  %v2139 = vunpack.c.l.b16 %v2004
  %v2140 = vunpack.c.l.b16 %v2005
  %v2141 = vunpack.c.l.b16 %v2006
  %v2142 = vunpack.c.l.b16 %v2007
  %v2143 = vunpack.c.l.b16 %v2008
  %v2144 = vunpack.c.l.b16 %v2009
  %v2145 = vunpack.c.l.b16 %v2010
  %v2146 = vunpack.c.l.b16 %v2011
  %v2147 = vunpack.c.l.b16 %v2012
  %v2148 = vunpack.c.l.b16 %v2013
  %v2149 = vunpack.c.l.b16 %v2014
  %v2150 = vunpack.c.l.b16 %v2015
  %v2151 = vunpack.c.l.b16 %v2016
  %v2152 = vunpack.c.l.b16 %v2017
  %v2153 = vunpack.c.l.b16 %v2018
  %v2154 = vunpack.c.l.b16 %v2019
  %v2155 = vunpack.c.l.b16 %v2020
  %v2156 = vunpack.c.l.b16 %v2021
  %v2157 = vunpack.c.l.b16 %v2022
  %v2158 = vunpack.c.l.b16 %v2023
  %v2159 = vunpack.c.l.b16 %v2024
  %v2160 = vunpack.c.l.b16 %v2025
  %v2161 = vunpack.c.l.b16 %v2026
  %v2162 = vunpack.c.l.b16 %v2027
  %v2163 = vpack.c.b16 %v2100, %v2099
  %v2164 = vpack.c.b16 %v2102, %v2101
  %v2165 = vpack.c.b16 %v2104, %v2103
  %v2166 = vpack.c.b16 %v2106, %v2105
  %v2167 = vpack.c.b16 %v2108, %v2107
  %v2168 = vpack.c.b16 %v2110, %v2109
  %v2169 = vpack.c.b16 %v2112, %v2111
  %v2170 = vpack.c.b16 %v2114, %v2113
  %v2171 = vpack.c.b16 %v2116, %v2115
  %v2172 = vpack.c.b16 %v2118, %v2117
  %v2173 = vpack.c.b16 %v2120, %v2119
  %v2174 = vpack.c.b16 %v2122, %v2121
  %v2175 = vpack.c.b16 %v2124, %v2123
  %v2176 = vpack.c.b16 %v2126, %v2125
  %v2177 = vpack.c.b16 %v2128, %v2127
  %v2178 = vpack.c.b16 %v2130, %v2129
  %v2179 = vpack.c.b16 %v2132, %v2131
  %v2180 = vpack.c.b16 %v2134, %v2133
  %v2181 = vpack.c.b16 %v2136, %v2135
  %v2182 = vpack.c.b16 %v2138, %v2137
  %v2183 = vpack.c.b16 %v2140, %v2139
  %v2184 = vpack.c.b16 %v2142, %v2141
  %v2185 = vpack.c.b16 %v2144, %v2143
  %v2186 = vpack.c.b16 %v2146, %v2145
  %v2187 = vpack.c.b16 %v2148, %v2147
  %v2188 = vpack.c.b16 %v2150, %v2149
  %v2189 = vpack.c.b16 %v2152, %v2151
  %v2190 = vpack.c.b16 %v2154, %v2153
  %v2191 = vpack.c.b16 %v2156, %v2155
  %v2192 = vpack.c.b16 %v2158, %v2157
  %v2193 = vpack.c.b16 %v2160, %v2159
  %v2194 = vpack.c.b16 %v2162, %v2161
  %2227 = vmatprep.subr.bf16.mxu0 0
  %2228 = vmatpush1.bf16.msra.mxu0 %v2163
  %2229 = vmatprep.subr.bf16.mxu0 0
  %2230 = vmatpush1.bf16.msra.mxu0 %v2164
  %2231 = vmatprep.subr.bf16.mxu0 0
  %2232 = vmatpush1.bf16.msra.mxu0 %v2165
  %2233 = vmatprep.subr.bf16.mxu0 0
  %2234 = vmatpush1.bf16.msra.mxu0 %v2166
  %2235 = vmatprep.subr.bf16.mxu0 0
  %2236 = vmatpush1.bf16.msra.mxu0 %v2167
  %2237 = vmatprep.subr.bf16.mxu0 0
  %2238 = vmatpush1.bf16.msra.mxu0 %v2168
  %2239 = vmatprep.subr.bf16.mxu0 0
  %2240 = vmatpush1.bf16.msra.mxu0 %v2169
  %2241 = vmatprep.subr.bf16.mxu0 0
  %2242 = vmatpush1.bf16.msra.mxu0 %v2170
  %2243 = vmatprep.subr.bf16.mxu0 0
  %2244 = vmatpush1.bf16.msra.mxu0 %v2171
  %2245 = vmatprep.subr.bf16.mxu0 0
  %2246 = vmatpush1.bf16.msra.mxu0 %v2172
  %2247 = vmatprep.subr.bf16.mxu0 0
  %2248 = vmatpush1.bf16.msra.mxu0 %v2173
  %2249 = vmatprep.subr.bf16.mxu0 0
  %2250 = vmatpush1.bf16.msra.mxu0 %v2174
  %2251 = vmatprep.subr.bf16.mxu0 0
  %2252 = vmatpush1.bf16.msra.mxu0 %v2175
  %2253 = vmatprep.subr.bf16.mxu0 0
  %2254 = vmatpush1.bf16.msra.mxu0 %v2176
  %2255 = vmatprep.subr.bf16.mxu0 0
  %2256 = vmatpush1.bf16.msra.mxu0 %v2177
  %2257 = vmatprep.subr.bf16.mxu0 0
  %2258 = vmatpush1.bf16.msra.mxu0 %v2178
  %2259 = vmatprep.mubr.bf16.mxu0 %v1954
  %2260 = vmatmul.mubr.bf16.gmra.mrb[0].mxu0 %v1950
  %v2261 = vpop.f32.mrb[0].mxu0
  %v2262 = vadd.f32 %v2033, %v2261
  %v2263 = vpop.f32.mrb[0].mxu0
  %v2264 = vpop.f32.mrb[0].mxu0
  %v2265 = vadd.f32 %v2033, %v2264
  %v2266 = vpop.f32.mrb[0].mxu0
  %2267 = vdwg.mxu0
  %2268 = vmatprep.subr.bf16.mxu0 0
  %2269 = vmatpush1.bf16.msra.mxu0 %v2179
  %2270 = vmatprep.subr.bf16.mxu0 0
  %2271 = vmatpush1.bf16.msra.mxu0 %v2180
  %2272 = vmatprep.subr.bf16.mxu0 0
  %2273 = vmatpush1.bf16.msra.mxu0 %v2181
  %2274 = vmatprep.subr.bf16.mxu0 0
  %2275 = vmatpush1.bf16.msra.mxu0 %v2182
  %2276 = vmatprep.subr.bf16.mxu0 0
  %2277 = vmatpush1.bf16.msra.mxu0 %v2183
  %2278 = vmatprep.subr.bf16.mxu0 0
  %2279 = vmatpush1.bf16.msra.mxu0 %v2184
  %2280 = vmatprep.subr.bf16.mxu0 0
  %2281 = vmatpush1.bf16.msra.mxu0 %v2185
  %2282 = vmatprep.subr.bf16.mxu0 0
  %2283 = vmatpush1.bf16.msra.mxu0 %v2186
  %2284 = vmatprep.subr.bf16.mxu0 0
  %2285 = vmatpush1.bf16.msra.mxu0 %v2187
  %2286 = vmatprep.subr.bf16.mxu0 0
  %2287 = vmatpush1.bf16.msra.mxu0 %v2188
  %2288 = vmatprep.subr.bf16.mxu0 0
  %2289 = vmatpush1.bf16.msra.mxu0 %v2189
  %2290 = vmatprep.subr.bf16.mxu0 0
  %2291 = vmatpush1.bf16.msra.mxu0 %v2190
  %2292 = vmatprep.subr.bf16.mxu0 0
  %2293 = vmatpush1.bf16.msra.mxu0 %v2191
  %2294 = vmatprep.subr.bf16.mxu0 0
  %2295 = vmatpush1.bf16.msra.mxu0 %v2192
  %2296 = vmatprep.subr.bf16.mxu0 0
  %2297 = vmatpush1.bf16.msra.mxu0 %v2193
  %2298 = vmatprep.subr.bf16.mxu0 0
  %2299 = vmatpush1.bf16.msra.mxu0 %v2194
  %2300 = vmatprep.mubr.bf16.mxu0 %v1962
  %2301 = vmatmul.mubr.bf16.gmra.mrb[0].mxu0 %v1958
  %v2302 = vpop.f32.mrb[0].mxu0
  %v2303 = vadd.f32 %v2262, %v2302
  %v2304 = vpop.f32.mrb[0].mxu0
  %v2305 = vpop.f32.mrb[0].mxu0
  %v2306 = vadd.f32 %v2265, %v2305
  %v2307 = vpop.f32.mrb[0].mxu0
  %2308 = vdwg.mxu0
  %v2309 = vmax.f32 %v2303, 0.0
  %v2310 = vmax.f32 %v2306, 0.0
  %v2311 = vpack.c.bf16 %v2310, %v2309
  %v2312 = vld [vmem:[%s16] sm:$0xf]
  %v2313 = vld [vmem:[%s16 + $0x4] sm:$0xf]
  %v2314 = vld [vmem:[%s16 + $0x8] sm:$0xf]
  %v2315 = vld [vmem:[%s16 + $0xc] sm:$0xf]
  %v2320 = vunpack.c.l.b16 %v2312
  %v2321 = vunpack.c.l.b16 %v2313
  %v2322 = vunpack.c.l.b16 %v2314
  %v2323 = vunpack.c.l.b16 %v2315
  %v2324 = vpack.c.b16 %v2321, %v2320
  %v2325 = vpack.c.b16 %v2323, %v2322
  %v2327 = vsel %vm480, %v2324, 0
  %v2330 = vsel %vm480, %v2325, 0
  %2332 = vmatprep.subr.bf16.mxu0 0
  %2333 = vmatpush1.bf16.msra.mxu0 %v478
  %2334 = vmatprep.subr.bf16.mxu0 0
  %2335 = vmatpush1.bf16.msra.mxu0 0
  %2336 = vmatprep.subr.bf16.mxu0 0
  %2337 = vmatpush1.bf16.msra.mxu0 0
  %2338 = vmatprep.subr.bf16.mxu0 0
  %2339 = vmatpush1.bf16.msra.mxu0 0
  %2340 = vmatprep.subr.bf16.mxu0 0
  %2341 = vmatpush1.bf16.msra.mxu0 0
  %2342 = vmatprep.subr.bf16.mxu0 0
  %2343 = vmatpush1.bf16.msra.mxu0 0
  %2344 = vmatprep.subr.bf16.mxu0 0
  %2345 = vmatpush1.bf16.msra.mxu0 0
  %2346 = vmatprep.subr.bf16.mxu0 0
  %2347 = vmatpush1.bf16.msra.mxu0 0
  %2348 = vmatprep.subr.bf16.mxu0 0
  %2349 = vmatpush1.bf16.msra.mxu0 0
  %2350 = vmatprep.subr.bf16.mxu0 0
  %2351 = vmatpush1.bf16.msra.mxu0 0
  %2352 = vmatprep.subr.bf16.mxu0 0
  %2353 = vmatpush1.bf16.msra.mxu0 0
  %2354 = vmatprep.subr.bf16.mxu0 0
  %2355 = vmatpush1.bf16.msra.mxu0 0
  %2356 = vmatprep.subr.bf16.mxu0 0
  %2357 = vmatpush1.bf16.msra.mxu0 0
  %2358 = vmatprep.subr.bf16.mxu0 0
  %2359 = vmatpush1.bf16.msra.mxu0 0
  %2360 = vmatprep.subr.bf16.mxu0 0
  %2361 = vmatpush1.bf16.msra.mxu0 0
  %2362 = vmatprep.subr.bf16.mxu0 0
  %2363 = vmatpush1.bf16.msra.mxu0 0
  %2364 = vmatprep.mubr.bf16.mxu0 0
  %2365 = vmatmul.mubr.bf16.gmra.mrb[0].mxu0 %v2327
  %v2366 = vpop.f32.mrb[0].mxu0
  %v2367 = vadd.f32 0.0, %v2366
  %v2368 = vpop.f32.mrb[0].mxu0
  %v2369 = vpop.f32.mrb[0].mxu0
  %v2370 = vadd.f32 0.0, %v2369
  %v2371 = vpop.f32.mrb[0].mxu0
  %2372 = vmatprep.mubr.bf16.mxu0 0
  %2373 = vmatmul.mubr.bf16.gmra.mrb[0].mxu0 %v2330
  %v2374 = vpop.f32.mrb[0].mxu0
  %v2375 = vadd.f32 0.0, %v2374
  %v2376 = vpop.f32.mrb[0].mxu0
  %v2377 = vpop.f32.mrb[0].mxu0
  %v2378 = vadd.f32 0.0, %v2377
  %v2379 = vpop.f32.mrb[0].mxu0
  %2380 = vdwg.mxu0
  %v2381 = vpack.c.bf16 %v2370, %v2367
  %v2382 = vpack.c.bf16 %v2378, %v2375
  %s2383 = scalar_lea.vmem %s16, 16
  %v2384 = vld [vmem:[%s2383] sm:$0xf]
  %v2385 = vld [vmem:[%s2383 + $0x4] sm:$0xf]
  %v2386 = vld [vmem:[%s2383 + $0x8] sm:$0xf]
  %v2387 = vld [vmem:[%s2383 + $0xc] sm:$0xf]
  %v2392 = vunpack.c.l.b16 %v2384
  %v2393 = vunpack.c.l.b16 %v2385
  %v2394 = vunpack.c.l.b16 %v2386
  %v2395 = vunpack.c.l.b16 %v2387
  %v2396 = vpack.c.b16 %v2393, %v2392
  %v2397 = vpack.c.b16 %v2395, %v2394
  %v2399 = vsel %vm480, %v2396, 0
  %v2402 = vsel %vm480, %v2397, 0
  %2404 = vmatprep.subr.bf16.mxu0 0
  %2405 = vmatpush1.bf16.msra.mxu0 %v478
  %2406 = vmatprep.subr.bf16.mxu0 0
  %2407 = vmatpush1.bf16.msra.mxu0 0
  %2408 = vmatprep.subr.bf16.mxu0 0
  %2409 = vmatpush1.bf16.msra.mxu0 0
  %2410 = vmatprep.subr.bf16.mxu0 0
  %2411 = vmatpush1.bf16.msra.mxu0 0
  %2412 = vmatprep.subr.bf16.mxu0 0
  %2413 = vmatpush1.bf16.msra.mxu0 0
  %2414 = vmatprep.subr.bf16.mxu0 0
  %2415 = vmatpush1.bf16.msra.mxu0 0
  %2416 = vmatprep.subr.bf16.mxu0 0
  %2417 = vmatpush1.bf16.msra.mxu0 0
  %2418 = vmatprep.subr.bf16.mxu0 0
  %2419 = vmatpush1.bf16.msra.mxu0 0
  %2420 = vmatprep.subr.bf16.mxu0 0
  %2421 = vmatpush1.bf16.msra.mxu0 0
  %2422 = vmatprep.subr.bf16.mxu0 0
  %2423 = vmatpush1.bf16.msra.mxu0 0
  %2424 = vmatprep.subr.bf16.mxu0 0
  %2425 = vmatpush1.bf16.msra.mxu0 0
  %2426 = vmatprep.subr.bf16.mxu0 0
  %2427 = vmatpush1.bf16.msra.mxu0 0
  %2428 = vmatprep.subr.bf16.mxu0 0
  %2429 = vmatpush1.bf16.msra.mxu0 0
  %2430 = vmatprep.subr.bf16.mxu0 0
  %2431 = vmatpush1.bf16.msra.mxu0 0
  %2432 = vmatprep.subr.bf16.mxu0 0
  %2433 = vmatpush1.bf16.msra.mxu0 0
  %2434 = vmatprep.subr.bf16.mxu0 0
  %2435 = vmatpush1.bf16.msra.mxu0 0
  %2436 = vmatprep.mubr.bf16.mxu0 0
  %2437 = vmatmul.mubr.bf16.gmra.mrb[0].mxu0 %v2399
  %v2438 = vpop.f32.mrb[0].mxu0
  %v2439 = vadd.f32 0.0, %v2438
  %v2440 = vpop.f32.mrb[0].mxu0
  %v2441 = vpop.f32.mrb[0].mxu0
  %v2442 = vadd.f32 0.0, %v2441
  %v2443 = vpop.f32.mrb[0].mxu0
  %2444 = vmatprep.mubr.bf16.mxu0 0
  %2445 = vmatmul.mubr.bf16.gmra.mrb[0].mxu0 %v2402
  %v2446 = vpop.f32.mrb[0].mxu0
  %v2447 = vadd.f32 0.0, %v2446
  %v2448 = vpop.f32.mrb[0].mxu0
  %v2449 = vpop.f32.mrb[0].mxu0
  %v2450 = vadd.f32 0.0, %v2449
  %v2451 = vpop.f32.mrb[0].mxu0
  %2452 = vdwg.mxu0
  %v2453 = vpack.c.bf16 %v2442, %v2439
  %v2454 = vpack.c.bf16 %v2450, %v2447
  %s2455 = scalar_lea.vmem %s16, 32
  %v2456 = vld [vmem:[%s2455] sm:$0xf]
  %v2457 = vld [vmem:[%s2455 + $0x4] sm:$0xf]
  %v2458 = vld [vmem:[%s2455 + $0x8] sm:$0xf]
  %v2459 = vld [vmem:[%s2455 + $0xc] sm:$0xf]
  %v2464 = vunpack.c.l.b16 %v2456
  %v2465 = vunpack.c.l.b16 %v2457
  %v2466 = vunpack.c.l.b16 %v2458
  %v2467 = vunpack.c.l.b16 %v2459
  %v2468 = vpack.c.b16 %v2465, %v2464
  %v2469 = vpack.c.b16 %v2467, %v2466
  %v2471 = vsel %vm480, %v2468, 0
  %v2474 = vsel %vm480, %v2469, 0
  %2476 = vmatprep.subr.bf16.mxu0 0
  %2477 = vmatpush1.bf16.msra.mxu0 %v478
  %2478 = vmatprep.subr.bf16.mxu0 0
  %2479 = vmatpush1.bf16.msra.mxu0 0
  %2480 = vmatprep.subr.bf16.mxu0 0
  %2481 = vmatpush1.bf16.msra.mxu0 0
  %2482 = vmatprep.subr.bf16.mxu0 0
  %2483 = vmatpush1.bf16.msra.mxu0 0
  %2484 = vmatprep.subr.bf16.mxu0 0
  %2485 = vmatpush1.bf16.msra.mxu0 0
  %2486 = vmatprep.subr.bf16.mxu0 0
  %2487 = vmatpush1.bf16.msra.mxu0 0
  %2488 = vmatprep.subr.bf16.mxu0 0
  %2489 = vmatpush1.bf16.msra.mxu0 0
  %2490 = vmatprep.subr.bf16.mxu0 0
  %2491 = vmatpush1.bf16.msra.mxu0 0
  %2492 = vmatprep.subr.bf16.mxu0 0
  %2493 = vmatpush1.bf16.msra.mxu0 0
  %2494 = vmatprep.subr.bf16.mxu0 0
  %2495 = vmatpush1.bf16.msra.mxu0 0
  %2496 = vmatprep.subr.bf16.mxu0 0
  %2497 = vmatpush1.bf16.msra.mxu0 0
  %2498 = vmatprep.subr.bf16.mxu0 0
  %2499 = vmatpush1.bf16.msra.mxu0 0
  %2500 = vmatprep.subr.bf16.mxu0 0
  %2501 = vmatpush1.bf16.msra.mxu0 0
  %2502 = vmatprep.subr.bf16.mxu0 0
  %2503 = vmatpush1.bf16.msra.mxu0 0
  %2504 = vmatprep.subr.bf16.mxu0 0
  %2505 = vmatpush1.bf16.msra.mxu0 0
  %2506 = vmatprep.subr.bf16.mxu0 0
  %2507 = vmatpush1.bf16.msra.mxu0 0
  %2508 = vmatprep.mubr.bf16.mxu0 0
  %2509 = vmatmul.mubr.bf16.gmra.mrb[0].mxu0 %v2471
  %v2510 = vpop.f32.mrb[0].mxu0
  %v2511 = vadd.f32 0.0, %v2510
  %v2512 = vpop.f32.mrb[0].mxu0
  %v2513 = vpop.f32.mrb[0].mxu0
  %v2514 = vadd.f32 0.0, %v2513
  %v2515 = vpop.f32.mrb[0].mxu0
  %2516 = vmatprep.mubr.bf16.mxu0 0
  %2517 = vmatmul.mubr.bf16.gmra.mrb[0].mxu0 %v2474
  %v2518 = vpop.f32.mrb[0].mxu0
  %v2519 = vadd.f32 0.0, %v2518
  %v2520 = vpop.f32.mrb[0].mxu0
  %v2521 = vpop.f32.mrb[0].mxu0
  %v2522 = vadd.f32 0.0, %v2521
  %v2523 = vpop.f32.mrb[0].mxu0
  %2524 = vdwg.mxu0
  %v2525 = vpack.c.bf16 %v2514, %v2511
  %v2526 = vpack.c.bf16 %v2522, %v2519
  %s2527 = scalar_lea.vmem %s16, 48
  %v2528 = vld [vmem:[%s2527] sm:$0xf]
  %v2529 = vld [vmem:[%s2527 + $0x4] sm:$0xf]
  %v2530 = vld [vmem:[%s2527 + $0x8] sm:$0xf]
  %v2531 = vld [vmem:[%s2527 + $0xc] sm:$0xf]
  %v2536 = vunpack.c.l.b16 %v2528
  %v2537 = vunpack.c.l.b16 %v2529
  %v2538 = vunpack.c.l.b16 %v2530
  %v2539 = vunpack.c.l.b16 %v2531
  %v2540 = vpack.c.b16 %v2537, %v2536
  %v2541 = vpack.c.b16 %v2539, %v2538
  %v2543 = vsel %vm480, %v2540, 0
  %v2546 = vsel %vm480, %v2541, 0
  %2548 = vmatprep.subr.bf16.mxu0 0
  %2549 = vmatpush1.bf16.msra.mxu0 %v478
  %2550 = vmatprep.subr.bf16.mxu0 0
  %2551 = vmatpush1.bf16.msra.mxu0 0
  %2552 = vmatprep.subr.bf16.mxu0 0
  %2553 = vmatpush1.bf16.msra.mxu0 0
  %2554 = vmatprep.subr.bf16.mxu0 0
  %2555 = vmatpush1.bf16.msra.mxu0 0
  %2556 = vmatprep.subr.bf16.mxu0 0
  %2557 = vmatpush1.bf16.msra.mxu0 0
  %2558 = vmatprep.subr.bf16.mxu0 0
  %2559 = vmatpush1.bf16.msra.mxu0 0
  %2560 = vmatprep.subr.bf16.mxu0 0
  %2561 = vmatpush1.bf16.msra.mxu0 0
  %2562 = vmatprep.subr.bf16.mxu0 0
  %2563 = vmatpush1.bf16.msra.mxu0 0
  %2564 = vmatprep.subr.bf16.mxu0 0
  %2565 = vmatpush1.bf16.msra.mxu0 0
  %2566 = vmatprep.subr.bf16.mxu0 0
  %2567 = vmatpush1.bf16.msra.mxu0 0
  %2568 = vmatprep.subr.bf16.mxu0 0
  %2569 = vmatpush1.bf16.msra.mxu0 0
  %2570 = vmatprep.subr.bf16.mxu0 0
  %2571 = vmatpush1.bf16.msra.mxu0 0
  %2572 = vmatprep.subr.bf16.mxu0 0
  %2573 = vmatpush1.bf16.msra.mxu0 0
  %2574 = vmatprep.subr.bf16.mxu0 0
  %2575 = vmatpush1.bf16.msra.mxu0 0
  %2576 = vmatprep.subr.bf16.mxu0 0
  %2577 = vmatpush1.bf16.msra.mxu0 0
  %2578 = vmatprep.subr.bf16.mxu0 0
  %2579 = vmatpush1.bf16.msra.mxu0 0
  %2580 = vmatprep.mubr.bf16.mxu0 0
  %2581 = vmatmul.mubr.bf16.gmra.mrb[0].mxu0 %v2543
  %v2582 = vpop.f32.mrb[0].mxu0
  %v2583 = vadd.f32 0.0, %v2582
  %v2584 = vpop.f32.mrb[0].mxu0
  %v2585 = vpop.f32.mrb[0].mxu0
  %v2586 = vadd.f32 0.0, %v2585
  %v2587 = vpop.f32.mrb[0].mxu0
  %2588 = vmatprep.mubr.bf16.mxu0 0
  %2589 = vmatmul.mubr.bf16.gmra.mrb[0].mxu0 %v2546
  %v2590 = vpop.f32.mrb[0].mxu0
  %v2591 = vadd.f32 0.0, %v2590
  %v2592 = vpop.f32.mrb[0].mxu0
  %v2593 = vpop.f32.mrb[0].mxu0
  %v2594 = vadd.f32 0.0, %v2593
  %v2595 = vpop.f32.mrb[0].mxu0
  %2596 = vdwg.mxu0
  %v2597 = vpack.c.bf16 %v2586, %v2583
  %v2598 = vpack.c.bf16 %v2594, %v2591
  %2599 = vmatprep.subr.bf16.mxu0 0
  %2600 = vmatpush1.bf16.msra.mxu0 %v2311
  %2601 = vmatprep.subr.bf16.mxu0 0
  %2602 = vmatpush1.bf16.msra.mxu0 0
  %2603 = vmatprep.subr.bf16.mxu0 0
  %2604 = vmatpush1.bf16.msra.mxu0 0
  %2605 = vmatprep.subr.bf16.mxu0 0
  %2606 = vmatpush1.bf16.msra.mxu0 0
  %2607 = vmatprep.subr.bf16.mxu0 0
  %2608 = vmatpush1.bf16.msra.mxu0 0
  %2609 = vmatprep.subr.bf16.mxu0 0
  %2610 = vmatpush1.bf16.msra.mxu0 0
  %2611 = vmatprep.subr.bf16.mxu0 0
  %2612 = vmatpush1.bf16.msra.mxu0 0
  %2613 = vmatprep.subr.bf16.mxu0 0
  %2614 = vmatpush1.bf16.msra.mxu0 0
  %2615 = vmatprep.subr.bf16.mxu0 0
  %2616 = vmatpush1.bf16.msra.mxu0 0
  %2617 = vmatprep.subr.bf16.mxu0 0
  %2618 = vmatpush1.bf16.msra.mxu0 0
  %2619 = vmatprep.subr.bf16.mxu0 0
  %2620 = vmatpush1.bf16.msra.mxu0 0
  %2621 = vmatprep.subr.bf16.mxu0 0
  %2622 = vmatpush1.bf16.msra.mxu0 0
  %2623 = vmatprep.subr.bf16.mxu0 0
  %2624 = vmatpush1.bf16.msra.mxu0 0
  %2625 = vmatprep.subr.bf16.mxu0 0
  %2626 = vmatpush1.bf16.msra.mxu0 0
  %2627 = vmatprep.subr.bf16.mxu0 0
  %2628 = vmatpush1.bf16.msra.mxu0 0
  %2629 = vmatprep.subr.bf16.mxu0 0
  %2630 = vmatpush1.bf16.msra.mxu0 0
  %2631 = vmatprep.mubr.bf16.mxu0 0
  %2632 = vmatmul.mubr.bf16.gmra.mrb[0].mxu0 %v2327
  %v2633 = vpop.f32.mrb[0].mxu0
  %v2634 = vadd.f32 0.0, %v2633
  %v2635 = vpop.f32.mrb[0].mxu0
  %v2636 = vpop.f32.mrb[0].mxu0
  %v2637 = vadd.f32 0.0, %v2636
  %v2638 = vpop.f32.mrb[0].mxu0
  %2639 = vmatprep.mubr.bf16.mxu0 0
  %2640 = vmatmul.mubr.bf16.gmra.mrb[0].mxu0 %v2330
  %v2641 = vpop.f32.mrb[0].mxu0
  %v2642 = vadd.f32 0.0, %v2641
  %v2643 = vpop.f32.mrb[0].mxu0
  %v2644 = vpop.f32.mrb[0].mxu0
  %v2645 = vadd.f32 0.0, %v2644
  %v2646 = vpop.f32.mrb[0].mxu0
  %2647 = vdwg.mxu0
  %v2648 = vpack.c.bf16 %v2637, %v2634
  %v2649 = vpack.c.bf16 %v2645, %v2642
  %2650 = vmatprep.subr.bf16.mxu0 0
  %2651 = vmatpush1.bf16.msra.mxu0 %v2311
  %2652 = vmatprep.subr.bf16.mxu0 0
  %2653 = vmatpush1.bf16.msra.mxu0 0
  %2654 = vmatprep.subr.bf16.mxu0 0
  %2655 = vmatpush1.bf16.msra.mxu0 0
  %2656 = vmatprep.subr.bf16.mxu0 0
  %2657 = vmatpush1.bf16.msra.mxu0 0
  %2658 = vmatprep.subr.bf16.mxu0 0
  %2659 = vmatpush1.bf16.msra.mxu0 0
  %2660 = vmatprep.subr.bf16.mxu0 0
  %2661 = vmatpush1.bf16.msra.mxu0 0
  %2662 = vmatprep.subr.bf16.mxu0 0
  %2663 = vmatpush1.bf16.msra.mxu0 0
  %2664 = vmatprep.subr.bf16.mxu0 0
  %2665 = vmatpush1.bf16.msra.mxu0 0
  %2666 = vmatprep.subr.bf16.mxu0 0
  %2667 = vmatpush1.bf16.msra.mxu0 0
  %2668 = vmatprep.subr.bf16.mxu0 0
  %2669 = vmatpush1.bf16.msra.mxu0 0
  %2670 = vmatprep.subr.bf16.mxu0 0
  %2671 = vmatpush1.bf16.msra.mxu0 0
  %2672 = vmatprep.subr.bf16.mxu0 0
  %2673 = vmatpush1.bf16.msra.mxu0 0
  %2674 = vmatprep.subr.bf16.mxu0 0
  %2675 = vmatpush1.bf16.msra.mxu0 0
  %2676 = vmatprep.subr.bf16.mxu0 0
  %2677 = vmatpush1.bf16.msra.mxu0 0
  %2678 = vmatprep.subr.bf16.mxu0 0
  %2679 = vmatpush1.bf16.msra.mxu0 0
  %2680 = vmatprep.subr.bf16.mxu0 0
  %2681 = vmatpush1.bf16.msra.mxu0 0
  %2682 = vmatprep.mubr.bf16.mxu0 0
  %2683 = vmatmul.mubr.bf16.gmra.mrb[0].mxu0 %v2399
  %v2684 = vpop.f32.mrb[0].mxu0
  %v2685 = vadd.f32 0.0, %v2684
  %v2686 = vpop.f32.mrb[0].mxu0
  %v2687 = vpop.f32.mrb[0].mxu0
  %v2688 = vadd.f32 0.0, %v2687
  %v2689 = vpop.f32.mrb[0].mxu0
  %2690 = vmatprep.mubr.bf16.mxu0 0
  %2691 = vmatmul.mubr.bf16.gmra.mrb[0].mxu0 %v2402
  %v2692 = vpop.f32.mrb[0].mxu0
  %v2693 = vadd.f32 0.0, %v2692
  %v2694 = vpop.f32.mrb[0].mxu0
  %v2695 = vpop.f32.mrb[0].mxu0
  %v2696 = vadd.f32 0.0, %v2695
  %v2697 = vpop.f32.mrb[0].mxu0
  %2698 = vdwg.mxu0
  %v2699 = vpack.c.bf16 %v2688, %v2685
  %v2700 = vpack.c.bf16 %v2696, %v2693
  %2701 = vmatprep.subr.bf16.mxu0 0
  %2702 = vmatpush1.bf16.msra.mxu0 %v2311
  %2703 = vmatprep.subr.bf16.mxu0 0
  %2704 = vmatpush1.bf16.msra.mxu0 0
  %2705 = vmatprep.subr.bf16.mxu0 0
  %2706 = vmatpush1.bf16.msra.mxu0 0
  %2707 = vmatprep.subr.bf16.mxu0 0
  %2708 = vmatpush1.bf16.msra.mxu0 0
  %2709 = vmatprep.subr.bf16.mxu0 0
  %2710 = vmatpush1.bf16.msra.mxu0 0
  %2711 = vmatprep.subr.bf16.mxu0 0
  %2712 = vmatpush1.bf16.msra.mxu0 0
  %2713 = vmatprep.subr.bf16.mxu0 0
  %2714 = vmatpush1.bf16.msra.mxu0 0
  %2715 = vmatprep.subr.bf16.mxu0 0
  %2716 = vmatpush1.bf16.msra.mxu0 0
  %2717 = vmatprep.subr.bf16.mxu0 0
  %2718 = vmatpush1.bf16.msra.mxu0 0
  %2719 = vmatprep.subr.bf16.mxu0 0
  %2720 = vmatpush1.bf16.msra.mxu0 0
  %2721 = vmatprep.subr.bf16.mxu0 0
  %2722 = vmatpush1.bf16.msra.mxu0 0
  %2723 = vmatprep.subr.bf16.mxu0 0
  %2724 = vmatpush1.bf16.msra.mxu0 0
  %2725 = vmatprep.subr.bf16.mxu0 0
  %2726 = vmatpush1.bf16.msra.mxu0 0
  %2727 = vmatprep.subr.bf16.mxu0 0
  %2728 = vmatpush1.bf16.msra.mxu0 0
  %2729 = vmatprep.subr.bf16.mxu0 0
  %2730 = vmatpush1.bf16.msra.mxu0 0
  %2731 = vmatprep.subr.bf16.mxu0 0
  %2732 = vmatpush1.bf16.msra.mxu0 0
  %2733 = vmatprep.mubr.bf16.mxu0 0
  %2734 = vmatmul.mubr.bf16.gmra.mrb[0].mxu0 %v2471
  %v2735 = vpop.f32.mrb[0].mxu0
  %v2736 = vadd.f32 0.0, %v2735
  %v2737 = vpop.f32.mrb[0].mxu0
  %v2738 = vpop.f32.mrb[0].mxu0
  %v2739 = vadd.f32 0.0, %v2738
  %v2740 = vpop.f32.mrb[0].mxu0
  %2741 = vmatprep.mubr.bf16.mxu0 0
  %2742 = vmatmul.mubr.bf16.gmra.mrb[0].mxu0 %v2474
  %v2743 = vpop.f32.mrb[0].mxu0
  %v2744 = vadd.f32 0.0, %v2743
  %v2745 = vpop.f32.mrb[0].mxu0
  %v2746 = vpop.f32.mrb[0].mxu0
  %v2747 = vadd.f32 0.0, %v2746
  %v2748 = vpop.f32.mrb[0].mxu0
  %2749 = vdwg.mxu0
  %v2750 = vpack.c.bf16 %v2739, %v2736
  %v2751 = vpack.c.bf16 %v2747, %v2744
  %2752 = vmatprep.subr.bf16.mxu0 0
  %2753 = vmatpush1.bf16.msra.mxu0 %v2311
  %2754 = vmatprep.subr.bf16.mxu0 0
  %2755 = vmatpush1.bf16.msra.mxu0 0
  %2756 = vmatprep.subr.bf16.mxu0 0
  %2757 = vmatpush1.bf16.msra.mxu0 0
  %2758 = vmatprep.subr.bf16.mxu0 0
  %2759 = vmatpush1.bf16.msra.mxu0 0
  %2760 = vmatprep.subr.bf16.mxu0 0
  %2761 = vmatpush1.bf16.msra.mxu0 0
  %2762 = vmatprep.subr.bf16.mxu0 0
  %2763 = vmatpush1.bf16.msra.mxu0 0
  %2764 = vmatprep.subr.bf16.mxu0 0
  %2765 = vmatpush1.bf16.msra.mxu0 0
  %2766 = vmatprep.subr.bf16.mxu0 0
  %2767 = vmatpush1.bf16.msra.mxu0 0
  %2768 = vmatprep.subr.bf16.mxu0 0
  %2769 = vmatpush1.bf16.msra.mxu0 0
  %2770 = vmatprep.subr.bf16.mxu0 0
  %2771 = vmatpush1.bf16.msra.mxu0 0
  %2772 = vmatprep.subr.bf16.mxu0 0
  %2773 = vmatpush1.bf16.msra.mxu0 0
  %2774 = vmatprep.subr.bf16.mxu0 0
  %2775 = vmatpush1.bf16.msra.mxu0 0
  %2776 = vmatprep.subr.bf16.mxu0 0
  %2777 = vmatpush1.bf16.msra.mxu0 0
  %2778 = vmatprep.subr.bf16.mxu0 0
  %2779 = vmatpush1.bf16.msra.mxu0 0
  %2780 = vmatprep.subr.bf16.mxu0 0
  %2781 = vmatpush1.bf16.msra.mxu0 0
  %2782 = vmatprep.subr.bf16.mxu0 0
  %2783 = vmatpush1.bf16.msra.mxu0 0
  %2784 = vmatprep.mubr.bf16.mxu0 0
  %2785 = vmatmul.mubr.bf16.gmra.mrb[0].mxu0 %v2543
  %v2786 = vpop.f32.mrb[0].mxu0
  %v2787 = vadd.f32 0.0, %v2786
  %v2788 = vpop.f32.mrb[0].mxu0
  %v2789 = vpop.f32.mrb[0].mxu0
  %v2790 = vadd.f32 0.0, %v2789
  %v2791 = vpop.f32.mrb[0].mxu0
  %2792 = vmatprep.mubr.bf16.mxu0 0
  %2793 = vmatmul.mubr.bf16.gmra.mrb[0].mxu0 %v2546
  %v2794 = vpop.f32.mrb[0].mxu0
  %v2795 = vadd.f32 0.0, %v2794
  %v2796 = vpop.f32.mrb[0].mxu0
  %v2797 = vpop.f32.mrb[0].mxu0
  %v2798 = vadd.f32 0.0, %v2797
  %v2799 = vpop.f32.mrb[0].mxu0
  %2800 = vdwg.mxu0
  %v2801 = vpack.c.bf16 %v2790, %v2787
  %v2802 = vpack.c.bf16 %v2798, %v2795
  %2805 = vrot.lane.b32.xlu0 %v2453, 64
  %v2806 = vpop.permute.xlu0 %2805
  %2807 = vrot.lane.b32.xlu0 %v2454, 64
  %v2808 = vpop.permute.xlu0 %2807
  %2811 = vrot.lane.b32.xlu0 %v2597, 64
  %v2812 = vpop.permute.xlu0 %2811
  %2813 = vrot.lane.b32.xlu0 %v2598, 64
  %v2814 = vpop.permute.xlu0 %2813
  %2817 = vrot.lane.b32.xlu0 %v2699, 64
  %v2818 = vpop.permute.xlu0 %2817
  %2819 = vrot.lane.b32.xlu0 %v2700, 64
  %v2820 = vpop.permute.xlu0 %2819
  %2823 = vrot.lane.b32.xlu0 %v2801, 64
  %v2824 = vpop.permute.xlu0 %2823
  %2825 = vrot.lane.b32.xlu0 %v2802, 64
  %v2826 = vpop.permute.xlu0 %2825
  %v2829 = vsel %vm287, %v2381, %v2806
  %v2833 = vsel %vm287, %v2382, %v2808
  %v2837 = vsel %vm287, %v2525, %v2812
  %v2841 = vsel %vm287, %v2526, %v2814
  %v2845 = vsel %vm287, %v2648, %v2818
  %v2849 = vsel %vm287, %v2649, %v2820
  %v2853 = vsel %vm287, %v2750, %v2824
  %v2857 = vsel %vm287, %v2751, %v2826
  %v2859 = vld [vmem:[%s17] sm:$0xf]
  %v2860 = vld [vmem:[%s17 + $0x4] sm:$0xf]
  %v2861 = vld [vmem:[%s17 + $0x8] sm:$0xf]
  %v2862 = vld [vmem:[%s17 + $0xc] sm:$0xf]
  %v2863 = vld [vmem:[%s17 + $0x10] sm:$0xf]
  %v2864 = vld [vmem:[%s17 + $0x14] sm:$0xf]
  %v2865 = vld [vmem:[%s17 + $0x18] sm:$0xf]
  %v2866 = vld [vmem:[%s17 + $0x1c] sm:$0xf]
  %v2867 = vld [vmem:[%s17 + $0x20] sm:$0xf]
  %v2868 = vld [vmem:[%s17 + $0x24] sm:$0xf]
  %v2869 = vld [vmem:[%s17 + $0x28] sm:$0xf]
  %v2870 = vld [vmem:[%s17 + $0x2c] sm:$0xf]
  %v2871 = vld [vmem:[%s17 + $0x30] sm:$0xf]
  %v2872 = vld [vmem:[%s17 + $0x34] sm:$0xf]
  %v2873 = vld [vmem:[%s17 + $0x38] sm:$0xf]
  %v2874 = vld [vmem:[%s17 + $0x3c] sm:$0xf]
  %v2875 = vld [vmem:[%s17 + $0x40] sm:$0xf]
  %v2876 = vld [vmem:[%s17 + $0x44] sm:$0xf]
  %v2877 = vld [vmem:[%s17 + $0x48] sm:$0xf]
  %v2878 = vld [vmem:[%s17 + $0x4c] sm:$0xf]
  %v2879 = vld [vmem:[%s17 + $0x50] sm:$0xf]
  %v2880 = vld [vmem:[%s17 + $0x54] sm:$0xf]
  %v2881 = vld [vmem:[%s17 + $0x58] sm:$0xf]
  %v2882 = vld [vmem:[%s17 + $0x5c] sm:$0xf]
  %v2883 = vld [vmem:[%s17 + $0x60] sm:$0xf]
  %v2884 = vld [vmem:[%s17 + $0x64] sm:$0xf]
  %v2885 = vld [vmem:[%s17 + $0x68] sm:$0xf]
  %v2886 = vld [vmem:[%s17 + $0x6c] sm:$0xf]
  %v2887 = vld [vmem:[%s17 + $0x70] sm:$0xf]
  %v2888 = vld [vmem:[%s17 + $0x74] sm:$0xf]
  %v2889 = vld [vmem:[%s17 + $0x78] sm:$0xf]
  %v2890 = vld [vmem:[%s17 + $0x7c] sm:$0xf]
  %v2891 = vld [vmem:[%s17 + $0x80] sm:$0xf]
  %v2892 = vld [vmem:[%s17 + $0x84] sm:$0xf]
  %v2893 = vld [vmem:[%s17 + $0x88] sm:$0xf]
  %v2894 = vld [vmem:[%s17 + $0x8c] sm:$0xf]
  %v2895 = vld [vmem:[%s17 + $0x90] sm:$0xf]
  %v2896 = vld [vmem:[%s17 + $0x94] sm:$0xf]
  %v2897 = vld [vmem:[%s17 + $0x98] sm:$0xf]
  %v2898 = vld [vmem:[%s17 + $0x9c] sm:$0xf]
  %v2899 = vld [vmem:[%s17 + $0xa0] sm:$0xf]
  %v2900 = vld [vmem:[%s17 + $0xa4] sm:$0xf]
  %v2901 = vld [vmem:[%s17 + $0xa8] sm:$0xf]
  %v2902 = vld [vmem:[%s17 + $0xac] sm:$0xf]
  %v2903 = vld [vmem:[%s17 + $0xb0] sm:$0xf]
  %v2904 = vld [vmem:[%s17 + $0xb4] sm:$0xf]
  %v2905 = vld [vmem:[%s17 + $0xb8] sm:$0xf]
  %v2906 = vld [vmem:[%s17 + $0xbc] sm:$0xf]
  %v2907 = vld [vmem:[%s17 + $0xc0] sm:$0xf]
  %v2908 = vld [vmem:[%s17 + $0xc4] sm:$0xf]
  %v2909 = vld [vmem:[%s17 + $0xc8] sm:$0xf]
  %v2910 = vld [vmem:[%s17 + $0xcc] sm:$0xf]
  %v2911 = vld [vmem:[%s17 + $0xd0] sm:$0xf]
  %v2912 = vld [vmem:[%s17 + $0xd4] sm:$0xf]
  %v2913 = vld [vmem:[%s17 + $0xd8] sm:$0xf]
  %v2914 = vld [vmem:[%s17 + $0xdc] sm:$0xf]
  %v2915 = vld [vmem:[%s17 + $0xe0] sm:$0xf]
  %v2916 = vld [vmem:[%s17 + $0xe4] sm:$0xf]
  %v2917 = vld [vmem:[%s17 + $0xe8] sm:$0xf]
  %v2918 = vld [vmem:[%s17 + $0xec] sm:$0xf]
  %v2919 = vld [vmem:[%s17 + $0xf0] sm:$0xf]
  %v2920 = vld [vmem:[%s17 + $0xf4] sm:$0xf]
  %v2921 = vld [vmem:[%s17 + $0xf8] sm:$0xf]
  %v2922 = vld [vmem:[%s17 + $0xfc] sm:$0xf]
  %v2923 = vld [vmem:[%s18] sm:$0x1]
  %v2925 = vlaneseq
  %v2926 = vshrl.u32 %v2925, 7
  %v2927 = vsub.s32 0, %v2926
  %v2928 = vrot.slane %v2923, %v2927
  %v2994 = vunpack.c.l.b16 %v2859
  %v2995 = vunpack.c.l.b16 %v2860
  %v2996 = vunpack.c.l.b16 %v2861
  %v2997 = vunpack.c.l.b16 %v2862
  %v2998 = vunpack.c.l.b16 %v2863
  %v2999 = vunpack.c.l.b16 %v2864
  %v3000 = vunpack.c.l.b16 %v2865
  %v3001 = vunpack.c.l.b16 %v2866
  %v3002 = vunpack.c.l.b16 %v2867
  %v3003 = vunpack.c.l.b16 %v2868
  %v3004 = vunpack.c.l.b16 %v2869
  %v3005 = vunpack.c.l.b16 %v2870
  %v3006 = vunpack.c.l.b16 %v2871
  %v3007 = vunpack.c.l.b16 %v2872
  %v3008 = vunpack.c.l.b16 %v2873
  %v3009 = vunpack.c.l.b16 %v2874
  %v3010 = vunpack.c.l.b16 %v2875
  %v3011 = vunpack.c.l.b16 %v2876
  %v3012 = vunpack.c.l.b16 %v2877
  %v3013 = vunpack.c.l.b16 %v2878
  %v3014 = vunpack.c.l.b16 %v2879
  %v3015 = vunpack.c.l.b16 %v2880
  %v3016 = vunpack.c.l.b16 %v2881
  %v3017 = vunpack.c.l.b16 %v2882
  %v3018 = vunpack.c.l.b16 %v2883
  %v3019 = vunpack.c.l.b16 %v2884
  %v3020 = vunpack.c.l.b16 %v2885
  %v3021 = vunpack.c.l.b16 %v2886
  %v3022 = vunpack.c.l.b16 %v2887
  %v3023 = vunpack.c.l.b16 %v2888
  %v3024 = vunpack.c.l.b16 %v2889
  %v3025 = vunpack.c.l.b16 %v2890
  %v3026 = vunpack.c.l.b16 %v2891
  %v3027 = vunpack.c.l.b16 %v2892
  %v3028 = vunpack.c.l.b16 %v2893
  %v3029 = vunpack.c.l.b16 %v2894
  %v3030 = vunpack.c.l.b16 %v2895
  %v3031 = vunpack.c.l.b16 %v2896
  %v3032 = vunpack.c.l.b16 %v2897
  %v3033 = vunpack.c.l.b16 %v2898
  %v3034 = vunpack.c.l.b16 %v2899
  %v3035 = vunpack.c.l.b16 %v2900
  %v3036 = vunpack.c.l.b16 %v2901
  %v3037 = vunpack.c.l.b16 %v2902
  %v3038 = vunpack.c.l.b16 %v2903
  %v3039 = vunpack.c.l.b16 %v2904
  %v3040 = vunpack.c.l.b16 %v2905
  %v3041 = vunpack.c.l.b16 %v2906
  %v3042 = vunpack.c.l.b16 %v2907
  %v3043 = vunpack.c.l.b16 %v2908
  %v3044 = vunpack.c.l.b16 %v2909
  %v3045 = vunpack.c.l.b16 %v2910
  %v3046 = vunpack.c.l.b16 %v2911
  %v3047 = vunpack.c.l.b16 %v2912
  %v3048 = vunpack.c.l.b16 %v2913
  %v3049 = vunpack.c.l.b16 %v2914
  %v3050 = vunpack.c.l.b16 %v2915
  %v3051 = vunpack.c.l.b16 %v2916
  %v3052 = vunpack.c.l.b16 %v2917
  %v3053 = vunpack.c.l.b16 %v2918
  %v3054 = vunpack.c.l.b16 %v2919
  %v3055 = vunpack.c.l.b16 %v2920
  %v3056 = vunpack.c.l.b16 %v2921
  %v3057 = vunpack.c.l.b16 %v2922
  %v3058 = vpack.c.b16 %v2995, %v2994
  %v3059 = vpack.c.b16 %v2997, %v2996
  %v3060 = vpack.c.b16 %v2999, %v2998
  %v3061 = vpack.c.b16 %v3001, %v3000
  %v3062 = vpack.c.b16 %v3003, %v3002
  %v3063 = vpack.c.b16 %v3005, %v3004
  %v3064 = vpack.c.b16 %v3007, %v3006
  %v3065 = vpack.c.b16 %v3009, %v3008
  %v3066 = vpack.c.b16 %v3011, %v3010
  %v3067 = vpack.c.b16 %v3013, %v3012
  %v3068 = vpack.c.b16 %v3015, %v3014
  %v3069 = vpack.c.b16 %v3017, %v3016
  %v3070 = vpack.c.b16 %v3019, %v3018
  %v3071 = vpack.c.b16 %v3021, %v3020
  %v3072 = vpack.c.b16 %v3023, %v3022
  %v3073 = vpack.c.b16 %v3025, %v3024
  %v3074 = vpack.c.b16 %v3027, %v3026
  %v3075 = vpack.c.b16 %v3029, %v3028
  %v3076 = vpack.c.b16 %v3031, %v3030
  %v3077 = vpack.c.b16 %v3033, %v3032
  %v3078 = vpack.c.b16 %v3035, %v3034
  %v3079 = vpack.c.b16 %v3037, %v3036
  %v3080 = vpack.c.b16 %v3039, %v3038
  %v3081 = vpack.c.b16 %v3041, %v3040
  %v3082 = vpack.c.b16 %v3043, %v3042
  %v3083 = vpack.c.b16 %v3045, %v3044
  %v3084 = vpack.c.b16 %v3047, %v3046
  %v3085 = vpack.c.b16 %v3049, %v3048
  %v3086 = vpack.c.b16 %v3051, %v3050
  %v3087 = vpack.c.b16 %v3053, %v3052
  %v3088 = vpack.c.b16 %v3055, %v3054
  %v3089 = vpack.c.b16 %v3057, %v3056
  %3122 = vmatprep.subr.bf16.mxu0 0
  %3123 = vmatpush1.bf16.msra.mxu0 %v3058
  %3124 = vmatprep.subr.bf16.mxu0 0
  %3125 = vmatpush1.bf16.msra.mxu0 %v3059
  %3126 = vmatprep.subr.bf16.mxu0 0
  %3127 = vmatpush1.bf16.msra.mxu0 %v3060
  %3128 = vmatprep.subr.bf16.mxu0 0
  %3129 = vmatpush1.bf16.msra.mxu0 %v3061
  %3130 = vmatprep.subr.bf16.mxu0 0
  %3131 = vmatpush1.bf16.msra.mxu0 %v3062
  %3132 = vmatprep.subr.bf16.mxu0 0
  %3133 = vmatpush1.bf16.msra.mxu0 %v3063
  %3134 = vmatprep.subr.bf16.mxu0 0
  %3135 = vmatpush1.bf16.msra.mxu0 %v3064
  %3136 = vmatprep.subr.bf16.mxu0 0
  %3137 = vmatpush1.bf16.msra.mxu0 %v3065
  %3138 = vmatprep.subr.bf16.mxu0 0
  %3139 = vmatpush1.bf16.msra.mxu0 %v3066
  %3140 = vmatprep.subr.bf16.mxu0 0
  %3141 = vmatpush1.bf16.msra.mxu0 %v3067
  %3142 = vmatprep.subr.bf16.mxu0 0
  %3143 = vmatpush1.bf16.msra.mxu0 %v3068
  %3144 = vmatprep.subr.bf16.mxu0 0
  %3145 = vmatpush1.bf16.msra.mxu0 %v3069
  %3146 = vmatprep.subr.bf16.mxu0 0
  %3147 = vmatpush1.bf16.msra.mxu0 %v3070
  %3148 = vmatprep.subr.bf16.mxu0 0
  %3149 = vmatpush1.bf16.msra.mxu0 %v3071
  %3150 = vmatprep.subr.bf16.mxu0 0
  %3151 = vmatpush1.bf16.msra.mxu0 %v3072
  %3152 = vmatprep.subr.bf16.mxu0 0
  %3153 = vmatpush1.bf16.msra.mxu0 %v3073
  %3154 = vmatprep.mubr.bf16.mxu0 %v2837
  %3155 = vmatmul.mubr.bf16.gmra.mrb[0].mxu0 %v2829
  %v3156 = vpop.f32.mrb[0].mxu0
  %v3157 = vadd.f32 %v2928, %v3156
  %v3158 = vpop.f32.mrb[0].mxu0
  %v3159 = vpop.f32.mrb[0].mxu0
  %v3160 = vadd.f32 %v2928, %v3159
  %v3161 = vpop.f32.mrb[0].mxu0
  %3162 = vmatprep.mubr.bf16.mxu0 %v2841
  %3163 = vmatmul.mubr.bf16.gmra.mrb[0].mxu0 %v2833
  %v3164 = vpop.f32.mrb[0].mxu0
  %v3165 = vadd.f32 %v2928, %v3164
  %v3166 = vpop.f32.mrb[0].mxu0
  %v3167 = vpop.f32.mrb[0].mxu0
  %v3168 = vadd.f32 %v2928, %v3167
  %v3169 = vpop.f32.mrb[0].mxu0
  %3170 = vdwg.mxu0
  %3171 = vmatprep.subr.bf16.mxu0 0
  %3172 = vmatpush1.bf16.msra.mxu0 %v3074
  %3173 = vmatprep.subr.bf16.mxu0 0
  %3174 = vmatpush1.bf16.msra.mxu0 %v3075
  %3175 = vmatprep.subr.bf16.mxu0 0
  %3176 = vmatpush1.bf16.msra.mxu0 %v3076
  %3177 = vmatprep.subr.bf16.mxu0 0
  %3178 = vmatpush1.bf16.msra.mxu0 %v3077
  %3179 = vmatprep.subr.bf16.mxu0 0
  %3180 = vmatpush1.bf16.msra.mxu0 %v3078
  %3181 = vmatprep.subr.bf16.mxu0 0
  %3182 = vmatpush1.bf16.msra.mxu0 %v3079
  %3183 = vmatprep.subr.bf16.mxu0 0
  %3184 = vmatpush1.bf16.msra.mxu0 %v3080
  %3185 = vmatprep.subr.bf16.mxu0 0
  %3186 = vmatpush1.bf16.msra.mxu0 %v3081
  %3187 = vmatprep.subr.bf16.mxu0 0
  %3188 = vmatpush1.bf16.msra.mxu0 %v3082
  %3189 = vmatprep.subr.bf16.mxu0 0
  %3190 = vmatpush1.bf16.msra.mxu0 %v3083
  %3191 = vmatprep.subr.bf16.mxu0 0
  %3192 = vmatpush1.bf16.msra.mxu0 %v3084
  %3193 = vmatprep.subr.bf16.mxu0 0
  %3194 = vmatpush1.bf16.msra.mxu0 %v3085
  %3195 = vmatprep.subr.bf16.mxu0 0
  %3196 = vmatpush1.bf16.msra.mxu0 %v3086
  %3197 = vmatprep.subr.bf16.mxu0 0
  %3198 = vmatpush1.bf16.msra.mxu0 %v3087
  %3199 = vmatprep.subr.bf16.mxu0 0
  %3200 = vmatpush1.bf16.msra.mxu0 %v3088
  %3201 = vmatprep.subr.bf16.mxu0 0
  %3202 = vmatpush1.bf16.msra.mxu0 %v3089
  %3203 = vmatprep.mubr.bf16.mxu0 %v2853
  %3204 = vmatmul.mubr.bf16.gmra.mrb[0].mxu0 %v2845
  %v3205 = vpop.f32.mrb[0].mxu0
  %v3206 = vadd.f32 %v3157, %v3205
  %v3207 = vpop.f32.mrb[0].mxu0
  %v3208 = vpop.f32.mrb[0].mxu0
  %v3209 = vadd.f32 %v3160, %v3208
  %v3210 = vpop.f32.mrb[0].mxu0
  %3211 = vmatprep.mubr.bf16.mxu0 %v2857
  %3212 = vmatmul.mubr.bf16.gmra.mrb[0].mxu0 %v2849
  %v3213 = vpop.f32.mrb[0].mxu0
  %v3214 = vadd.f32 %v3165, %v3213
  %v3215 = vpop.f32.mrb[0].mxu0
  %v3216 = vpop.f32.mrb[0].mxu0
  %v3217 = vadd.f32 %v3168, %v3216
  %v3218 = vpop.f32.mrb[0].mxu0
  %3219 = vdwg.mxu0
  %3220 = vst.msk [vmem:[%s19] sm:$0xff] %vm287, %v3206
  %3221 = vst.msk [vmem:[%s19 + $0x8] sm:$0xff] %vm287, %v3209
  %3222 = vst.msk [vmem:[%s19 + $0x10] sm:$0xff] %vm287, %v3214
  %3223 = vst.msk [vmem:[%s19 + $0x18] sm:$0xff] %vm287, %v3217
  // Predicated region
  $region78: #{generator_forward.1} parent=0 // pred_check
    _
  $region79: #{generator_forward.1} parent=0 // pred_check_branch
    %3225 = sbr.rel (0) target = $region81
  $region80: #{generator_forward.1} parent=0 // pred_region
    _
  $region81: #{generator_forward.1} parent=0 // pred_fallthru
    _
  // Predicated region
  $region82: #{generator_forward.1} parent=0 // pred_check
    _
  $region83: #{generator_forward.1} parent=0 // pred_check_branch
    %3227 = sbr.rel (0) target = $region85
  $region84: #{generator_forward.1} parent=0 // pred_region
    _
  $region85: #{generator_forward.1} parent=0 // pred_fallthru
    _

</llo_original>
